<compile_context>
chip_gen: v6e
topology: v6e:2x2x1
jax: 0.10.0
libtpu: 0.0.40
codegen_flags: <defaults>
</compile_context>

<pallas_src>
import jax
import jax.numpy as jnp
from jax import lax
from jax.experimental import pallas as pl
from jax.experimental.pallas import tpu as pltpu


# -----------------------------------------------------------------------------
# Fully fused encoder kernel (all ConvBlocks, one batch super-block per step).
# -----------------------------------------------------------------------------
def _make_encoder_kernel(num_blocks):
    def kernel(*refs):
        # refs = [x, (w0, sd0, su0, sel_e, sel_o, a0, c0, w1, sd1, su1, a1, c1)
        #             per block, out]
        x_ref, o_ref = refs[0], refs[-1]
        blk = refs[1:-1]
        f32 = jnp.float32

        b, h0, l0 = x_ref.shape
        y = x_ref[...].reshape(b * h0, l0)       # free: leading dims merge
        cd = y.dtype                              # compute dtype (f32 / bf16)

        for k in range(num_blocks):
            (w0, sd0, su0, sel_e, sel_o, a0, c0,
             w1, sd1, su1, a1, c1) = blk[12 * k:12 * (k + 1)]

            # conv0: H zero-padding via block-diagonal shift matmuls; kx taps,
            # W padding and the W half of the max-pool live in the banded
            # weight (ky stacked along K, even/odd parity stacked along N).
            r_m = jnp.dot(sd0[...], y, preferred_element_type=cd)   # x[h-1]
            r_p = jnp.dot(su0[...], y, preferred_element_type=cd)   # x[h+1]
            lhs0 = jnp.concatenate([r_m, y, r_p], axis=-1)          # (M, 3*W*Cin)
            acc0 = jnp.dot(lhs0, w0[...], preferred_element_type=f32)
            nmid = acc0.shape[-1] // 2
            m_w = jnp.maximum(acc0[:, :nmid], acc0[:, nmid:])       # W half of pool

            # H half of the 2x2 max-pool: even/odd row selection (precomputed,
            # block-diagonal so rows never mix across images).
            m_wc = m_w.astype(cd)
            pooled = jnp.maximum(
                jnp.dot(sel_e[...], m_wc, preferred_element_type=f32),
                jnp.dot(sel_o[...], m_wc, preferred_element_type=f32))

            # BN0 (+ conv0 bias, commutes with max-pool) + ReLU — lane-dense VPU.
            z = jnp.maximum(pooled * a0[...] + c0[...], 0.0).astype(cd)

            # conv1 (stride 1, pad 1): same structure, ky stacked along K.
            z_m = jnp.dot(sd1[...], z, preferred_element_type=cd)
            z_p = jnp.dot(su1[...], z, preferred_element_type=cd)
            lhs1 = jnp.concatenate([z_m, z, z_p], axis=-1)          # (M/2, 3*Wo*Cout)
            acc1 = jnp.dot(lhs1, w1[...], preferred_element_type=f32)

            # BN1 (+ conv1 bias) + ReLU.
            y = jnp.maximum(acc1 * a1[...] + c1[...], 0.0).astype(cd)

        o_ref[...] = y.reshape(o_ref.shape).astype(o_ref.dtype)

    return kernel


# -----------------------------------------------------------------------------
# Banded weights and block-diagonal shift / pool-selection matrices
# (tiny, built once in the wrapper; input lane = w*Cin + ci, output wo*Cout + co).
# -----------------------------------------------------------------------------
def _banded_conv0_weights(w, W):
    """(3,3,Cin,Cout) HWIO -> (3*W*Cin, 2*(W//2)*Cout); ky stacked along K,
    kx taps / W zero-pad / W-pool even-odd parity folded in (parity along N)."""
    _, _, cin, cout = w.shape
    Wo = W // 2
    wi = jnp.arange(W)[:, None]
    wo = jnp.arange(Wo)[None, :]
    mats = []
    for par in range(2):
        m = jnp.zeros((3, W, cin, Wo, cout), w.dtype)
        for kx in range(3):
            sel = (wi == 2 * wo + par + kx - 1).astype(w.dtype)      # (W, Wo)
            m = m + jnp.einsum('pq,kio->kpiqo', sel, w[:, kx])
        mats.append(m)
    m2 = jnp.stack(mats, axis=3)                     # (3, W, cin, 2, Wo, cout)
    return m2.reshape(3 * W * cin, 2 * Wo * cout)


def _banded_conv1_weights(w, W):
    """(3,3,Cin,Cout) HWIO -> (3*W*Cin, W*Cout); ky along K, kx/W-pad folded."""
    _, _, cin, cout = w.shape
    wi = jnp.arange(W)[:, None]
    wo = jnp.arange(W)[None, :]
    m = jnp.zeros((3, W, cin, W, cout), w.dtype)
    for kx in range(3):
        sel = (wi == wo + kx - 1).astype(w.dtype)
        m = m + jnp.einsum('pq,kio->kpiqo', sel, w[:, kx])
    return m.reshape(3 * W * cin, W * cout)


def _block_shift_mat(num_images, H, offset, dtype):
    """(S @ x)[i] = x[i + offset] within the same image, zero at image edges."""
    M = num_images * H
    i = jnp.arange(M)[:, None]
    j = jnp.arange(M)[None, :]
    same = (i // H) == (j // H)
    return ((j == i + offset) & same).astype(dtype)


def _pool_select_mat(num_images, H, parity, dtype):
    """(S @ x)[b*Ho + r] = x[b*H + 2r + parity]  (H half of the 2x2 max-pool)."""
    Ho = H // 2
    i = jnp.arange(num_images * Ho)[:, None]
    j = jnp.arange(num_images * H)[None, :]
    src = (i // Ho) * H + 2 * (i % Ho) + parity
    return (j == src).astype(dtype)


# -----------------------------------------------------------------------------
# Whole encoder = one pallas_call.
# -----------------------------------------------------------------------------
def encoder_forward(x_nhwc, params, *, images_per_step=None,
                    compute_dtype=jnp.float32):
    """x_nhwc: (N, H, W, Cin) -> (N, H/2^L, W/2^L, Cout_last)."""
    N, H, W, C = x_nhwc.shape
    assert H % 2 == 0 and W % 2 == 0
    if images_per_step is None:
        # Fatten the MXU M dimension by stacking images per grid step; keep
        # >= 2 grid steps when the batch allows it (v7x has 2 TensorCores).
        images_per_step = N if (N <= 2 or N % 2 != 0) else N // 2
    assert N % images_per_step == 0
    B = images_per_step
    steps = N // B
    cd = compute_dtype

    x_packed = x_nhwc.reshape(N, H, W * C).astype(cd)   # lane dim = W*Cin

    operands, in_specs = [], []
    flops = 0
    Hc, Wc = H, W
    for p in params:
        cin, cout = p["w0"].shape[2], p["w0"].shape[3]
        Ho, Wo = Hc // 2, Wc // 2
        lin, lmid = Wc * cin, Wo * cout
        # Lane-dense design constraint (see TODO at top of file).
        assert lin % 128 == 0 and lmid % 128 == 0, (lin, lmid)

        w0b = _banded_conv0_weights(p["w0"], Wc).astype(cd)   # (3*lin, 2*lmid)
        w1b = _banded_conv1_weights(p["w1"], Wo).astype(cd)   # (3*lmid, lmid)
        sd0 = _block_shift_mat(B, Hc, -1, cd)
        su0 = _block_shift_mat(B, Hc, +1, cd)
        sel_e = _pool_select_mat(B, Hc, 0, cd)
        sel_o = _pool_select_mat(B, Hc, 1, cd)
        sd1 = _block_shift_mat(B, Ho, -1, cd)
        su1 = _block_shift_mat(B, Ho, +1, cd)
        # Fold conv bias into the BN shift (bias commutes with the max-pool).
        a0 = jnp.tile(p["s0"], Wo)[None, :].astype(jnp.float32)
        c0 = jnp.tile(p["t0"] + p["s0"] * p["b0"], Wo)[None, :].astype(jnp.float32)
        a1 = jnp.tile(p["s1"], Wo)[None, :].astype(jnp.float32)
        c1 = jnp.tile(p["t1"] + p["s1"] * p["b1"], Wo)[None, :].astype(jnp.float32)

        blk_ops = [w0b, sd0, su0, sel_e, sel_o, a0, c0, w1b, sd1, su1, a1, c1]
        operands += blk_ops
        in_specs += [pl.BlockSpec(op.shape, lambda n: (0, 0)) for op in blk_ops]

        # FLOPs actually executed (banded formulation), per grid step * steps.
        M = B * Hc
        flops += steps * 2 * (2 * M * M * lin                 # conv0 H shifts
                              + M * (3 * lin) * (2 * lmid)    # conv0 (K-stacked)
                              + 2 * (M // 2) * M * lmid       # H-pool selection
                              + 2 * (M // 2) * (M // 2) * lmid  # conv1 H shifts
                              + (M // 2) * (3 * lmid) * lmid)   # conv1
        Hc, Wc = Ho, Wo

    cout_last = params[-1]["w1"].shape[-1]
    l_last = Wc * cout_last
    out_shape = jax.ShapeDtypeStruct((N, Hc, l_last), x_nhwc.dtype)

    bytes_accessed = (x_packed.size * x_packed.dtype.itemsize
                      + N * Hc * l_last * x_nhwc.dtype.itemsize
                      + sum(int(op.size) * int(op.dtype.itemsize)
                            for op in operands))

    out = pl.pallas_call(
        _make_encoder_kernel(len(params)),
        out_shape=out_shape,
        grid_spec=pltpu.PrefetchScalarGridSpec(
            num_scalar_prefetch=0,
            grid=(steps,),
            in_specs=[pl.BlockSpec((B, H, W * C), lambda n: (n, 0, 0))]
                     + in_specs,
            out_specs=pl.BlockSpec((B, Hc, l_last), lambda n: (n, 0, 0)),
        ),
        compiler_params=pltpu.CompilerParams(
            dimension_semantics=("parallel",),
            vmem_limit_bytes=32 * 1024 * 1024,
        ),
        cost_estimate=pl.CostEstimate(flops=int(flops), transcendentals=0,
                                      bytes_accessed=int(bytes_accessed)),
    )(x_packed, *operands)

    return out.reshape(N, Hc, Wc, cout_last)


# -----------------------------------------------------------------------------
# Parameter init (conv weights HWIO, inference BN folded to scale/shift).
# -----------------------------------------------------------------------------
def _bn_fold(kg, kb, km, kv, c, eps=1e-5):
    gamma = 1.0 + 0.1 * jax.random.normal(kg, (c,), jnp.float32)
    beta = 0.1 * jax.random.normal(kb, (c,), jnp.float32)
    mean = 0.1 * jax.random.normal(km, (c,), jnp.float32)
    var = jax.random.uniform(kv, (c,), jnp.float32, minval=0.5, maxval=1.5)
    scale = gamma * lax.rsqrt(var + eps)
    shift = beta - mean * scale
    return scale, shift


def init_conv_block(key, cin, cout):
    ks = jax.random.split(key, 12)
    w0 = jax.random.normal(ks[0], (3, 3, cin, cout), jnp.float32) / (3.0 * float(cin) ** 0.5)
    b0 = 0.1 * jax.random.normal(ks[1], (cout,), jnp.float32)
    w1 = jax.random.normal(ks[2], (3, 3, cout, cout), jnp.float32) / (3.0 * float(cout) ** 0.5)
    b1 = 0.1 * jax.random.normal(ks[3], (cout,), jnp.float32)
    s0, t0 = _bn_fold(ks[4], ks[5], ks[6], ks[7], cout)
    s1, t1 = _bn_fold(ks[8], ks[9], ks[10], ks[11], cout)
    return dict(w0=w0, b0=b0, w1=w1, b1=b1, s0=s0, t0=t0, s1=s1, t1=t1)


def init_encoder(key, enc_channels):
    keys = jax.random.split(key, len(enc_channels))
    return [init_conv_block(k, cin, cout)
            for k, (cin, cout) in zip(keys, enc_channels)]


# -----------------------------------------------------------------------------
# Pure-JAX (XLA) reference for validation.
# -----------------------------------------------------------------------------
def _conv_ref(x, w, b):
    y = lax.conv_general_dilated(
        x, w, window_strides=(1, 1), padding=[(1, 1), (1, 1)],
        dimension_numbers=("NHWC", "HWIO", "NHWC"),
        precision=lax.Precision.HIGHEST)
    return y + b.reshape(1, 1, 1, -1)


def _pool_ref(x):
    return lax.reduce_window(x, -jnp.inf, lax.max,
                             (1, 2, 2, 1), (1, 2, 2, 1), "VALID")


def encoder_ref(x, params):
    for p in params:
        y = _conv_ref(x, p["w0"], p["b0"])
        y = _pool_ref(y)
        y = y * p["s0"].reshape(1, 1, 1, -1) + p["t0"].reshape(1, 1, 1, -1)
        y = jnp.maximum(y, 0.0)
        y = _conv_ref(y, p["w1"], p["b1"])
        y = y * p["s1"].reshape(1, 1, 1, -1) + p["t1"].reshape(1, 1, 1, -1)
        x = jnp.maximum(y, 0.0)
    return x


if __name__ == "__main__":
    key = jax.random.PRNGKey(0)
    enc_channels = [(4, 8), (8, 16)]          # args.enc_channels
    N, H, W = 2, 32, 32                       # W*Cin = 128 -> lane-dense packing

    k_x, k_p = jax.random.split(key)
    # PyTorch-convention input is NCHW; convert once to NHWC at the boundary.
    x_nchw = jax.random.normal(k_x, (N, enc_channels[0][0], H, W), jnp.float32)
    x_nhwc = jnp.transpose(x_nchw, (0, 2, 3, 1))

    params = init_encoder(k_p, enc_channels)

    fwd = jax.jit(encoder_forward)
    out = jax.block_until_ready(fwd(x_nhwc, params))

    assert out.shape == (N, H // 4, W // 4, enc_channels[-1][1]), out.shape

    ref = encoder_ref(x_nhwc, params)
    max_err = float(jnp.max(jnp.abs(out - ref)))
    assert jnp.allclose(out, ref, atol=1e-3, rtol=1e-3), max_err

    print("KERNEL_OK")
</pallas_src>

<mosaic_0001>
module attributes {stable_mosaic.version = 11 : i64} {
  func.func @kernel(%arg0: i32, %arg1: memref<2x32x128xf32, #tpu.memory_space<vmem>>, %arg2: memref<384x256xf32, #tpu.memory_space<vmem>>, %arg3: memref<64x64xf32, #tpu.memory_space<vmem>>, %arg4: memref<64x64xf32, #tpu.memory_space<vmem>>, %arg5: memref<32x64xf32, #tpu.memory_space<vmem>>, %arg6: memref<32x64xf32, #tpu.memory_space<vmem>>, %arg7: memref<1x128xf32, #tpu.memory_space<vmem>>, %arg8: memref<1x128xf32, #tpu.memory_space<vmem>>, %arg9: memref<384x128xf32, #tpu.memory_space<vmem>>, %arg10: memref<32x32xf32, #tpu.memory_space<vmem>>, %arg11: memref<32x32xf32, #tpu.memory_space<vmem>>, %arg12: memref<1x128xf32, #tpu.memory_space<vmem>>, %arg13: memref<1x128xf32, #tpu.memory_space<vmem>>, %arg14: memref<384x256xf32, #tpu.memory_space<vmem>>, %arg15: memref<32x32xf32, #tpu.memory_space<vmem>>, %arg16: memref<32x32xf32, #tpu.memory_space<vmem>>, %arg17: memref<16x32xf32, #tpu.memory_space<vmem>>, %arg18: memref<16x32xf32, #tpu.memory_space<vmem>>, %arg19: memref<1x128xf32, #tpu.memory_space<vmem>>, %arg20: memref<1x128xf32, #tpu.memory_space<vmem>>, %arg21: memref<384x128xf32, #tpu.memory_space<vmem>>, %arg22: memref<16x16xf32, #tpu.memory_space<vmem>>, %arg23: memref<16x16xf32, #tpu.memory_space<vmem>>, %arg24: memref<1x128xf32, #tpu.memory_space<vmem>>, %arg25: memref<1x128xf32, #tpu.memory_space<vmem>>, %arg26: memref<2x8x128xf32, #tpu.memory_space<vmem>>) attributes {dimension_semantics = [#tpu.dimension_semantics<parallel>], iteration_bounds = array<i64: 1>, scalar_prefetch = 0 : i64, scratch_operands = 0 : i64, tpu.core_type = #tpu.core_type<tc>, window_params = [{transform_indices = @transform_0, window_bounds = array<i64: 2, 32, 128>}, {pipeline_mode = #tpu.pipeline_mode<synchronous>, transform_indices = @transform_1, window_bounds = array<i64: 384, 256>}, {pipeline_mode = #tpu.pipeline_mode<synchronous>, transform_indices = @transform_2, window_bounds = array<i64: 64, 64>}, {pipeline_mode = #tpu.pipeline_mode<synchronous>, transform_indices = @transform_3, window_bounds = array<i64: 64, 64>}, {pipeline_mode = #tpu.pipeline_mode<synchronous>, transform_indices = @transform_4, window_bounds = array<i64: 32, 64>}, {pipeline_mode = #tpu.pipeline_mode<synchronous>, transform_indices = @transform_5, window_bounds = array<i64: 32, 64>}, {pipeline_mode = #tpu.pipeline_mode<synchronous>, transform_indices = @transform_6, window_bounds = array<i64: 1, 128>}, {pipeline_mode = #tpu.pipeline_mode<synchronous>, transform_indices = @transform_7, window_bounds = array<i64: 1, 128>}, {pipeline_mode = #tpu.pipeline_mode<synchronous>, transform_indices = @transform_8, window_bounds = array<i64: 384, 128>}, {pipeline_mode = #tpu.pipeline_mode<synchronous>, transform_indices = @transform_9, window_bounds = array<i64: 32, 32>}, {pipeline_mode = #tpu.pipeline_mode<synchronous>, transform_indices = @transform_10, window_bounds = array<i64: 32, 32>}, {pipeline_mode = #tpu.pipeline_mode<synchronous>, transform_indices = @transform_11, window_bounds = array<i64: 1, 128>}, {pipeline_mode = #tpu.pipeline_mode<synchronous>, transform_indices = @transform_12, window_bounds = array<i64: 1, 128>}, {pipeline_mode = #tpu.pipeline_mode<synchronous>, transform_indices = @transform_13, window_bounds = array<i64: 384, 256>}, {pipeline_mode = #tpu.pipeline_mode<synchronous>, transform_indices = @transform_14, window_bounds = array<i64: 32, 32>}, {pipeline_mode = #tpu.pipeline_mode<synchronous>, transform_indices = @transform_15, window_bounds = array<i64: 32, 32>}, {pipeline_mode = #tpu.pipeline_mode<synchronous>, transform_indices = @transform_16, window_bounds = array<i64: 16, 32>}, {pipeline_mode = #tpu.pipeline_mode<synchronous>, transform_indices = @transform_17, window_bounds = array<i64: 16, 32>}, {pipeline_mode = #tpu.pipeline_mode<synchronous>, transform_indices = @transform_18, window_bounds = array<i64: 1, 128>}, {pipeline_mode = #tpu.pipeline_mode<synchronous>, transform_indices = @transform_19, window_bounds = array<i64: 1, 128>}, {pipeline_mode = #tpu.pipeline_mode<synchronous>, transform_indices = @transform_20, window_bounds = array<i64: 384, 128>}, {pipeline_mode = #tpu.pipeline_mode<synchronous>, transform_indices = @transform_21, window_bounds = array<i64: 16, 16>}, {pipeline_mode = #tpu.pipeline_mode<synchronous>, transform_indices = @transform_22, window_bounds = array<i64: 16, 16>}, {pipeline_mode = #tpu.pipeline_mode<synchronous>, transform_indices = @transform_23, window_bounds = array<i64: 1, 128>}, {pipeline_mode = #tpu.pipeline_mode<synchronous>, transform_indices = @transform_24, window_bounds = array<i64: 1, 128>}, {transform_indices = @transform_25, window_bounds = array<i64: 2, 8, 128>}]} {
    %c0 = arith.constant 0 : index
    %c0_0 = arith.constant 0 : index
    %c0_1 = arith.constant 0 : index
    %0 = vector.load %arg1[%c0, %c0_0, %c0_1] : memref<2x32x128xf32, #tpu.memory_space<vmem>>, vector<2x32x128xf32>
    %1 = vector.shape_cast %0 : vector<2x32x128xf32> to vector<64x128xf32>
    %c0_2 = arith.constant 0 : index
    %c0_3 = arith.constant 0 : index
    %2 = vector.load %arg3[%c0_2, %c0_3] : memref<64x64xf32, #tpu.memory_space<vmem>>, vector<64x64xf32>
    %cst = arith.constant dense<0.000000e+00> : vector<64x128xf32>
    %3 = tpu.matmul %2, %1, %cst {dimension_numbers = #tpu.dot_dimension_numbers<[1], [0], [0], [1], [0, 0, 1, 1], [], []>} : vector<64x64xf32>, vector<64x128xf32>, vector<64x128xf32> -> vector<64x128xf32>
    %c0_4 = arith.constant 0 : index
    %c0_5 = arith.constant 0 : index
    %4 = vector.load %arg4[%c0_4, %c0_5] : memref<64x64xf32, #tpu.memory_space<vmem>>, vector<64x64xf32>
    %cst_6 = arith.constant dense<0.000000e+00> : vector<64x128xf32>
    %5 = tpu.matmul %4, %1, %cst_6 {dimension_numbers = #tpu.dot_dimension_numbers<[1], [0], [0], [1], [0, 0, 1, 1], [], []>} : vector<64x64xf32>, vector<64x128xf32>, vector<64x128xf32> -> vector<64x128xf32>
    %6 = tpu.concatenate %3, %1, %5 in 1 : vector<64x128xf32>, vector<64x128xf32>, vector<64x128xf32> -> vector<64x384xf32>
    %c0_7 = arith.constant 0 : index
    %c0_8 = arith.constant 0 : index
    %7 = vector.load %arg2[%c0_7, %c0_8] : memref<384x256xf32, #tpu.memory_space<vmem>>, vector<384x256xf32>
    %cst_9 = arith.constant dense<0.000000e+00> : vector<64x256xf32>
    %8 = tpu.matmul %6, %7, %cst_9 {dimension_numbers = #tpu.dot_dimension_numbers<[1], [0], [0], [1], [0, 0, 1, 1], [], []>} : vector<64x384xf32>, vector<384x256xf32>, vector<64x256xf32> -> vector<64x256xf32>
    %9 = vector.extract_strided_slice %8 {offsets = [0, 0], sizes = [64, 128], strides = [1, 1]} : vector<64x256xf32> to vector<64x128xf32>
    %10 = vector.extract_strided_slice %8 {offsets = [0, 128], sizes = [64, 128], strides = [1, 1]} : vector<64x256xf32> to vector<64x128xf32>
    %11 = arith.maximumf %9, %10 : vector<64x128xf32>
    %c0_10 = arith.constant 0 : index
    %c0_11 = arith.constant 0 : index
    %12 = vector.load %arg5[%c0_10, %c0_11] : memref<32x64xf32, #tpu.memory_space<vmem>>, vector<32x64xf32>
    %cst_12 = arith.constant dense<0.000000e+00> : vector<32x128xf32>
    %13 = tpu.matmul %12, %11, %cst_12 {dimension_numbers = #tpu.dot_dimension_numbers<[1], [0], [0], [1], [0, 0, 1, 1], [], []>} : vector<32x64xf32>, vector<64x128xf32>, vector<32x128xf32> -> vector<32x128xf32>
    %c0_13 = arith.constant 0 : index
    %c0_14 = arith.constant 0 : index
    %14 = vector.load %arg6[%c0_13, %c0_14] : memref<32x64xf32, #tpu.memory_space<vmem>>, vector<32x64xf32>
    %cst_15 = arith.constant dense<0.000000e+00> : vector<32x128xf32>
    %15 = tpu.matmul %14, %11, %cst_15 {dimension_numbers = #tpu.dot_dimension_numbers<[1], [0], [0], [1], [0, 0, 1, 1], [], []>} : vector<32x64xf32>, vector<64x128xf32>, vector<32x128xf32> -> vector<32x128xf32>
    %16 = arith.maximumf %13, %15 : vector<32x128xf32>
    %c0_16 = arith.constant 0 : index
    %c0_17 = arith.constant 0 : index
    %17 = vector.load %arg7[%c0_16, %c0_17] : memref<1x128xf32, #tpu.memory_space<vmem>>, vector<1x128xf32>
    %18 = vector.broadcast %17 : vector<1x128xf32> to vector<32x128xf32>
    %19 = arith.mulf %16, %18 : vector<32x128xf32>
    %c0_18 = arith.constant 0 : index
    %c0_19 = arith.constant 0 : index
    %20 = vector.load %arg8[%c0_18, %c0_19] : memref<1x128xf32, #tpu.memory_space<vmem>>, vector<1x128xf32>
    %21 = vector.broadcast %20 : vector<1x128xf32> to vector<32x128xf32>
    %22 = arith.addf %19, %21 : vector<32x128xf32>
    %cst_20 = arith.constant 0.000000e+00 : f32
    %23 = vector.broadcast %cst_20 : f32 to vector<32x128xf32>
    %24 = arith.maximumf %22, %23 : vector<32x128xf32>
    %c0_21 = arith.constant 0 : index
    %c0_22 = arith.constant 0 : index
    %25 = vector.load %arg10[%c0_21, %c0_22] : memref<32x32xf32, #tpu.memory_space<vmem>>, vector<32x32xf32>
    %cst_23 = arith.constant dense<0.000000e+00> : vector<32x128xf32>
    %26 = tpu.matmul %25, %24, %cst_23 {dimension_numbers = #tpu.dot_dimension_numbers<[1], [0], [0], [1], [0, 0, 1, 1], [], []>} : vector<32x32xf32>, vector<32x128xf32>, vector<32x128xf32> -> vector<32x128xf32>
    %c0_24 = arith.constant 0 : index
    %c0_25 = arith.constant 0 : index
    %27 = vector.load %arg11[%c0_24, %c0_25] : memref<32x32xf32, #tpu.memory_space<vmem>>, vector<32x32xf32>
    %cst_26 = arith.constant dense<0.000000e+00> : vector<32x128xf32>
    %28 = tpu.matmul %27, %24, %cst_26 {dimension_numbers = #tpu.dot_dimension_numbers<[1], [0], [0], [1], [0, 0, 1, 1], [], []>} : vector<32x32xf32>, vector<32x128xf32>, vector<32x128xf32> -> vector<32x128xf32>
    %29 = tpu.concatenate %26, %24, %28 in 1 : vector<32x128xf32>, vector<32x128xf32>, vector<32x128xf32> -> vector<32x384xf32>
    %c0_27 = arith.constant 0 : index
    %c0_28 = arith.constant 0 : index
    %30 = vector.load %arg9[%c0_27, %c0_28] : memref<384x128xf32, #tpu.memory_space<vmem>>, vector<384x128xf32>
    %cst_29 = arith.constant dense<0.000000e+00> : vector<32x128xf32>
    %31 = tpu.matmul %29, %30, %cst_29 {dimension_numbers = #tpu.dot_dimension_numbers<[1], [0], [0], [1], [0, 0, 1, 1], [], []>} : vector<32x384xf32>, vector<384x128xf32>, vector<32x128xf32> -> vector<32x128xf32>
    %c0_30 = arith.constant 0 : index
    %c0_31 = arith.constant 0 : index
    %32 = vector.load %arg12[%c0_30, %c0_31] : memref<1x128xf32, #tpu.memory_space<vmem>>, vector<1x128xf32>
    %33 = vector.broadcast %32 : vector<1x128xf32> to vector<32x128xf32>
    %34 = arith.mulf %31, %33 : vector<32x128xf32>
    %c0_32 = arith.constant 0 : index
    %c0_33 = arith.constant 0 : index
    %35 = vector.load %arg13[%c0_32, %c0_33] : memref<1x128xf32, #tpu.memory_space<vmem>>, vector<1x128xf32>
    %36 = vector.broadcast %35 : vector<1x128xf32> to vector<32x128xf32>
    %37 = arith.addf %34, %36 : vector<32x128xf32>
    %cst_34 = arith.constant 0.000000e+00 : f32
    %38 = vector.broadcast %cst_34 : f32 to vector<32x128xf32>
    %39 = arith.maximumf %37, %38 : vector<32x128xf32>
    %c0_35 = arith.constant 0 : index
    %c0_36 = arith.constant 0 : index
    %40 = vector.load %arg15[%c0_35, %c0_36] : memref<32x32xf32, #tpu.memory_space<vmem>>, vector<32x32xf32>
    %cst_37 = arith.constant dense<0.000000e+00> : vector<32x128xf32>
    %41 = tpu.matmul %40, %39, %cst_37 {dimension_numbers = #tpu.dot_dimension_numbers<[1], [0], [0], [1], [0, 0, 1, 1], [], []>} : vector<32x32xf32>, vector<32x128xf32>, vector<32x128xf32> -> vector<32x128xf32>
    %c0_38 = arith.constant 0 : index
    %c0_39 = arith.constant 0 : index
    %42 = vector.load %arg16[%c0_38, %c0_39] : memref<32x32xf32, #tpu.memory_space<vmem>>, vector<32x32xf32>
    %cst_40 = arith.constant dense<0.000000e+00> : vector<32x128xf32>
    %43 = tpu.matmul %42, %39, %cst_40 {dimension_numbers = #tpu.dot_dimension_numbers<[1], [0], [0], [1], [0, 0, 1, 1], [], []>} : vector<32x32xf32>, vector<32x128xf32>, vector<32x128xf32> -> vector<32x128xf32>
    %44 = tpu.concatenate %41, %39, %43 in 1 : vector<32x128xf32>, vector<32x128xf32>, vector<32x128xf32> -> vector<32x384xf32>
    %c0_41 = arith.constant 0 : index
    %c0_42 = arith.constant 0 : index
    %45 = vector.load %arg14[%c0_41, %c0_42] : memref<384x256xf32, #tpu.memory_space<vmem>>, vector<384x256xf32>
    %cst_43 = arith.constant dense<0.000000e+00> : vector<32x256xf32>
    %46 = tpu.matmul %44, %45, %cst_43 {dimension_numbers = #tpu.dot_dimension_numbers<[1], [0], [0], [1], [0, 0, 1, 1], [], []>} : vector<32x384xf32>, vector<384x256xf32>, vector<32x256xf32> -> vector<32x256xf32>
    %47 = vector.extract_strided_slice %46 {offsets = [0, 0], sizes = [32, 128], strides = [1, 1]} : vector<32x256xf32> to vector<32x128xf32>
    %48 = vector.extract_strided_slice %46 {offsets = [0, 128], sizes = [32, 128], strides = [1, 1]} : vector<32x256xf32> to vector<32x128xf32>
    %49 = arith.maximumf %47, %48 : vector<32x128xf32>
    %c0_44 = arith.constant 0 : index
    %c0_45 = arith.constant 0 : index
    %50 = vector.load %arg17[%c0_44, %c0_45] : memref<16x32xf32, #tpu.memory_space<vmem>>, vector<16x32xf32>
    %cst_46 = arith.constant dense<0.000000e+00> : vector<16x128xf32>
    %51 = tpu.matmul %50, %49, %cst_46 {dimension_numbers = #tpu.dot_dimension_numbers<[1], [0], [0], [1], [0, 0, 1, 1], [], []>} : vector<16x32xf32>, vector<32x128xf32>, vector<16x128xf32> -> vector<16x128xf32>
    %c0_47 = arith.constant 0 : index
    %c0_48 = arith.constant 0 : index
    %52 = vector.load %arg18[%c0_47, %c0_48] : memref<16x32xf32, #tpu.memory_space<vmem>>, vector<16x32xf32>
    %cst_49 = arith.constant dense<0.000000e+00> : vector<16x128xf32>
    %53 = tpu.matmul %52, %49, %cst_49 {dimension_numbers = #tpu.dot_dimension_numbers<[1], [0], [0], [1], [0, 0, 1, 1], [], []>} : vector<16x32xf32>, vector<32x128xf32>, vector<16x128xf32> -> vector<16x128xf32>
    %54 = arith.maximumf %51, %53 : vector<16x128xf32>
    %c0_50 = arith.constant 0 : index
    %c0_51 = arith.constant 0 : index
    %55 = vector.load %arg19[%c0_50, %c0_51] : memref<1x128xf32, #tpu.memory_space<vmem>>, vector<1x128xf32>
    %56 = vector.broadcast %55 : vector<1x128xf32> to vector<16x128xf32>
    %57 = arith.mulf %54, %56 : vector<16x128xf32>
    %c0_52 = arith.constant 0 : index
    %c0_53 = arith.constant 0 : index
    %58 = vector.load %arg20[%c0_52, %c0_53] : memref<1x128xf32, #tpu.memory_space<vmem>>, vector<1x128xf32>
    %59 = vector.broadcast %58 : vector<1x128xf32> to vector<16x128xf32>
    %60 = arith.addf %57, %59 : vector<16x128xf32>
    %cst_54 = arith.constant 0.000000e+00 : f32
    %61 = vector.broadcast %cst_54 : f32 to vector<16x128xf32>
    %62 = arith.maximumf %60, %61 : vector<16x128xf32>
    %c0_55 = arith.constant 0 : index
    %c0_56 = arith.constant 0 : index
    %63 = vector.load %arg22[%c0_55, %c0_56] : memref<16x16xf32, #tpu.memory_space<vmem>>, vector<16x16xf32>
    %cst_57 = arith.constant dense<0.000000e+00> : vector<16x128xf32>
    %64 = tpu.matmul %63, %62, %cst_57 {dimension_numbers = #tpu.dot_dimension_numbers<[1], [0], [0], [1], [0, 0, 1, 1], [], []>} : vector<16x16xf32>, vector<16x128xf32>, vector<16x128xf32> -> vector<16x128xf32>
    %c0_58 = arith.constant 0 : index
    %c0_59 = arith.constant 0 : index
    %65 = vector.load %arg23[%c0_58, %c0_59] : memref<16x16xf32, #tpu.memory_space<vmem>>, vector<16x16xf32>
    %cst_60 = arith.constant dense<0.000000e+00> : vector<16x128xf32>
    %66 = tpu.matmul %65, %62, %cst_60 {dimension_numbers = #tpu.dot_dimension_numbers<[1], [0], [0], [1], [0, 0, 1, 1], [], []>} : vector<16x16xf32>, vector<16x128xf32>, vector<16x128xf32> -> vector<16x128xf32>
    %67 = tpu.concatenate %64, %62, %66 in 1 : vector<16x128xf32>, vector<16x128xf32>, vector<16x128xf32> -> vector<16x384xf32>
    %c0_61 = arith.constant 0 : index
    %c0_62 = arith.constant 0 : index
    %68 = vector.load %arg21[%c0_61, %c0_62] : memref<384x128xf32, #tpu.memory_space<vmem>>, vector<384x128xf32>
    %cst_63 = arith.constant dense<0.000000e+00> : vector<16x128xf32>
    %69 = tpu.matmul %67, %68, %cst_63 {dimension_numbers = #tpu.dot_dimension_numbers<[1], [0], [0], [1], [0, 0, 1, 1], [], []>} : vector<16x384xf32>, vector<384x128xf32>, vector<16x128xf32> -> vector<16x128xf32>
    %c0_64 = arith.constant 0 : index
    %c0_65 = arith.constant 0 : index
    %70 = vector.load %arg24[%c0_64, %c0_65] : memref<1x128xf32, #tpu.memory_space<vmem>>, vector<1x128xf32>
    %71 = vector.broadcast %70 : vector<1x128xf32> to vector<16x128xf32>
    %72 = arith.mulf %69, %71 : vector<16x128xf32>
    %c0_66 = arith.constant 0 : index
    %c0_67 = arith.constant 0 : index
    %73 = vector.load %arg25[%c0_66, %c0_67] : memref<1x128xf32, #tpu.memory_space<vmem>>, vector<1x128xf32>
    %74 = vector.broadcast %73 : vector<1x128xf32> to vector<16x128xf32>
    %75 = arith.addf %72, %74 : vector<16x128xf32>
    %cst_68 = arith.constant 0.000000e+00 : f32
    %76 = vector.broadcast %cst_68 : f32 to vector<16x128xf32>
    %77 = arith.maximumf %75, %76 : vector<16x128xf32>
    %78 = vector.shape_cast %77 : vector<16x128xf32> to vector<2x8x128xf32>
    %c0_69 = arith.constant 0 : index
    %c0_70 = arith.constant 0 : index
    %c0_71 = arith.constant 0 : index
    %79 = vector.load %arg26[%c0_69, %c0_70, %c0_71] : memref<2x8x128xf32, #tpu.memory_space<vmem>>, vector<2x8x128xf32>
    tpu.vector_store %arg26[%c0_69, %c0_70, %c0_71], %78 {strides = array<i32>} : memref<2x8x128xf32, #tpu.memory_space<vmem>>, vector<2x8x128xf32>,
    return
  }
  func.func @transform_0(%arg0: i32) -> (i32, i32, i32) {
    %c0_i32 = arith.constant 0 : i32
    %c0_i32_0 = arith.constant 0 : i32
    %c0_i32_1 = arith.constant 0 : i32
    return %arg0, %c0_i32, %c0_i32_0 : i32, i32, i32
  }
  func.func @transform_1(%arg0: i32) -> (i32, i32) {
    %c0_i32 = arith.constant 0 : i32
    %c0_i32_0 = arith.constant 0 : i32
    %c0_i32_1 = arith.constant 0 : i32
    return %c0_i32, %c0_i32_0 : i32, i32
  }
  func.func @transform_2(%arg0: i32) -> (i32, i32) {
    %c0_i32 = arith.constant 0 : i32
    %c0_i32_0 = arith.constant 0 : i32
    %c0_i32_1 = arith.constant 0 : i32
    return %c0_i32, %c0_i32_0 : i32, i32
  }
  func.func @transform_3(%arg0: i32) -> (i32, i32) {
    %c0_i32 = arith.constant 0 : i32
    %c0_i32_0 = arith.constant 0 : i32
    %c0_i32_1 = arith.constant 0 : i32
    return %c0_i32, %c0_i32_0 : i32, i32
  }
  func.func @transform_4(%arg0: i32) -> (i32, i32) {
    %c0_i32 = arith.constant 0 : i32
    %c0_i32_0 = arith.constant 0 : i32
    %c0_i32_1 = arith.constant 0 : i32
    return %c0_i32, %c0_i32_0 : i32, i32
  }
  func.func @transform_5(%arg0: i32) -> (i32, i32) {
    %c0_i32 = arith.constant 0 : i32
    %c0_i32_0 = arith.constant 0 : i32
    %c0_i32_1 = arith.constant 0 : i32
    return %c0_i32, %c0_i32_0 : i32, i32
  }
  func.func @transform_6(%arg0: i32) -> (i32, i32) {
    %c0_i32 = arith.constant 0 : i32
    %c0_i32_0 = arith.constant 0 : i32
    %c0_i32_1 = arith.constant 0 : i32
    return %c0_i32, %c0_i32_0 : i32, i32
  }
  func.func @transform_7(%arg0: i32) -> (i32, i32) {
    %c0_i32 = arith.constant 0 : i32
    %c0_i32_0 = arith.constant 0 : i32
    %c0_i32_1 = arith.constant 0 : i32
    return %c0_i32, %c0_i32_0 : i32, i32
  }
  func.func @transform_8(%arg0: i32) -> (i32, i32) {
    %c0_i32 = arith.constant 0 : i32
    %c0_i32_0 = arith.constant 0 : i32
    %c0_i32_1 = arith.constant 0 : i32
    return %c0_i32, %c0_i32_0 : i32, i32
  }
  func.func @transform_9(%arg0: i32) -> (i32, i32) {
    %c0_i32 = arith.constant 0 : i32
    %c0_i32_0 = arith.constant 0 : i32
    %c0_i32_1 = arith.constant 0 : i32
    return %c0_i32, %c0_i32_0 : i32, i32
  }
  func.func @transform_10(%arg0: i32) -> (i32, i32) {
    %c0_i32 = arith.constant 0 : i32
    %c0_i32_0 = arith.constant 0 : i32
    %c0_i32_1 = arith.constant 0 : i32
    return %c0_i32, %c0_i32_0 : i32, i32
  }
  func.func @transform_11(%arg0: i32) -> (i32, i32) {
    %c0_i32 = arith.constant 0 : i32
    %c0_i32_0 = arith.constant 0 : i32
    %c0_i32_1 = arith.constant 0 : i32
    return %c0_i32, %c0_i32_0 : i32, i32
  }
  func.func @transform_12(%arg0: i32) -> (i32, i32) {
    %c0_i32 = arith.constant 0 : i32
    %c0_i32_0 = arith.constant 0 : i32
    %c0_i32_1 = arith.constant 0 : i32
    return %c0_i32, %c0_i32_0 : i32, i32
  }
  func.func @transform_13(%arg0: i32) -> (i32, i32) {
    %c0_i32 = arith.constant 0 : i32
    %c0_i32_0 = arith.constant 0 : i32
    %c0_i32_1 = arith.constant 0 : i32
    return %c0_i32, %c0_i32_0 : i32, i32
  }
  func.func @transform_14(%arg0: i32) -> (i32, i32) {
    %c0_i32 = arith.constant 0 : i32
    %c0_i32_0 = arith.constant 0 : i32
    %c0_i32_1 = arith.constant 0 : i32
    return %c0_i32, %c0_i32_0 : i32, i32
  }
  func.func @transform_15(%arg0: i32) -> (i32, i32) {
    %c0_i32 = arith.constant 0 : i32
    %c0_i32_0 = arith.constant 0 : i32
    %c0_i32_1 = arith.constant 0 : i32
    return %c0_i32, %c0_i32_0 : i32, i32
  }
  func.func @transform_16(%arg0: i32) -> (i32, i32) {
    %c0_i32 = arith.constant 0 : i32
    %c0_i32_0 = arith.constant 0 : i32
    %c0_i32_1 = arith.constant 0 : i32
    return %c0_i32, %c0_i32_0 : i32, i32
  }
  func.func @transform_17(%arg0: i32) -> (i32, i32) {
    %c0_i32 = arith.constant 0 : i32
    %c0_i32_0 = arith.constant 0 : i32
    %c0_i32_1 = arith.constant 0 : i32
    return %c0_i32, %c0_i32_0 : i32, i32
  }
  func.func @transform_18(%arg0: i32) -> (i32, i32) {
    %c0_i32 = arith.constant 0 : i32
    %c0_i32_0 = arith.constant 0 : i32
    %c0_i32_1 = arith.constant 0 : i32
    return %c0_i32, %c0_i32_0 : i32, i32
  }
  func.func @transform_19(%arg0: i32) -> (i32, i32) {
    %c0_i32 = arith.constant 0 : i32
    %c0_i32_0 = arith.constant 0 : i32
    %c0_i32_1 = arith.constant 0 : i32
    return %c0_i32, %c0_i32_0 : i32, i32
  }
  func.func @transform_20(%arg0: i32) -> (i32, i32) {
    %c0_i32 = arith.constant 0 : i32
    %c0_i32_0 = arith.constant 0 : i32
    %c0_i32_1 = arith.constant 0 : i32
    return %c0_i32, %c0_i32_0 : i32, i32
  }
  func.func @transform_21(%arg0: i32) -> (i32, i32) {
    %c0_i32 = arith.constant 0 : i32
    %c0_i32_0 = arith.constant 0 : i32
    %c0_i32_1 = arith.constant 0 : i32
    return %c0_i32, %c0_i32_0 : i32, i32
  }
  func.func @transform_22(%arg0: i32) -> (i32, i32) {
    %c0_i32 = arith.constant 0 : i32
    %c0_i32_0 = arith.constant 0 : i32
    %c0_i32_1 = arith.constant 0 : i32
    return %c0_i32, %c0_i32_0 : i32, i32
  }
  func.func @transform_23(%arg0: i32) -> (i32, i32) {
    %c0_i32 = arith.constant 0 : i32
    %c0_i32_0 = arith.constant 0 : i32
    %c0_i32_1 = arith.constant 0 : i32
    return %c0_i32, %c0_i32_0 : i32, i32
  }
  func.func @transform_24(%arg0: i32) -> (i32, i32) {
    %c0_i32 = arith.constant 0 : i32
    %c0_i32_0 = arith.constant 0 : i32
    %c0_i32_1 = arith.constant 0 : i32
    return %c0_i32, %c0_i32_0 : i32, i32
  }
  func.func @transform_25(%arg0: i32) -> (i32, i32, i32) {
    %c0_i32 = arith.constant 0 : i32
    %c0_i32_0 = arith.constant 0 : i32
    %c0_i32_1 = arith.constant 0 : i32
    return %arg0, %c0_i32, %c0_i32_0 : i32, i32, i32
  }
}

</mosaic_0001>

<llo_original>
// kernel: tile.48
$region0: #{tile.48}
  #allocation0 [shape = 's32[1]{0}', space=sflag, size = 0x4, scoped, tag = 'scoped memory for tile.48']
  %s0 = inlined_call_operand.vmem [shape: f32[8], index: 0, kind: input, shape index: {}]
  %s1 = inlined_call_operand.vmem [shape: f32[16,8], index: 1, kind: output, shape index: {}]
  // Predicated region
  $region2: #{tile.48} parent=0 // pred_check
    _
  $region3: #{tile.48} parent=0 // pred_check_branch
    %3 = sbr.rel (0) target = $region5
  $region4: #{tile.48} parent=0 // pred_region
    _
  $region5: #{tile.48} parent=0 // pred_fallthru
    _
  %v4 = vld [vmem:[%s0] ss:$0 sm:$0xff]
  %5 = vst [vmem:[%s1] sm:$0xff] %v4
  %s6 = scalar_lea.vmem %s1, 8
  %7 = vst [vmem:[%s6] sm:$0xff] %v4

// kernel: tile.49
$region0: #{tile.49}
  %s0 = inlined_call_operand.vmem [shape: f32[16,8], index: 0, kind: input, shape index: {}]
  %s1 = inlined_call_operand.vmem [shape: f32[1,128], index: 1, kind: output, shape index: {}]
  $region1: #{tile.49} parent=0
    #allocation0 [shape = 'u8[4096]{0}', space=vmem, size = 0x1000, scoped, tag = 'scoped mem for output reshape']
    %v2 = vld [vmem:[%s0] sm:$0x1]
    %vm3 = vcmask 64512
    %4 = vst.msk [vmem:[#allocation0] sm:$0x1] %vm3, %v2
    %s5 = scalar_lea.vmem %s0, 15
    %v6 = vld [vmem:[%s5] sm:$0x1]
    %7 = vrot.lane.b32.xlu0 %v6, 120
    %v8 = vpop.permute.xlu0 %7
    %vm9 = vcmask 1048512
    %10 = vst.msk [vmem:[#allocation0] sm:$0x1] %vm9, %v8
    %s11 = scalar_lea.vmem %s0, 14
    %v12 = vld [vmem:[%s11] sm:$0x1]
    %13 = vrot.lane.b32.xlu0 %v12, 112
    %v14 = vpop.permute.xlu0 %13
    %vm15 = vcmask 982912
    %16 = vst.msk [vmem:[#allocation0] sm:$0x1] %vm15, %v14
    %s17 = scalar_lea.vmem %s0, 13
    %v18 = vld [vmem:[%s17] sm:$0x1]
    %19 = vrot.lane.b32.xlu0 %v18, 104
    %v20 = vpop.permute.xlu0 %19
    %vm21 = vcmask 917312
    %22 = vst.msk [vmem:[#allocation0] sm:$0x1] %vm21, %v20
    %s23 = scalar_lea.vmem %s0, 12
    %v24 = vld [vmem:[%s23] sm:$0x1]
    %25 = vrot.lane.b32.xlu0 %v24, 96
    %v26 = vpop.permute.xlu0 %25
    %vm27 = vcmask 851712
    %28 = vst.msk [vmem:[#allocation0] sm:$0x1] %vm27, %v26
    %s29 = scalar_lea.vmem %s0, 11
    %v30 = vld [vmem:[%s29] sm:$0x1]
    %31 = vrot.lane.b32.xlu0 %v30, 88
    %v32 = vpop.permute.xlu0 %31
    %vm33 = vcmask 786112
    %34 = vst.msk [vmem:[#allocation0] sm:$0x1] %vm33, %v32
    %s35 = scalar_lea.vmem %s0, 10
    %v36 = vld [vmem:[%s35] sm:$0x1]
    %37 = vrot.lane.b32.xlu0 %v36, 80
    %v38 = vpop.permute.xlu0 %37
    %vm39 = vcmask 720512
    %40 = vst.msk [vmem:[#allocation0] sm:$0x1] %vm39, %v38
    %s41 = scalar_lea.vmem %s0, 9
    %v42 = vld [vmem:[%s41] sm:$0x1]
    %43 = vrot.lane.b32.xlu0 %v42, 72
    %v44 = vpop.permute.xlu0 %43
    %vm45 = vcmask 654912
    %46 = vst.msk [vmem:[#allocation0] sm:$0x1] %vm45, %v44
    %s47 = scalar_lea.vmem %s0, 8
    %v48 = vld [vmem:[%s47] sm:$0x1]
    %49 = vrot.lane.b32.xlu0 %v48, 64
    %v50 = vpop.permute.xlu0 %49
    %vm51 = vcmask 589312
    %52 = vst.msk [vmem:[#allocation0] sm:$0x1] %vm51, %v50
    %s53 = scalar_lea.vmem %s0, 7
    %v54 = vld [vmem:[%s53] sm:$0x1]
    %55 = vrot.lane.b32.xlu0 %v54, 56
    %v56 = vpop.permute.xlu0 %55
    %vm57 = vcmask 523712
    %58 = vst.msk [vmem:[#allocation0] sm:$0x1] %vm57, %v56
    %s59 = scalar_lea.vmem %s0, 6
    %v60 = vld [vmem:[%s59] sm:$0x1]
    %61 = vrot.lane.b32.xlu0 %v60, 48
    %v62 = vpop.permute.xlu0 %61
    %vm63 = vcmask 458112
    %64 = vst.msk [vmem:[#allocation0] sm:$0x1] %vm63, %v62
    %s65 = scalar_lea.vmem %s0, 5
    %v66 = vld [vmem:[%s65] sm:$0x1]
    %67 = vrot.lane.b32.xlu0 %v66, 40
    %v68 = vpop.permute.xlu0 %67
    %vm69 = vcmask 392512
    %70 = vst.msk [vmem:[#allocation0] sm:$0x1] %vm69, %v68
    %s71 = scalar_lea.vmem %s0, 4
    %v72 = vld [vmem:[%s71] sm:$0x1]
    %73 = vrot.lane.b32.xlu0 %v72, 32
    %v74 = vpop.permute.xlu0 %73
    %vm75 = vcmask 326912
    %76 = vst.msk [vmem:[#allocation0] sm:$0x1] %vm75, %v74
    %s77 = scalar_lea.vmem %s0, 3
    %v78 = vld [vmem:[%s77] sm:$0x1]
    %79 = vrot.lane.b32.xlu0 %v78, 24
    %v80 = vpop.permute.xlu0 %79
    %vm81 = vcmask 261312
    %82 = vst.msk [vmem:[#allocation0] sm:$0x1] %vm81, %v80
    %s83 = scalar_lea.vmem %s0, 2
    %v84 = vld [vmem:[%s83] sm:$0x1]
    %85 = vrot.lane.b32.xlu0 %v84, 16
    %v86 = vpop.permute.xlu0 %85
    %vm87 = vcmask 195712
    %88 = vst.msk [vmem:[#allocation0] sm:$0x1] %vm87, %v86
    %s89 = scalar_lea.vmem %s0, 1
    %v90 = vld [vmem:[%s89] sm:$0x1]
    %91 = vrot.lane.b32.xlu0 %v90, 8
    %v92 = vpop.permute.xlu0 %91
    %vm93 = vcmask 130112
    %94 = vst.msk [vmem:[#allocation0] sm:$0x1] %vm93, %v92
    %s96 = sshll.u32 1, 1
    %s97 = ssub.s32 %s96, 1
    %v99 = vld [vmem:[#allocation0] sm:%s97]
    %s100 = sshll.u32 1, 1
    %s101 = ssub.s32 %s100, 1
    %102 = vst [vmem:[%s1] sm:%s101] %v99

// kernel: tile.68
$region0: #{tile.68}
  #allocation0 [shape = 's32[1]{0}', space=sflag, size = 0x4, scoped, tag = 'scoped memory for tile.68']
  %s0 = inlined_call_operand.vmem [shape: f32[16], index: 0, kind: input, shape index: {}]
  %s1 = inlined_call_operand.vmem [shape: f32[8,16], index: 1, kind: output, shape index: {}]
  // Predicated region
  $region2: #{tile.68} parent=0 // pred_check
    _
  $region3: #{tile.68} parent=0 // pred_check_branch
    %3 = sbr.rel (0) target = $region5
  $region4: #{tile.68} parent=0 // pred_region
    _
  $region5: #{tile.68} parent=0 // pred_fallthru
    _
  %v4 = vld [vmem:[%s0] ss:$0 sm:$0xff]
  %5 = vst [vmem:[%s1] sm:$0xff] %v4

// kernel: tile.69
$region0: #{tile.69}
  %s0 = inlined_call_operand.vmem [shape: f32[8,16], index: 0, kind: input, shape index: {}]
  %s1 = inlined_call_operand.vmem [shape: f32[1,128], index: 1, kind: output, shape index: {}]
  $region1: #{tile.69} parent=0
    #allocation0 [shape = 'u8[4096]{0}', space=vmem, size = 0x1000, scoped, tag = 'scoped mem for output reshape']
    %v2 = vld [vmem:[%s0] sm:$0x1]
    %vm3 = vcmask 130048
    %4 = vst.msk [vmem:[#allocation0] sm:$0x1] %vm3, %v2
    %s5 = scalar_lea.vmem %s0, 7
    %v6 = vld [vmem:[%s5] sm:$0x1]
    %7 = vrot.lane.b32.xlu0 %v6, 112
    %v8 = vpop.permute.xlu0 %7
    %vm9 = vcmask 1048448
    %10 = vst.msk [vmem:[#allocation0] sm:$0x1] %vm9, %v8
    %s11 = scalar_lea.vmem %s0, 6
    %v12 = vld [vmem:[%s11] sm:$0x1]
    %13 = vrot.lane.b32.xlu0 %v12, 96
    %v14 = vpop.permute.xlu0 %13
    %vm15 = vcmask 917248
    %16 = vst.msk [vmem:[#allocation0] sm:$0x1] %vm15, %v14
    %s17 = scalar_lea.vmem %s0, 5
    %v18 = vld [vmem:[%s17] sm:$0x1]
    %19 = vrot.lane.b32.xlu0 %v18, 80
    %v20 = vpop.permute.xlu0 %19
    %vm21 = vcmask 786048
    %22 = vst.msk [vmem:[#allocation0] sm:$0x1] %vm21, %v20
    %s23 = scalar_lea.vmem %s0, 4
    %v24 = vld [vmem:[%s23] sm:$0x1]
    %25 = vrot.lane.b32.xlu0 %v24, 64
    %v26 = vpop.permute.xlu0 %25
    %vm27 = vcmask 654848
    %28 = vst.msk [vmem:[#allocation0] sm:$0x1] %vm27, %v26
    %s29 = scalar_lea.vmem %s0, 3
    %v30 = vld [vmem:[%s29] sm:$0x1]
    %31 = vrot.lane.b32.xlu0 %v30, 48
    %v32 = vpop.permute.xlu0 %31
    %vm33 = vcmask 523648
    %34 = vst.msk [vmem:[#allocation0] sm:$0x1] %vm33, %v32
    %s35 = scalar_lea.vmem %s0, 2
    %v36 = vld [vmem:[%s35] sm:$0x1]
    %37 = vrot.lane.b32.xlu0 %v36, 32
    %v38 = vpop.permute.xlu0 %37
    %vm39 = vcmask 392448
    %40 = vst.msk [vmem:[#allocation0] sm:$0x1] %vm39, %v38
    %s41 = scalar_lea.vmem %s0, 1
    %v42 = vld [vmem:[%s41] sm:$0x1]
    %43 = vrot.lane.b32.xlu0 %v42, 16
    %v44 = vpop.permute.xlu0 %43
    %vm45 = vcmask 261248
    %46 = vst.msk [vmem:[#allocation0] sm:$0x1] %vm45, %v44
    %s48 = sshll.u32 1, 1
    %s49 = ssub.s32 %s48, 1
    %v51 = vld [vmem:[#allocation0] sm:%s49]
    %s52 = sshll.u32 1, 1
    %s53 = ssub.s32 %s52, 1
    %54 = vst [vmem:[%s1] sm:%s53] %v51

// kernel: encoder_forward.1
$region0: #{encoder_forward.1}
  #allocation0 [shape = 'u32[]', space=smem, size = 0x4, offset = 0x4, fixed_abs, tag = 'smem constant byte address 0x4 - core index']
  #allocation1 [shape = 'u32[144,128]{1,0:T(1,128)}', space=vmem, size = 0x12000, scoped, tag = 'internal scratch']
  %s0 = inlined_call_operand.vmem [shape: f32[2,32,128], index: 0, kind: input, shape index: {}]
  %s1 = inlined_call_operand.vmem [shape: f32[384,256], index: 1, kind: input, shape index: {}]
  %s2 = inlined_call_operand.vmem [shape: f32[64,64], index: 2, kind: input, shape index: {}]
  %s3 = inlined_call_operand.vmem [shape: f32[64,64], index: 3, kind: input, shape index: {}]
  %s4 = inlined_call_operand.vmem [shape: f32[32,64], index: 4, kind: input, shape index: {}]
  %s5 = inlined_call_operand.vmem [shape: f32[32,64], index: 5, kind: input, shape index: {}]
  %s6 = inlined_call_operand.vmem [shape: f32[1,128], index: 6, kind: input, shape index: {}]
  %s7 = inlined_call_operand.vmem [shape: f32[1,128], index: 7, kind: input, shape index: {}]
  %s8 = inlined_call_operand.vmem [shape: f32[384,128], index: 8, kind: input, shape index: {}]
  %s9 = inlined_call_operand.vmem [shape: f32[32,32], index: 9, kind: input, shape index: {}, may-alias: {9,14}]
  %s10 = inlined_call_operand.vmem [shape: f32[32,32], index: 10, kind: input, shape index: {}, may-alias: {10,15}]
  %s11 = inlined_call_operand.vmem [shape: f32[1,128], index: 11, kind: input, shape index: {}]
  %s12 = inlined_call_operand.vmem [shape: f32[1,128], index: 12, kind: input, shape index: {}]
  %s13 = inlined_call_operand.vmem [shape: f32[384,256], index: 13, kind: input, shape index: {}]
  %s14 = inlined_call_operand.vmem [shape: f32[32,32], index: 14, kind: input, shape index: {}, may-alias: {9,14}]
  %s15 = inlined_call_operand.vmem [shape: f32[32,32], index: 15, kind: input, shape index: {}, may-alias: {10,15}]
  %s16 = inlined_call_operand.vmem [shape: f32[16,32], index: 16, kind: input, shape index: {}]
  %s17 = inlined_call_operand.vmem [shape: f32[16,32], index: 17, kind: input, shape index: {}]
  %s18 = inlined_call_operand.vmem [shape: f32[1,128], index: 18, kind: input, shape index: {}]
  %s19 = inlined_call_operand.vmem [shape: f32[1,128], index: 19, kind: input, shape index: {}]
  %s20 = inlined_call_operand.vmem [shape: f32[384,128], index: 20, kind: input, shape index: {}]
  %s21 = inlined_call_operand.vmem [shape: f32[16,16], index: 21, kind: input, shape index: {}]
  %s22 = inlined_call_operand.vmem [shape: f32[16,16], index: 22, kind: input, shape index: {}]
  %s23 = inlined_call_operand.vmem [shape: f32[1,128], index: 23, kind: input, shape index: {}]
  %s24 = inlined_call_operand.vmem [shape: f32[1,128], index: 24, kind: input, shape index: {}]
  %s25 = inlined_call_operand.vmem [shape: f32[2,8,128], index: 25, kind: output, shape index: {}]
  %s26 = sld [smem:[#allocation0]]
  $region110: #{encoder_forward.1} parent=0
    _
  %s28 = ssub.s32 1, %s26
  %s29 = scalar_select 0, %s28, %s26
  // Predicated region
  $region2: #{encoder_forward.1} parent=0 // pred_check
    _
  $region3: #{encoder_forward.1} parent=0 // pred_check_branch
    %31 = sbr.rel (0) target = $region5
  $region4: #{encoder_forward.1} parent=0 // pred_region
    _
  $region5: #{encoder_forward.1} parent=0 // pred_fallthru
    _
  // Predicated region
  $region6: #{encoder_forward.1} parent=0 // pred_check
    _
  $region7: #{encoder_forward.1} parent=0 // pred_check_branch
    %33 = sbr.rel (0) target = $region9
  $region8: #{encoder_forward.1} parent=0 // pred_region
    _
  $region9: #{encoder_forward.1} parent=0 // pred_fallthru
    _
  // Predicated region
  $region10: #{encoder_forward.1} parent=0 // pred_check
    _
  $region11: #{encoder_forward.1} parent=0 // pred_check_branch
    %35 = sbr.rel (0) target = $region13
  $region12: #{encoder_forward.1} parent=0 // pred_region
    _
  $region13: #{encoder_forward.1} parent=0 // pred_fallthru
    _
  // Predicated region
  $region14: #{encoder_forward.1} parent=0 // pred_check
    _
  $region15: #{encoder_forward.1} parent=0 // pred_check_branch
    %37 = sbr.rel (0) target = $region17
  $region16: #{encoder_forward.1} parent=0 // pred_region
    _
  $region17: #{encoder_forward.1} parent=0 // pred_fallthru
    _
  // Predicated region
  $region18: #{encoder_forward.1} parent=0 // pred_check
    _
  $region19: #{encoder_forward.1} parent=0 // pred_check_branch
    %39 = sbr.rel (0) target = $region21
  $region20: #{encoder_forward.1} parent=0 // pred_region
    _
  $region21: #{encoder_forward.1} parent=0 // pred_fallthru
    _
  // Predicated region
  $region22: #{encoder_forward.1} parent=0 // pred_check
    _
  $region23: #{encoder_forward.1} parent=0 // pred_check_branch
    %41 = sbr.rel (0) target = $region25
  $region24: #{encoder_forward.1} parent=0 // pred_region
    _
  $region25: #{encoder_forward.1} parent=0 // pred_fallthru
    _
  // Predicated region
  $region26: #{encoder_forward.1} parent=0 // pred_check
    _
  $region27: #{encoder_forward.1} parent=0 // pred_check_branch
    %43 = sbr.rel (0) target = $region29
  $region28: #{encoder_forward.1} parent=0 // pred_region
    _
  $region29: #{encoder_forward.1} parent=0 // pred_fallthru
    _
  // Predicated region
  $region30: #{encoder_forward.1} parent=0 // pred_check
    _
  $region31: #{encoder_forward.1} parent=0 // pred_check_branch
    %45 = sbr.rel (0) target = $region33
  $region32: #{encoder_forward.1} parent=0 // pred_region
    _
  $region33: #{encoder_forward.1} parent=0 // pred_fallthru
    _
  // Predicated region
  $region34: #{encoder_forward.1} parent=0 // pred_check
    _
  $region35: #{encoder_forward.1} parent=0 // pred_check_branch
    %47 = sbr.rel (0) target = $region37
  $region36: #{encoder_forward.1} parent=0 // pred_region
    _
  $region37: #{encoder_forward.1} parent=0 // pred_fallthru
    _
  // Predicated region
  $region38: #{encoder_forward.1} parent=0 // pred_check
    _
  $region39: #{encoder_forward.1} parent=0 // pred_check_branch
    %49 = sbr.rel (0) target = $region41
  $region40: #{encoder_forward.1} parent=0 // pred_region
    _
  $region41: #{encoder_forward.1} parent=0 // pred_fallthru
    _
  // Predicated region
  $region42: #{encoder_forward.1} parent=0 // pred_check
    _
  $region43: #{encoder_forward.1} parent=0 // pred_check_branch
    %51 = sbr.rel (0) target = $region45
  $region44: #{encoder_forward.1} parent=0 // pred_region
    _
  $region45: #{encoder_forward.1} parent=0 // pred_fallthru
    _
  // Predicated region
  $region46: #{encoder_forward.1} parent=0 // pred_check
    _
  $region47: #{encoder_forward.1} parent=0 // pred_check_branch
    %53 = sbr.rel (0) target = $region49
  $region48: #{encoder_forward.1} parent=0 // pred_region
    _
  $region49: #{encoder_forward.1} parent=0 // pred_fallthru
    _
  // Predicated region
  $region50: #{encoder_forward.1} parent=0 // pred_check
    _
  $region51: #{encoder_forward.1} parent=0 // pred_check_branch
    %55 = sbr.rel (0) target = $region53
  $region52: #{encoder_forward.1} parent=0 // pred_region
    _
  $region53: #{encoder_forward.1} parent=0 // pred_fallthru
    _
  // Predicated region
  $region54: #{encoder_forward.1} parent=0 // pred_check
    _
  $region55: #{encoder_forward.1} parent=0 // pred_check_branch
    %57 = sbr.rel (0) target = $region57
  $region56: #{encoder_forward.1} parent=0 // pred_region
    _
  $region57: #{encoder_forward.1} parent=0 // pred_fallthru
    _
  // Predicated region
  $region58: #{encoder_forward.1} parent=0 // pred_check
    _
  $region59: #{encoder_forward.1} parent=0 // pred_check_branch
    %59 = sbr.rel (0) target = $region61
  $region60: #{encoder_forward.1} parent=0 // pred_region
    _
  $region61: #{encoder_forward.1} parent=0 // pred_fallthru
    _
  // Predicated region
  $region62: #{encoder_forward.1} parent=0 // pred_check
    _
  $region63: #{encoder_forward.1} parent=0 // pred_check_branch
    %61 = sbr.rel (0) target = $region65
  $region64: #{encoder_forward.1} parent=0 // pred_region
    _
  $region65: #{encoder_forward.1} parent=0 // pred_fallthru
    _
  // Predicated region
  $region66: #{encoder_forward.1} parent=0 // pred_check
    _
  $region67: #{encoder_forward.1} parent=0 // pred_check_branch
    %63 = sbr.rel (0) target = $region69
  $region68: #{encoder_forward.1} parent=0 // pred_region
    _
  $region69: #{encoder_forward.1} parent=0 // pred_fallthru
    _
  // Predicated region
  $region70: #{encoder_forward.1} parent=0 // pred_check
    _
  $region71: #{encoder_forward.1} parent=0 // pred_check_branch
    %65 = sbr.rel (0) target = $region73
  $region72: #{encoder_forward.1} parent=0 // pred_region
    _
  $region73: #{encoder_forward.1} parent=0 // pred_fallthru
    _
  // Predicated region
  $region74: #{encoder_forward.1} parent=0 // pred_check
    _
  $region75: #{encoder_forward.1} parent=0 // pred_check_branch
    %67 = sbr.rel (0) target = $region77
  $region76: #{encoder_forward.1} parent=0 // pred_region
    _
  $region77: #{encoder_forward.1} parent=0 // pred_fallthru
    _
  // Predicated region
  $region78: #{encoder_forward.1} parent=0 // pred_check
    _
  $region79: #{encoder_forward.1} parent=0 // pred_check_branch
    %69 = sbr.rel (0) target = $region81
  $region80: #{encoder_forward.1} parent=0 // pred_region
    _
  $region81: #{encoder_forward.1} parent=0 // pred_fallthru
    _
  // Predicated region
  $region82: #{encoder_forward.1} parent=0 // pred_check
    _
  $region83: #{encoder_forward.1} parent=0 // pred_check_branch
    %71 = sbr.rel (0) target = $region85
  $region84: #{encoder_forward.1} parent=0 // pred_region
    _
  $region85: #{encoder_forward.1} parent=0 // pred_fallthru
    _
  // Predicated region
  $region86: #{encoder_forward.1} parent=0 // pred_check
    _
  $region87: #{encoder_forward.1} parent=0 // pred_check_branch
    %73 = sbr.rel (0) target = $region89
  $region88: #{encoder_forward.1} parent=0 // pred_region
    _
  $region89: #{encoder_forward.1} parent=0 // pred_fallthru
    _
  // Predicated region
  $region90: #{encoder_forward.1} parent=0 // pred_check
    _
  $region91: #{encoder_forward.1} parent=0 // pred_check_branch
    %75 = sbr.rel (0) target = $region93
  $region92: #{encoder_forward.1} parent=0 // pred_region
    _
  $region93: #{encoder_forward.1} parent=0 // pred_fallthru
    _
  // Predicated region
  $region94: #{encoder_forward.1} parent=0 // pred_check
    _
  $region95: #{encoder_forward.1} parent=0 // pred_check_branch
    %77 = sbr.rel (0) target = $region97
  $region96: #{encoder_forward.1} parent=0 // pred_region
    _
  $region97: #{encoder_forward.1} parent=0 // pred_fallthru
    _
  // Predicated region
  $region98: #{encoder_forward.1} parent=0 // pred_check
    _
  $region99: #{encoder_forward.1} parent=0 // pred_check_branch
    %79 = sbr.rel (0) target = $region101
  $region100: #{encoder_forward.1} parent=0 // pred_region
    _
  $region101: #{encoder_forward.1} parent=0 // pred_fallthru
    _
  %v80 = vld [vmem:[%s0] sm:$0xff]
  %v81 = vld [vmem:[%s0 + $0x8] sm:$0xff]
  %v82 = vld [vmem:[%s0 + $0x10] sm:$0xff]
  %v83 = vld [vmem:[%s0 + $0x18] sm:$0xff]
  %v84 = vld [vmem:[%s0 + $0x20] sm:$0xff]
  %v85 = vld [vmem:[%s0 + $0x28] sm:$0xff]
  %v86 = vld [vmem:[%s0 + $0x30] sm:$0xff]
  %v87 = vld [vmem:[%s0 + $0x38] sm:$0xff]
  %v88 = vld [vmem:[%s2] sm:$0xff]
  %v89 = vld [vmem:[%s2 + $0x8] sm:$0xff]
  %v90 = vld [vmem:[%s2 + $0x10] sm:$0xff]
  %v91 = vld [vmem:[%s2 + $0x18] sm:$0xff]
  %v92 = vld [vmem:[%s2 + $0x20] sm:$0xff]
  %v93 = vld [vmem:[%s2 + $0x28] sm:$0xff]
  %v94 = vld [vmem:[%s2 + $0x30] sm:$0xff]
  %v95 = vld [vmem:[%s2 + $0x38] sm:$0xff]
  %vm96 = vcmask 523264
  %v98 = vsel %vm96, %v88, 0
  %v101 = vsel %vm96, %v89, 0
  %v104 = vsel %vm96, %v90, 0
  %v107 = vsel %vm96, %v91, 0
  %v110 = vsel %vm96, %v92, 0
  %v113 = vsel %vm96, %v93, 0
  %v116 = vsel %vm96, %v94, 0
  %v119 = vsel %vm96, %v95, 0
  %121 = vmatprep.subr.mxu0 0.0
  %122 = vmatpush1.msra.mxu0 0.0
  %123 = vmatprep.subr.mxu0 0.0
  %124 = vmatpush1.msra.mxu0 0.0
  %125 = vmatprep.subr.mxu0 0.0
  %126 = vmatpush1.msra.mxu0 0.0
  %127 = vmatprep.subr.mxu0 0.0
  %128 = vmatpush1.msra.mxu0 0.0
  %129 = vmatprep.subr.mxu0 0.0
  %130 = vmatpush1.msra.mxu0 0.0
  %131 = vmatprep.subr.mxu0 0.0
  %132 = vmatpush1.msra.mxu0 0.0
  %133 = vmatprep.subr.mxu0 0.0
  %134 = vmatpush1.msra.mxu0 0.0
  %135 = vmatprep.subr.mxu0 0.0
  %136 = vmatpush1.msra.mxu0 0.0
  %137 = vmatprep.subr.mxu0 0.0
  %138 = vmatpush1.msra.mxu0 %v87
  %139 = vmatprep.subr.mxu0 0.0
  %140 = vmatpush1.msra.mxu0 %v86
  %141 = vmatprep.subr.mxu0 0.0
  %142 = vmatpush1.msra.mxu0 %v85
  %143 = vmatprep.subr.mxu0 0.0
  %144 = vmatpush1.msra.mxu0 %v84
  %145 = vmatprep.subr.mxu0 0.0
  %146 = vmatpush1.msra.mxu0 %v83
  %147 = vmatprep.subr.mxu0 0.0
  %148 = vmatpush1.msra.mxu0 %v82
  %149 = vmatprep.subr.mxu0 0.0
  %150 = vmatpush1.msra.mxu0 %v81
  %151 = vmatprep.subr.mxu0 0.0
  %152 = vmatpush1.msra.mxu0 %v80
  %153 = vmatprep.subr.mxu0 0.0
  %154 = vmatpush2.msra.mxu0 0.0
  %155 = vmatprep.subr.mxu0 0.0
  %156 = vmatpush2.msra.mxu0 0.0
  %157 = vmatprep.subr.mxu0 0.0
  %158 = vmatpush2.msra.mxu0 0.0
  %159 = vmatprep.subr.mxu0 0.0
  %160 = vmatpush2.msra.mxu0 0.0
  %161 = vmatprep.subr.mxu0 0.0
  %162 = vmatpush2.msra.mxu0 0.0
  %163 = vmatprep.subr.mxu0 0.0
  %164 = vmatpush2.msra.mxu0 0.0
  %165 = vmatprep.subr.mxu0 0.0
  %166 = vmatpush2.msra.mxu0 0.0
  %167 = vmatprep.subr.mxu0 0.0
  %168 = vmatpush2.msra.mxu0 0.0
  %169 = vmatprep.subr.mxu0 0.0
  %170 = vmatpush2.msra.mxu0 0.0
  %171 = vmatprep.subr.mxu0 0.0
  %172 = vmatpush2.msra.mxu0 0.0
  %173 = vmatprep.subr.mxu0 0.0
  %174 = vmatpush2.msra.mxu0 0.0
  %175 = vmatprep.subr.mxu0 0.0
  %176 = vmatpush2.msra.mxu0 0.0
  %177 = vmatprep.subr.mxu0 0.0
  %178 = vmatpush2.msra.mxu0 0.0
  %179 = vmatprep.subr.mxu0 0.0
  %180 = vmatpush2.msra.mxu0 0.0
  %181 = vmatprep.subr.mxu0 0.0
  %182 = vmatpush2.msra.mxu0 0.0
  %183 = vmatprep.subr.mxu0 0.0
  %184 = vmatpush2.msra.mxu0 0.0
  %185 = vmatprep.mubr.f32.mxu0 0.0
  %186 = vmatmul.mubr.f32.gmra.mxu0 %v98
  %v187 = vpop.f32.mrf.mxu0
  %v188 = vadd.f32 0.0, %v187
  %v189 = vpop.f32.mrf.mxu0
  %190 = vmatprep.mubr.f32.mxu0 0.0
  %191 = vmatmul.mubr.f32.gmra.mxu0 %v101
  %v192 = vpop.f32.mrf.mxu0
  %v193 = vadd.f32 0.0, %v192
  %v194 = vpop.f32.mrf.mxu0
  %195 = vmatprep.mubr.f32.mxu0 0.0
  %196 = vmatmul.mubr.f32.gmra.mxu0 %v104
  %v197 = vpop.f32.mrf.mxu0
  %v198 = vadd.f32 0.0, %v197
  %v199 = vpop.f32.mrf.mxu0
  %200 = vmatprep.mubr.f32.mxu0 0.0
  %201 = vmatmul.mubr.f32.gmra.mxu0 %v107
  %v202 = vpop.f32.mrf.mxu0
  %v203 = vadd.f32 0.0, %v202
  %v204 = vpop.f32.mrf.mxu0
  %205 = vmatprep.mubr.f32.mxu0 0.0
  %206 = vmatmul.mubr.f32.gmra.mxu0 %v110
  %v207 = vpop.f32.mrf.mxu0
  %v208 = vadd.f32 0.0, %v207
  %v209 = vpop.f32.mrf.mxu0
  %210 = vmatprep.mubr.f32.mxu0 0.0
  %211 = vmatmul.mubr.f32.gmra.mxu0 %v113
  %v212 = vpop.f32.mrf.mxu0
  %v213 = vadd.f32 0.0, %v212
  %v214 = vpop.f32.mrf.mxu0
  %215 = vmatprep.mubr.f32.mxu0 0.0
  %216 = vmatmul.mubr.f32.gmra.mxu0 %v116
  %v217 = vpop.f32.mrf.mxu0
  %v218 = vadd.f32 0.0, %v217
  %v219 = vpop.f32.mrf.mxu0
  %220 = vmatprep.mubr.f32.mxu0 0.0
  %221 = vmatmul.mubr.f32.gmra.mxu0 %v119
  %v222 = vpop.f32.mrf.mxu0
  %v223 = vadd.f32 0.0, %v222
  %v224 = vpop.f32.mrf.mxu0
  %225 = vdwg.mxu0
  %v226 = vld [vmem:[%s3] sm:$0xff]
  %v227 = vld [vmem:[%s3 + $0x8] sm:$0xff]
  %v228 = vld [vmem:[%s3 + $0x10] sm:$0xff]
  %v229 = vld [vmem:[%s3 + $0x18] sm:$0xff]
  %v230 = vld [vmem:[%s3 + $0x20] sm:$0xff]
  %v231 = vld [vmem:[%s3 + $0x28] sm:$0xff]
  %v232 = vld [vmem:[%s3 + $0x30] sm:$0xff]
  %v233 = vld [vmem:[%s3 + $0x38] sm:$0xff]
  %v235 = vsel %vm96, %v226, 0
  %v238 = vsel %vm96, %v227, 0
  %v241 = vsel %vm96, %v228, 0
  %v244 = vsel %vm96, %v229, 0
  %v247 = vsel %vm96, %v230, 0
  %v250 = vsel %vm96, %v231, 0
  %v253 = vsel %vm96, %v232, 0
  %v256 = vsel %vm96, %v233, 0
  %258 = vmatprep.subr.mxu0 0.0
  %259 = vmatpush1.msra.mxu0 0.0
  %260 = vmatprep.subr.mxu0 0.0
  %261 = vmatpush1.msra.mxu0 0.0
  %262 = vmatprep.subr.mxu0 0.0
  %263 = vmatpush1.msra.mxu0 0.0
  %264 = vmatprep.subr.mxu0 0.0
  %265 = vmatpush1.msra.mxu0 0.0
  %266 = vmatprep.subr.mxu0 0.0
  %267 = vmatpush1.msra.mxu0 0.0
  %268 = vmatprep.subr.mxu0 0.0
  %269 = vmatpush1.msra.mxu0 0.0
  %270 = vmatprep.subr.mxu0 0.0
  %271 = vmatpush1.msra.mxu0 0.0
  %272 = vmatprep.subr.mxu0 0.0
  %273 = vmatpush1.msra.mxu0 0.0
  %274 = vmatprep.subr.mxu0 0.0
  %275 = vmatpush1.msra.mxu0 %v87
  %276 = vmatprep.subr.mxu0 0.0
  %277 = vmatpush1.msra.mxu0 %v86
  %278 = vmatprep.subr.mxu0 0.0
  %279 = vmatpush1.msra.mxu0 %v85
  %280 = vmatprep.subr.mxu0 0.0
  %281 = vmatpush1.msra.mxu0 %v84
  %282 = vmatprep.subr.mxu0 0.0
  %283 = vmatpush1.msra.mxu0 %v83
  %284 = vmatprep.subr.mxu0 0.0
  %285 = vmatpush1.msra.mxu0 %v82
  %286 = vmatprep.subr.mxu0 0.0
  %287 = vmatpush1.msra.mxu0 %v81
  %288 = vmatprep.subr.mxu0 0.0
  %289 = vmatpush1.msra.mxu0 %v80
  %290 = vmatprep.subr.mxu0 0.0
  %291 = vmatpush2.msra.mxu0 0.0
  %292 = vmatprep.subr.mxu0 0.0
  %293 = vmatpush2.msra.mxu0 0.0
  %294 = vmatprep.subr.mxu0 0.0
  %295 = vmatpush2.msra.mxu0 0.0
  %296 = vmatprep.subr.mxu0 0.0
  %297 = vmatpush2.msra.mxu0 0.0
  %298 = vmatprep.subr.mxu0 0.0
  %299 = vmatpush2.msra.mxu0 0.0
  %300 = vmatprep.subr.mxu0 0.0
  %301 = vmatpush2.msra.mxu0 0.0
  %302 = vmatprep.subr.mxu0 0.0
  %303 = vmatpush2.msra.mxu0 0.0
  %304 = vmatprep.subr.mxu0 0.0
  %305 = vmatpush2.msra.mxu0 0.0
  %306 = vmatprep.subr.mxu0 0.0
  %307 = vmatpush2.msra.mxu0 0.0
  %308 = vmatprep.subr.mxu0 0.0
  %309 = vmatpush2.msra.mxu0 0.0
  %310 = vmatprep.subr.mxu0 0.0
  %311 = vmatpush2.msra.mxu0 0.0
  %312 = vmatprep.subr.mxu0 0.0
  %313 = vmatpush2.msra.mxu0 0.0
  %314 = vmatprep.subr.mxu0 0.0
  %315 = vmatpush2.msra.mxu0 0.0
  %316 = vmatprep.subr.mxu0 0.0
  %317 = vmatpush2.msra.mxu0 0.0
  %318 = vmatprep.subr.mxu0 0.0
  %319 = vmatpush2.msra.mxu0 0.0
  %320 = vmatprep.subr.mxu0 0.0
  %321 = vmatpush2.msra.mxu0 0.0
  %322 = vmatprep.mubr.f32.mxu0 0.0
  %323 = vmatmul.mubr.f32.gmra.mxu0 %v235
  %v324 = vpop.f32.mrf.mxu0
  %v325 = vadd.f32 0.0, %v324
  %v326 = vpop.f32.mrf.mxu0
  %327 = vmatprep.mubr.f32.mxu0 0.0
  %328 = vmatmul.mubr.f32.gmra.mxu0 %v238
  %v329 = vpop.f32.mrf.mxu0
  %v330 = vadd.f32 0.0, %v329
  %v331 = vpop.f32.mrf.mxu0
  %332 = vmatprep.mubr.f32.mxu0 0.0
  %333 = vmatmul.mubr.f32.gmra.mxu0 %v241
  %v334 = vpop.f32.mrf.mxu0
  %v335 = vadd.f32 0.0, %v334
  %v336 = vpop.f32.mrf.mxu0
  %337 = vmatprep.mubr.f32.mxu0 0.0
  %338 = vmatmul.mubr.f32.gmra.mxu0 %v244
  %v339 = vpop.f32.mrf.mxu0
  %v340 = vadd.f32 0.0, %v339
  %v341 = vpop.f32.mrf.mxu0
  %342 = vmatprep.mubr.f32.mxu0 0.0
  %343 = vmatmul.mubr.f32.gmra.mxu0 %v247
  %v344 = vpop.f32.mrf.mxu0
  %v345 = vadd.f32 0.0, %v344
  %v346 = vpop.f32.mrf.mxu0
  %347 = vmatprep.mubr.f32.mxu0 0.0
  %348 = vmatmul.mubr.f32.gmra.mxu0 %v250
  %v349 = vpop.f32.mrf.mxu0
  %v350 = vadd.f32 0.0, %v349
  %v351 = vpop.f32.mrf.mxu0
  %352 = vmatprep.mubr.f32.mxu0 0.0
  %353 = vmatmul.mubr.f32.gmra.mxu0 %v253
  %v354 = vpop.f32.mrf.mxu0
  %v355 = vadd.f32 0.0, %v354
  %v356 = vpop.f32.mrf.mxu0
  %357 = vmatprep.mubr.f32.mxu0 0.0
  %358 = vmatmul.mubr.f32.gmra.mxu0 %v256
  %v359 = vpop.f32.mrf.mxu0
  %v360 = vadd.f32 0.0, %v359
  %v361 = vpop.f32.mrf.mxu0
  %362 = vdwg.mxu0
  %v363 = vld [vmem:[%s1] sm:$0xff]
  %v364 = vld [vmem:[%s1 + $0x8] sm:$0xff]
  %v365 = vld [vmem:[%s1 + $0x10] sm:$0xff]
  %v366 = vld [vmem:[%s1 + $0x18] sm:$0xff]
  %v367 = vld [vmem:[%s1 + $0x20] sm:$0xff]
  %v368 = vld [vmem:[%s1 + $0x28] sm:$0xff]
  %v369 = vld [vmem:[%s1 + $0x30] sm:$0xff]
  %v370 = vld [vmem:[%s1 + $0x38] sm:$0xff]
  %v371 = vld [vmem:[%s1 + $0x40] sm:$0xff]
  %v372 = vld [vmem:[%s1 + $0x48] sm:$0xff]
  %v373 = vld [vmem:[%s1 + $0x50] sm:$0xff]
  %v374 = vld [vmem:[%s1 + $0x58] sm:$0xff]
  %v375 = vld [vmem:[%s1 + $0x60] sm:$0xff]
  %v376 = vld [vmem:[%s1 + $0x68] sm:$0xff]
  %v377 = vld [vmem:[%s1 + $0x70] sm:$0xff]
  %v378 = vld [vmem:[%s1 + $0x78] sm:$0xff]
  %v379 = vld [vmem:[%s1 + $0x80] sm:$0xff]
  %v380 = vld [vmem:[%s1 + $0x88] sm:$0xff]
  %v381 = vld [vmem:[%s1 + $0x90] sm:$0xff]
  %v382 = vld [vmem:[%s1 + $0x98] sm:$0xff]
  %v383 = vld [vmem:[%s1 + $0xa0] sm:$0xff]
  %v384 = vld [vmem:[%s1 + $0xa8] sm:$0xff]
  %v385 = vld [vmem:[%s1 + $0xb0] sm:$0xff]
  %v386 = vld [vmem:[%s1 + $0xb8] sm:$0xff]
  %v387 = vld [vmem:[%s1 + $0xc0] sm:$0xff]
  %v388 = vld [vmem:[%s1 + $0xc8] sm:$0xff]
  %v389 = vld [vmem:[%s1 + $0xd0] sm:$0xff]
  %v390 = vld [vmem:[%s1 + $0xd8] sm:$0xff]
  %v391 = vld [vmem:[%s1 + $0xe0] sm:$0xff]
  %v392 = vld [vmem:[%s1 + $0xe8] sm:$0xff]
  %v393 = vld [vmem:[%s1 + $0xf0] sm:$0xff]
  %v394 = vld [vmem:[%s1 + $0xf8] sm:$0xff]
  %v395 = vld [vmem:[%s1 + $0x100] sm:$0xff]
  %v396 = vld [vmem:[%s1 + $0x108] sm:$0xff]
  %v397 = vld [vmem:[%s1 + $0x110] sm:$0xff]
  %v398 = vld [vmem:[%s1 + $0x118] sm:$0xff]
  %v399 = vld [vmem:[%s1 + $0x120] sm:$0xff]
  %v400 = vld [vmem:[%s1 + $0x128] sm:$0xff]
  %v401 = vld [vmem:[%s1 + $0x130] sm:$0xff]
  %v402 = vld [vmem:[%s1 + $0x138] sm:$0xff]
  %v403 = vld [vmem:[%s1 + $0x140] sm:$0xff]
  %v404 = vld [vmem:[%s1 + $0x148] sm:$0xff]
  %v405 = vld [vmem:[%s1 + $0x150] sm:$0xff]
  %v406 = vld [vmem:[%s1 + $0x158] sm:$0xff]
  %v407 = vld [vmem:[%s1 + $0x160] sm:$0xff]
  %v408 = vld [vmem:[%s1 + $0x168] sm:$0xff]
  %v409 = vld [vmem:[%s1 + $0x170] sm:$0xff]
  %v410 = vld [vmem:[%s1 + $0x178] sm:$0xff]
  %v411 = vld [vmem:[%s1 + $0x180] sm:$0xff]
  %v412 = vld [vmem:[%s1 + $0x188] sm:$0xff]
  %v413 = vld [vmem:[%s1 + $0x190] sm:$0xff]
  %v414 = vld [vmem:[%s1 + $0x198] sm:$0xff]
  %v415 = vld [vmem:[%s1 + $0x1a0] sm:$0xff]
  %v416 = vld [vmem:[%s1 + $0x1a8] sm:$0xff]
  %v417 = vld [vmem:[%s1 + $0x1b0] sm:$0xff]
  %v418 = vld [vmem:[%s1 + $0x1b8] sm:$0xff]
  %v419 = vld [vmem:[%s1 + $0x1c0] sm:$0xff]
  %v420 = vld [vmem:[%s1 + $0x1c8] sm:$0xff]
  %v421 = vld [vmem:[%s1 + $0x1d0] sm:$0xff]
  %v422 = vld [vmem:[%s1 + $0x1d8] sm:$0xff]
  %v423 = vld [vmem:[%s1 + $0x1e0] sm:$0xff]
  %v424 = vld [vmem:[%s1 + $0x1e8] sm:$0xff]
  %v425 = vld [vmem:[%s1 + $0x1f0] sm:$0xff]
  %v426 = vld [vmem:[%s1 + $0x1f8] sm:$0xff]
  %v427 = vld [vmem:[%s1 + $0x200] sm:$0xff]
  %v428 = vld [vmem:[%s1 + $0x208] sm:$0xff]
  %v429 = vld [vmem:[%s1 + $0x210] sm:$0xff]
  %v430 = vld [vmem:[%s1 + $0x218] sm:$0xff]
  %v431 = vld [vmem:[%s1 + $0x220] sm:$0xff]
  %v432 = vld [vmem:[%s1 + $0x228] sm:$0xff]
  %v433 = vld [vmem:[%s1 + $0x230] sm:$0xff]
  %v434 = vld [vmem:[%s1 + $0x238] sm:$0xff]
  %v435 = vld [vmem:[%s1 + $0x240] sm:$0xff]
  %v436 = vld [vmem:[%s1 + $0x248] sm:$0xff]
  %v437 = vld [vmem:[%s1 + $0x250] sm:$0xff]
  %v438 = vld [vmem:[%s1 + $0x258] sm:$0xff]
  %v439 = vld [vmem:[%s1 + $0x260] sm:$0xff]
  %v440 = vld [vmem:[%s1 + $0x268] sm:$0xff]
  %v441 = vld [vmem:[%s1 + $0x270] sm:$0xff]
  %v442 = vld [vmem:[%s1 + $0x278] sm:$0xff]
  %v443 = vld [vmem:[%s1 + $0x280] sm:$0xff]
  %v444 = vld [vmem:[%s1 + $0x288] sm:$0xff]
  %v445 = vld [vmem:[%s1 + $0x290] sm:$0xff]
  %v446 = vld [vmem:[%s1 + $0x298] sm:$0xff]
  %v447 = vld [vmem:[%s1 + $0x2a0] sm:$0xff]
  %v448 = vld [vmem:[%s1 + $0x2a8] sm:$0xff]
  %v449 = vld [vmem:[%s1 + $0x2b0] sm:$0xff]
  %v450 = vld [vmem:[%s1 + $0x2b8] sm:$0xff]
  %v451 = vld [vmem:[%s1 + $0x2c0] sm:$0xff]
  %v452 = vld [vmem:[%s1 + $0x2c8] sm:$0xff]
  %v453 = vld [vmem:[%s1 + $0x2d0] sm:$0xff]
  %v454 = vld [vmem:[%s1 + $0x2d8] sm:$0xff]
  %v455 = vld [vmem:[%s1 + $0x2e0] sm:$0xff]
  %v456 = vld [vmem:[%s1 + $0x2e8] sm:$0xff]
  %v457 = vld [vmem:[%s1 + $0x2f0] sm:$0xff]
  %v458 = vld [vmem:[%s1 + $0x2f8] sm:$0xff]
  %459 = vmatprep.subr.mxu0 %v394
  %460 = vmatpush1.msra.mxu0 %v393
  %461 = vmatprep.subr.mxu0 %v392
  %462 = vmatpush1.msra.mxu0 %v391
  %463 = vmatprep.subr.mxu0 %v390
  %464 = vmatpush1.msra.mxu0 %v389
  %465 = vmatprep.subr.mxu0 %v388
  %466 = vmatpush1.msra.mxu0 %v387
  %467 = vmatprep.subr.mxu0 %v386
  %468 = vmatpush1.msra.mxu0 %v385
  %469 = vmatprep.subr.mxu0 %v384
  %470 = vmatpush1.msra.mxu0 %v383
  %471 = vmatprep.subr.mxu0 %v382
  %472 = vmatpush1.msra.mxu0 %v381
  %473 = vmatprep.subr.mxu0 %v380
  %474 = vmatpush1.msra.mxu0 %v379
  %475 = vmatprep.subr.mxu0 %v378
  %476 = vmatpush1.msra.mxu0 %v377
  %477 = vmatprep.subr.mxu0 %v376
  %478 = vmatpush1.msra.mxu0 %v375
  %479 = vmatprep.subr.mxu0 %v374
  %480 = vmatpush1.msra.mxu0 %v373
  %481 = vmatprep.subr.mxu0 %v372
  %482 = vmatpush1.msra.mxu0 %v371
  %483 = vmatprep.subr.mxu0 %v370
  %484 = vmatpush1.msra.mxu0 %v369
  %485 = vmatprep.subr.mxu0 %v368
  %486 = vmatpush1.msra.mxu0 %v367
  %487 = vmatprep.subr.mxu0 %v366
  %488 = vmatpush1.msra.mxu0 %v365
  %489 = vmatprep.subr.mxu0 %v364
  %490 = vmatpush1.msra.mxu0 %v363
  %491 = vmatprep.subr.mxu0 %v426
  %492 = vmatpush2.msra.mxu0 %v425
  %493 = vmatprep.subr.mxu0 %v424
  %494 = vmatpush2.msra.mxu0 %v423
  %495 = vmatprep.subr.mxu0 %v422
  %496 = vmatpush2.msra.mxu0 %v421
  %497 = vmatprep.subr.mxu0 %v420
  %498 = vmatpush2.msra.mxu0 %v419
  %499 = vmatprep.subr.mxu0 %v418
  %500 = vmatpush2.msra.mxu0 %v417
  %501 = vmatprep.subr.mxu0 %v416
  %502 = vmatpush2.msra.mxu0 %v415
  %503 = vmatprep.subr.mxu0 %v414
  %504 = vmatpush2.msra.mxu0 %v413
  %505 = vmatprep.subr.mxu0 %v412
  %506 = vmatpush2.msra.mxu0 %v411
  %507 = vmatprep.subr.mxu0 %v410
  %508 = vmatpush2.msra.mxu0 %v409
  %509 = vmatprep.subr.mxu0 %v408
  %510 = vmatpush2.msra.mxu0 %v407
  %511 = vmatprep.subr.mxu0 %v406
  %512 = vmatpush2.msra.mxu0 %v405
  %513 = vmatprep.subr.mxu0 %v404
  %514 = vmatpush2.msra.mxu0 %v403
  %515 = vmatprep.subr.mxu0 %v402
  %516 = vmatpush2.msra.mxu0 %v401
  %517 = vmatprep.subr.mxu0 %v400
  %518 = vmatpush2.msra.mxu0 %v399
  %519 = vmatprep.subr.mxu0 %v398
  %520 = vmatpush2.msra.mxu0 %v397
  %521 = vmatprep.subr.mxu0 %v396
  %522 = vmatpush2.msra.mxu0 %v395
  %523 = vmatprep.mubr.f32.mxu0 %v80
  %524 = vmatmul.mubr.f32.gmra.mxu0 %v188
  %v525 = vpop.f32.mrf.mxu0
  %v526 = vadd.f32 0.0, %v525
  %v527 = vpop.f32.mrf.mxu0
  %v528 = vadd.f32 0.0, %v527
  %529 = vmatprep.mubr.f32.mxu0 %v81
  %530 = vmatmul.mubr.f32.gmra.mxu0 %v193
  %v531 = vpop.f32.mrf.mxu0
  %v532 = vadd.f32 0.0, %v531
  %v533 = vpop.f32.mrf.mxu0
  %v534 = vadd.f32 0.0, %v533
  %535 = vmatprep.mubr.f32.mxu0 %v82
  %536 = vmatmul.mubr.f32.gmra.mxu0 %v198
  %v537 = vpop.f32.mrf.mxu0
  %v538 = vadd.f32 0.0, %v537
  %v539 = vpop.f32.mrf.mxu0
  %v540 = vadd.f32 0.0, %v539
  %541 = vmatprep.mubr.f32.mxu0 %v83
  %542 = vmatmul.mubr.f32.gmra.mxu0 %v203
  %v543 = vpop.f32.mrf.mxu0
  %v544 = vadd.f32 0.0, %v543
  %v545 = vpop.f32.mrf.mxu0
  %v546 = vadd.f32 0.0, %v545
  %547 = vmatprep.mubr.f32.mxu0 %v84
  %548 = vmatmul.mubr.f32.gmra.mxu0 %v208
  %v549 = vpop.f32.mrf.mxu0
  %v550 = vadd.f32 0.0, %v549
  %v551 = vpop.f32.mrf.mxu0
  %v552 = vadd.f32 0.0, %v551
  %553 = vmatprep.mubr.f32.mxu0 %v85
  %554 = vmatmul.mubr.f32.gmra.mxu0 %v213
  %v555 = vpop.f32.mrf.mxu0
  %v556 = vadd.f32 0.0, %v555
  %v557 = vpop.f32.mrf.mxu0
  %v558 = vadd.f32 0.0, %v557
  %559 = vmatprep.mubr.f32.mxu0 %v86
  %560 = vmatmul.mubr.f32.gmra.mxu0 %v218
  %v561 = vpop.f32.mrf.mxu0
  %v562 = vadd.f32 0.0, %v561
  %v563 = vpop.f32.mrf.mxu0
  %v564 = vadd.f32 0.0, %v563
  %565 = vmatprep.mubr.f32.mxu0 %v87
  %566 = vmatmul.mubr.f32.gmra.mxu0 %v223
  %v567 = vpop.f32.mrf.mxu0
  %v568 = vadd.f32 0.0, %v567
  %v569 = vpop.f32.mrf.mxu0
  %v570 = vadd.f32 0.0, %v569
  %571 = vdwg.mxu0
  %572 = vmatprep.subr.mxu0 %v458
  %573 = vmatpush1.msra.mxu0 %v457
  %574 = vmatprep.subr.mxu0 %v456
  %575 = vmatpush1.msra.mxu0 %v455
  %576 = vmatprep.subr.mxu0 %v454
  %577 = vmatpush1.msra.mxu0 %v453
  %578 = vmatprep.subr.mxu0 %v452
  %579 = vmatpush1.msra.mxu0 %v451
  %580 = vmatprep.subr.mxu0 %v450
  %581 = vmatpush1.msra.mxu0 %v449
  %582 = vmatprep.subr.mxu0 %v448
  %583 = vmatpush1.msra.mxu0 %v447
  %584 = vmatprep.subr.mxu0 %v446
  %585 = vmatpush1.msra.mxu0 %v445
  %586 = vmatprep.subr.mxu0 %v444
  %587 = vmatpush1.msra.mxu0 %v443
  %588 = vmatprep.subr.mxu0 %v442
  %589 = vmatpush1.msra.mxu0 %v441
  %590 = vmatprep.subr.mxu0 %v440
  %591 = vmatpush1.msra.mxu0 %v439
  %592 = vmatprep.subr.mxu0 %v438
  %593 = vmatpush1.msra.mxu0 %v437
  %594 = vmatprep.subr.mxu0 %v436
  %595 = vmatpush1.msra.mxu0 %v435
  %596 = vmatprep.subr.mxu0 %v434
  %597 = vmatpush1.msra.mxu0 %v433
  %598 = vmatprep.subr.mxu0 %v432
  %599 = vmatpush1.msra.mxu0 %v431
  %600 = vmatprep.subr.mxu0 %v430
  %601 = vmatpush1.msra.mxu0 %v429
  %602 = vmatprep.subr.mxu0 %v428
  %603 = vmatpush1.msra.mxu0 %v427
  %604 = vmatprep.subr.mxu0 0.0
  %605 = vmatpush2.msra.mxu0 0.0
  %606 = vmatprep.subr.mxu0 0.0
  %607 = vmatpush2.msra.mxu0 0.0
  %608 = vmatprep.subr.mxu0 0.0
  %609 = vmatpush2.msra.mxu0 0.0
  %610 = vmatprep.subr.mxu0 0.0
  %611 = vmatpush2.msra.mxu0 0.0
  %612 = vmatprep.subr.mxu0 0.0
  %613 = vmatpush2.msra.mxu0 0.0
  %614 = vmatprep.subr.mxu0 0.0
  %615 = vmatpush2.msra.mxu0 0.0
  %616 = vmatprep.subr.mxu0 0.0
  %617 = vmatpush2.msra.mxu0 0.0
  %618 = vmatprep.subr.mxu0 0.0
  %619 = vmatpush2.msra.mxu0 0.0
  %620 = vmatprep.subr.mxu0 0.0
  %621 = vmatpush2.msra.mxu0 0.0
  %622 = vmatprep.subr.mxu0 0.0
  %623 = vmatpush2.msra.mxu0 0.0
  %624 = vmatprep.subr.mxu0 0.0
  %625 = vmatpush2.msra.mxu0 0.0
  %626 = vmatprep.subr.mxu0 0.0
  %627 = vmatpush2.msra.mxu0 0.0
  %628 = vmatprep.subr.mxu0 0.0
  %629 = vmatpush2.msra.mxu0 0.0
  %630 = vmatprep.subr.mxu0 0.0
  %631 = vmatpush2.msra.mxu0 0.0
  %632 = vmatprep.subr.mxu0 0.0
  %633 = vmatpush2.msra.mxu0 0.0
  %634 = vmatprep.subr.mxu0 0.0
  %635 = vmatpush2.msra.mxu0 0.0
  %636 = vmatprep.mubr.f32.mxu0 0.0
  %637 = vmatmul.mubr.f32.gmra.mxu0 %v325
  %v638 = vpop.f32.mrf.mxu0
  %v639 = vadd.f32 %v526, %v638
  %v640 = vpop.f32.mrf.mxu0
  %v641 = vadd.f32 %v528, %v640
  %642 = vmatprep.mubr.f32.mxu0 0.0
  %643 = vmatmul.mubr.f32.gmra.mxu0 %v330
  %v644 = vpop.f32.mrf.mxu0
  %v645 = vadd.f32 %v532, %v644
  %v646 = vpop.f32.mrf.mxu0
  %v647 = vadd.f32 %v534, %v646
  %648 = vmatprep.mubr.f32.mxu0 0.0
  %649 = vmatmul.mubr.f32.gmra.mxu0 %v335
  %v650 = vpop.f32.mrf.mxu0
  %v651 = vadd.f32 %v538, %v650
  %v652 = vpop.f32.mrf.mxu0
  %v653 = vadd.f32 %v540, %v652
  %654 = vmatprep.mubr.f32.mxu0 0.0
  %655 = vmatmul.mubr.f32.gmra.mxu0 %v340
  %v656 = vpop.f32.mrf.mxu0
  %v657 = vadd.f32 %v544, %v656
  %v658 = vpop.f32.mrf.mxu0
  %v659 = vadd.f32 %v546, %v658
  %660 = vmatprep.mubr.f32.mxu0 0.0
  %661 = vmatmul.mubr.f32.gmra.mxu0 %v345
  %v662 = vpop.f32.mrf.mxu0
  %v663 = vadd.f32 %v550, %v662
  %v664 = vpop.f32.mrf.mxu0
  %v665 = vadd.f32 %v552, %v664
  %666 = vmatprep.mubr.f32.mxu0 0.0
  %667 = vmatmul.mubr.f32.gmra.mxu0 %v350
  %v668 = vpop.f32.mrf.mxu0
  %v669 = vadd.f32 %v556, %v668
  %v670 = vpop.f32.mrf.mxu0
  %v671 = vadd.f32 %v558, %v670
  %672 = vmatprep.mubr.f32.mxu0 0.0
  %673 = vmatmul.mubr.f32.gmra.mxu0 %v355
  %v674 = vpop.f32.mrf.mxu0
  %v675 = vadd.f32 %v562, %v674
  %v676 = vpop.f32.mrf.mxu0
  %v677 = vadd.f32 %v564, %v676
  %678 = vmatprep.mubr.f32.mxu0 0.0
  %679 = vmatmul.mubr.f32.gmra.mxu0 %v360
  %v680 = vpop.f32.mrf.mxu0
  %v681 = vadd.f32 %v568, %v680
  %v682 = vpop.f32.mrf.mxu0
  %v683 = vadd.f32 %v570, %v682
  %684 = vdwg.mxu0
  %v685 = vmax.f32 %v639, %v641
  %v686 = vmax.f32 %v645, %v647
  %v687 = vmax.f32 %v651, %v653
  %v688 = vmax.f32 %v657, %v659
  %v689 = vmax.f32 %v663, %v665
  %v690 = vmax.f32 %v669, %v671
  %v691 = vmax.f32 %v675, %v677
  %v692 = vmax.f32 %v681, %v683
  %v693 = vld [vmem:[%s4] sm:$0xff]
  %v694 = vld [vmem:[%s4 + $0x8] sm:$0xff]
  %v695 = vld [vmem:[%s4 + $0x10] sm:$0xff]
  %v696 = vld [vmem:[%s4 + $0x18] sm:$0xff]
  %v698 = vsel %vm96, %v693, 0
  %v701 = vsel %vm96, %v694, 0
  %v704 = vsel %vm96, %v695, 0
  %v707 = vsel %vm96, %v696, 0
  %709 = vmatprep.subr.mxu0 0.0
  %710 = vmatpush1.msra.mxu0 0.0
  %711 = vmatprep.subr.mxu0 0.0
  %712 = vmatpush1.msra.mxu0 0.0
  %713 = vmatprep.subr.mxu0 0.0
  %714 = vmatpush1.msra.mxu0 0.0
  %715 = vmatprep.subr.mxu0 0.0
  %716 = vmatpush1.msra.mxu0 0.0
  %717 = vmatprep.subr.mxu0 0.0
  %718 = vmatpush1.msra.mxu0 0.0
  %719 = vmatprep.subr.mxu0 0.0
  %720 = vmatpush1.msra.mxu0 0.0
  %721 = vmatprep.subr.mxu0 0.0
  %722 = vmatpush1.msra.mxu0 0.0
  %723 = vmatprep.subr.mxu0 0.0
  %724 = vmatpush1.msra.mxu0 0.0
  %725 = vmatprep.subr.mxu0 0.0
  %726 = vmatpush1.msra.mxu0 %v692
  %727 = vmatprep.subr.mxu0 0.0
  %728 = vmatpush1.msra.mxu0 %v691
  %729 = vmatprep.subr.mxu0 0.0
  %730 = vmatpush1.msra.mxu0 %v690
  %731 = vmatprep.subr.mxu0 0.0
  %732 = vmatpush1.msra.mxu0 %v689
  %733 = vmatprep.subr.mxu0 0.0
  %734 = vmatpush1.msra.mxu0 %v688
  %735 = vmatprep.subr.mxu0 0.0
  %736 = vmatpush1.msra.mxu0 %v687
  %737 = vmatprep.subr.mxu0 0.0
  %738 = vmatpush1.msra.mxu0 %v686
  %739 = vmatprep.subr.mxu0 0.0
  %740 = vmatpush1.msra.mxu0 %v685
  %741 = vmatprep.subr.mxu0 0.0
  %742 = vmatpush2.msra.mxu0 0.0
  %743 = vmatprep.subr.mxu0 0.0
  %744 = vmatpush2.msra.mxu0 0.0
  %745 = vmatprep.subr.mxu0 0.0
  %746 = vmatpush2.msra.mxu0 0.0
  %747 = vmatprep.subr.mxu0 0.0
  %748 = vmatpush2.msra.mxu0 0.0
  %749 = vmatprep.subr.mxu0 0.0
  %750 = vmatpush2.msra.mxu0 0.0
  %751 = vmatprep.subr.mxu0 0.0
  %752 = vmatpush2.msra.mxu0 0.0
  %753 = vmatprep.subr.mxu0 0.0
  %754 = vmatpush2.msra.mxu0 0.0
  %755 = vmatprep.subr.mxu0 0.0
  %756 = vmatpush2.msra.mxu0 0.0
  %757 = vmatprep.subr.mxu0 0.0
  %758 = vmatpush2.msra.mxu0 0.0
  %759 = vmatprep.subr.mxu0 0.0
  %760 = vmatpush2.msra.mxu0 0.0
  %761 = vmatprep.subr.mxu0 0.0
  %762 = vmatpush2.msra.mxu0 0.0
  %763 = vmatprep.subr.mxu0 0.0
  %764 = vmatpush2.msra.mxu0 0.0
  %765 = vmatprep.subr.mxu0 0.0
  %766 = vmatpush2.msra.mxu0 0.0
  %767 = vmatprep.subr.mxu0 0.0
  %768 = vmatpush2.msra.mxu0 0.0
  %769 = vmatprep.subr.mxu0 0.0
  %770 = vmatpush2.msra.mxu0 0.0
  %771 = vmatprep.subr.mxu0 0.0
  %772 = vmatpush2.msra.mxu0 0.0
  %773 = vmatprep.mubr.f32.mxu0 0.0
  %774 = vmatmul.mubr.f32.gmra.mxu0 %v698
  %v775 = vpop.f32.mrf.mxu0
  %v776 = vadd.f32 0.0, %v775
  %v777 = vpop.f32.mrf.mxu0
  %778 = vmatprep.mubr.f32.mxu0 0.0
  %779 = vmatmul.mubr.f32.gmra.mxu0 %v701
  %v780 = vpop.f32.mrf.mxu0
  %v781 = vadd.f32 0.0, %v780
  %v782 = vpop.f32.mrf.mxu0
  %783 = vmatprep.mubr.f32.mxu0 0.0
  %784 = vmatmul.mubr.f32.gmra.mxu0 %v704
  %v785 = vpop.f32.mrf.mxu0
  %v786 = vadd.f32 0.0, %v785
  %v787 = vpop.f32.mrf.mxu0
  %788 = vmatprep.mubr.f32.mxu0 0.0
  %789 = vmatmul.mubr.f32.gmra.mxu0 %v707
  %v790 = vpop.f32.mrf.mxu0
  %v791 = vadd.f32 0.0, %v790
  %v792 = vpop.f32.mrf.mxu0
  %793 = vdwg.mxu0
  %v794 = vld [vmem:[%s5] sm:$0xff]
  %v795 = vld [vmem:[%s5 + $0x8] sm:$0xff]
  %v796 = vld [vmem:[%s5 + $0x10] sm:$0xff]
  %v797 = vld [vmem:[%s5 + $0x18] sm:$0xff]
  %v799 = vsel %vm96, %v794, 0
  %v802 = vsel %vm96, %v795, 0
  %v805 = vsel %vm96, %v796, 0
  %v808 = vsel %vm96, %v797, 0
  %810 = vmatprep.subr.mxu0 0.0
  %811 = vmatpush1.msra.mxu0 0.0
  %812 = vmatprep.subr.mxu0 0.0
  %813 = vmatpush1.msra.mxu0 0.0
  %814 = vmatprep.subr.mxu0 0.0
  %815 = vmatpush1.msra.mxu0 0.0
  %816 = vmatprep.subr.mxu0 0.0
  %817 = vmatpush1.msra.mxu0 0.0
  %818 = vmatprep.subr.mxu0 0.0
  %819 = vmatpush1.msra.mxu0 0.0
  %820 = vmatprep.subr.mxu0 0.0
  %821 = vmatpush1.msra.mxu0 0.0
  %822 = vmatprep.subr.mxu0 0.0
  %823 = vmatpush1.msra.mxu0 0.0
  %824 = vmatprep.subr.mxu0 0.0
  %825 = vmatpush1.msra.mxu0 0.0
  %826 = vmatprep.subr.mxu0 0.0
  %827 = vmatpush1.msra.mxu0 %v692
  %828 = vmatprep.subr.mxu0 0.0
  %829 = vmatpush1.msra.mxu0 %v691
  %830 = vmatprep.subr.mxu0 0.0
  %831 = vmatpush1.msra.mxu0 %v690
  %832 = vmatprep.subr.mxu0 0.0
  %833 = vmatpush1.msra.mxu0 %v689
  %834 = vmatprep.subr.mxu0 0.0
  %835 = vmatpush1.msra.mxu0 %v688
  %836 = vmatprep.subr.mxu0 0.0
  %837 = vmatpush1.msra.mxu0 %v687
  %838 = vmatprep.subr.mxu0 0.0
  %839 = vmatpush1.msra.mxu0 %v686
  %840 = vmatprep.subr.mxu0 0.0
  %841 = vmatpush1.msra.mxu0 %v685
  %842 = vmatprep.subr.mxu0 0.0
  %843 = vmatpush2.msra.mxu0 0.0
  %844 = vmatprep.subr.mxu0 0.0
  %845 = vmatpush2.msra.mxu0 0.0
  %846 = vmatprep.subr.mxu0 0.0
  %847 = vmatpush2.msra.mxu0 0.0
  %848 = vmatprep.subr.mxu0 0.0
  %849 = vmatpush2.msra.mxu0 0.0
  %850 = vmatprep.subr.mxu0 0.0
  %851 = vmatpush2.msra.mxu0 0.0
  %852 = vmatprep.subr.mxu0 0.0
  %853 = vmatpush2.msra.mxu0 0.0
  %854 = vmatprep.subr.mxu0 0.0
  %855 = vmatpush2.msra.mxu0 0.0
  %856 = vmatprep.subr.mxu0 0.0
  %857 = vmatpush2.msra.mxu0 0.0
  %858 = vmatprep.subr.mxu0 0.0
  %859 = vmatpush2.msra.mxu0 0.0
  %860 = vmatprep.subr.mxu0 0.0
  %861 = vmatpush2.msra.mxu0 0.0
  %862 = vmatprep.subr.mxu0 0.0
  %863 = vmatpush2.msra.mxu0 0.0
  %864 = vmatprep.subr.mxu0 0.0
  %865 = vmatpush2.msra.mxu0 0.0
  %866 = vmatprep.subr.mxu0 0.0
  %867 = vmatpush2.msra.mxu0 0.0
  %868 = vmatprep.subr.mxu0 0.0
  %869 = vmatpush2.msra.mxu0 0.0
  %870 = vmatprep.subr.mxu0 0.0
  %871 = vmatpush2.msra.mxu0 0.0
  %872 = vmatprep.subr.mxu0 0.0
  %873 = vmatpush2.msra.mxu0 0.0
  %874 = vmatprep.mubr.f32.mxu0 0.0
  %875 = vmatmul.mubr.f32.gmra.mxu0 %v799
  %v876 = vpop.f32.mrf.mxu0
  %v877 = vadd.f32 0.0, %v876
  %v878 = vpop.f32.mrf.mxu0
  %879 = vmatprep.mubr.f32.mxu0 0.0
  %880 = vmatmul.mubr.f32.gmra.mxu0 %v802
  %v881 = vpop.f32.mrf.mxu0
  %v882 = vadd.f32 0.0, %v881
  %v883 = vpop.f32.mrf.mxu0
  %884 = vmatprep.mubr.f32.mxu0 0.0
  %885 = vmatmul.mubr.f32.gmra.mxu0 %v805
  %v886 = vpop.f32.mrf.mxu0
  %v887 = vadd.f32 0.0, %v886
  %v888 = vpop.f32.mrf.mxu0
  %889 = vmatprep.mubr.f32.mxu0 0.0
  %890 = vmatmul.mubr.f32.gmra.mxu0 %v808
  %v891 = vpop.f32.mrf.mxu0
  %v892 = vadd.f32 0.0, %v891
  %v893 = vpop.f32.mrf.mxu0
  %894 = vdwg.mxu0
  %v895 = vmax.f32 %v776, %v877
  %v896 = vmax.f32 %v781, %v882
  %v897 = vmax.f32 %v786, %v887
  %v898 = vmax.f32 %v791, %v892
  %v899 = vld [vmem:[%s6] sm:$0x1]
  %v901 = vlaneseq
  %v902 = vshrl.u32 %v901, 7
  %v903 = vsub.s32 0, %v902
  %v904 = vrot.slane %v899, %v903
  %v906 = vmul.f32 %v895, %v904
  %v907 = vmul.f32 %v896, %v904
  %v908 = vmul.f32 %v897, %v904
  %v909 = vmul.f32 %v898, %v904
  %v910 = vld [vmem:[%s7] sm:$0x1]
  %v912 = vlaneseq
  %v913 = vshrl.u32 %v912, 7
  %v914 = vsub.s32 0, %v913
  %v915 = vrot.slane %v910, %v914
  %v917 = vadd.f32 %v906, %v915
  %v918 = vadd.f32 %v907, %v915
  %v919 = vadd.f32 %v908, %v915
  %v920 = vadd.f32 %v909, %v915
  %v921 = vmax.f32 %v917, 0.0
  %v922 = vmax.f32 %v918, 0.0
  %v923 = vmax.f32 %v919, 0.0
  %v924 = vmax.f32 %v920, 0.0
  %v925 = vld [vmem:[%s9] sm:$0xff]
  %v926 = vld [vmem:[%s9 + $0x8] sm:$0xff]
  %v927 = vld [vmem:[%s9 + $0x10] sm:$0xff]
  %v928 = vld [vmem:[%s9 + $0x18] sm:$0xff]
  %vm929 = vcmask 261120
  %v931 = vsel %vm929, %v925, 0
  %v934 = vsel %vm929, %v926, 0
  %v937 = vsel %vm929, %v927, 0
  %v940 = vsel %vm929, %v928, 0
  %942 = vmatprep.subr.mxu0 0.0
  %943 = vmatpush1.msra.mxu0 0.0
  %944 = vmatprep.subr.mxu0 0.0
  %945 = vmatpush1.msra.mxu0 0.0
  %946 = vmatprep.subr.mxu0 0.0
  %947 = vmatpush1.msra.mxu0 0.0
  %948 = vmatprep.subr.mxu0 0.0
  %949 = vmatpush1.msra.mxu0 0.0
  %950 = vmatprep.subr.mxu0 0.0
  %951 = vmatpush1.msra.mxu0 0.0
  %952 = vmatprep.subr.mxu0 0.0
  %953 = vmatpush1.msra.mxu0 0.0
  %954 = vmatprep.subr.mxu0 0.0
  %955 = vmatpush1.msra.mxu0 0.0
  %956 = vmatprep.subr.mxu0 0.0
  %957 = vmatpush1.msra.mxu0 0.0
  %958 = vmatprep.subr.mxu0 0.0
  %959 = vmatpush1.msra.mxu0 0.0
  %960 = vmatprep.subr.mxu0 0.0
  %961 = vmatpush1.msra.mxu0 0.0
  %962 = vmatprep.subr.mxu0 0.0
  %963 = vmatpush1.msra.mxu0 0.0
  %964 = vmatprep.subr.mxu0 0.0
  %965 = vmatpush1.msra.mxu0 0.0
  %966 = vmatprep.subr.mxu0 0.0
  %967 = vmatpush1.msra.mxu0 %v924
  %968 = vmatprep.subr.mxu0 0.0
  %969 = vmatpush1.msra.mxu0 %v923
  %970 = vmatprep.subr.mxu0 0.0
  %971 = vmatpush1.msra.mxu0 %v922
  %972 = vmatprep.subr.mxu0 0.0
  %973 = vmatpush1.msra.mxu0 %v921
  %974 = vmatprep.subr.mxu0 0.0
  %975 = vmatpush2.msra.mxu0 0.0
  %976 = vmatprep.subr.mxu0 0.0
  %977 = vmatpush2.msra.mxu0 0.0
  %978 = vmatprep.subr.mxu0 0.0
  %979 = vmatpush2.msra.mxu0 0.0
  %980 = vmatprep.subr.mxu0 0.0
  %981 = vmatpush2.msra.mxu0 0.0
  %982 = vmatprep.subr.mxu0 0.0
  %983 = vmatpush2.msra.mxu0 0.0
  %984 = vmatprep.subr.mxu0 0.0
  %985 = vmatpush2.msra.mxu0 0.0
  %986 = vmatprep.subr.mxu0 0.0
  %987 = vmatpush2.msra.mxu0 0.0
  %988 = vmatprep.subr.mxu0 0.0
  %989 = vmatpush2.msra.mxu0 0.0
  %990 = vmatprep.subr.mxu0 0.0
  %991 = vmatpush2.msra.mxu0 0.0
  %992 = vmatprep.subr.mxu0 0.0
  %993 = vmatpush2.msra.mxu0 0.0
  %994 = vmatprep.subr.mxu0 0.0
  %995 = vmatpush2.msra.mxu0 0.0
  %996 = vmatprep.subr.mxu0 0.0
  %997 = vmatpush2.msra.mxu0 0.0
  %998 = vmatprep.subr.mxu0 0.0
  %999 = vmatpush2.msra.mxu0 0.0
  %1000 = vmatprep.subr.mxu0 0.0
  %1001 = vmatpush2.msra.mxu0 0.0
  %1002 = vmatprep.subr.mxu0 0.0
  %1003 = vmatpush2.msra.mxu0 0.0
  %1004 = vmatprep.subr.mxu0 0.0
  %1005 = vmatpush2.msra.mxu0 0.0
  %1006 = vmatprep.mubr.f32.mxu0 0.0
  %1007 = vmatmul.mubr.f32.gmra.mxu0 %v931
  %v1008 = vpop.f32.mrf.mxu0
  %v1009 = vadd.f32 0.0, %v1008
  %v1010 = vpop.f32.mrf.mxu0
  %1011 = vmatprep.mubr.f32.mxu0 0.0
  %1012 = vmatmul.mubr.f32.gmra.mxu0 %v934
  %v1013 = vpop.f32.mrf.mxu0
  %v1014 = vadd.f32 0.0, %v1013
  %v1015 = vpop.f32.mrf.mxu0
  %1016 = vmatprep.mubr.f32.mxu0 0.0
  %1017 = vmatmul.mubr.f32.gmra.mxu0 %v937
  %v1018 = vpop.f32.mrf.mxu0
  %v1019 = vadd.f32 0.0, %v1018
  %v1020 = vpop.f32.mrf.mxu0
  %1021 = vmatprep.mubr.f32.mxu0 0.0
  %1022 = vmatmul.mubr.f32.gmra.mxu0 %v940
  %v1023 = vpop.f32.mrf.mxu0
  %v1024 = vadd.f32 0.0, %v1023
  %v1025 = vpop.f32.mrf.mxu0
  %1026 = vdwg.mxu0
  %v1027 = vld [vmem:[%s10] sm:$0xff]
  %v1028 = vld [vmem:[%s10 + $0x8] sm:$0xff]
  %v1029 = vld [vmem:[%s10 + $0x10] sm:$0xff]
  %v1030 = vld [vmem:[%s10 + $0x18] sm:$0xff]
  %v1032 = vsel %vm929, %v1027, 0
  %v1035 = vsel %vm929, %v1028, 0
  %v1038 = vsel %vm929, %v1029, 0
  %v1041 = vsel %vm929, %v1030, 0
  %1043 = vmatprep.subr.mxu0 0.0
  %1044 = vmatpush1.msra.mxu0 0.0
  %1045 = vmatprep.subr.mxu0 0.0
  %1046 = vmatpush1.msra.mxu0 0.0
  %1047 = vmatprep.subr.mxu0 0.0
  %1048 = vmatpush1.msra.mxu0 0.0
  %1049 = vmatprep.subr.mxu0 0.0
  %1050 = vmatpush1.msra.mxu0 0.0
  %1051 = vmatprep.subr.mxu0 0.0
  %1052 = vmatpush1.msra.mxu0 0.0
  %1053 = vmatprep.subr.mxu0 0.0
  %1054 = vmatpush1.msra.mxu0 0.0
  %1055 = vmatprep.subr.mxu0 0.0
  %1056 = vmatpush1.msra.mxu0 0.0
  %1057 = vmatprep.subr.mxu0 0.0
  %1058 = vmatpush1.msra.mxu0 0.0
  %1059 = vmatprep.subr.mxu0 0.0
  %1060 = vmatpush1.msra.mxu0 0.0
  %1061 = vmatprep.subr.mxu0 0.0
  %1062 = vmatpush1.msra.mxu0 0.0
  %1063 = vmatprep.subr.mxu0 0.0
  %1064 = vmatpush1.msra.mxu0 0.0
  %1065 = vmatprep.subr.mxu0 0.0
  %1066 = vmatpush1.msra.mxu0 0.0
  %1067 = vmatprep.subr.mxu0 0.0
  %1068 = vmatpush1.msra.mxu0 %v924
  %1069 = vmatprep.subr.mxu0 0.0
  %1070 = vmatpush1.msra.mxu0 %v923
  %1071 = vmatprep.subr.mxu0 0.0
  %1072 = vmatpush1.msra.mxu0 %v922
  %1073 = vmatprep.subr.mxu0 0.0
  %1074 = vmatpush1.msra.mxu0 %v921
  %1075 = vmatprep.subr.mxu0 0.0
  %1076 = vmatpush2.msra.mxu0 0.0
  %1077 = vmatprep.subr.mxu0 0.0
  %1078 = vmatpush2.msra.mxu0 0.0
  %1079 = vmatprep.subr.mxu0 0.0
  %1080 = vmatpush2.msra.mxu0 0.0
  %1081 = vmatprep.subr.mxu0 0.0
  %1082 = vmatpush2.msra.mxu0 0.0
  %1083 = vmatprep.subr.mxu0 0.0
  %1084 = vmatpush2.msra.mxu0 0.0
  %1085 = vmatprep.subr.mxu0 0.0
  %1086 = vmatpush2.msra.mxu0 0.0
  %1087 = vmatprep.subr.mxu0 0.0
  %1088 = vmatpush2.msra.mxu0 0.0
  %1089 = vmatprep.subr.mxu0 0.0
  %1090 = vmatpush2.msra.mxu0 0.0
  %1091 = vmatprep.subr.mxu0 0.0
  %1092 = vmatpush2.msra.mxu0 0.0
  %1093 = vmatprep.subr.mxu0 0.0
  %1094 = vmatpush2.msra.mxu0 0.0
  %1095 = vmatprep.subr.mxu0 0.0
  %1096 = vmatpush2.msra.mxu0 0.0
  %1097 = vmatprep.subr.mxu0 0.0
  %1098 = vmatpush2.msra.mxu0 0.0
  %1099 = vmatprep.subr.mxu0 0.0
  %1100 = vmatpush2.msra.mxu0 0.0
  %1101 = vmatprep.subr.mxu0 0.0
  %1102 = vmatpush2.msra.mxu0 0.0
  %1103 = vmatprep.subr.mxu0 0.0
  %1104 = vmatpush2.msra.mxu0 0.0
  %1105 = vmatprep.subr.mxu0 0.0
  %1106 = vmatpush2.msra.mxu0 0.0
  %1107 = vmatprep.mubr.f32.mxu0 0.0
  %1108 = vmatmul.mubr.f32.gmra.mxu0 %v1032
  %v1109 = vpop.f32.mrf.mxu0
  %v1110 = vadd.f32 0.0, %v1109
  %v1111 = vpop.f32.mrf.mxu0
  %1112 = vmatprep.mubr.f32.mxu0 0.0
  %1113 = vmatmul.mubr.f32.gmra.mxu0 %v1035
  %v1114 = vpop.f32.mrf.mxu0
  %v1115 = vadd.f32 0.0, %v1114
  %v1116 = vpop.f32.mrf.mxu0
  %1117 = vmatprep.mubr.f32.mxu0 0.0
  %1118 = vmatmul.mubr.f32.gmra.mxu0 %v1038
  %v1119 = vpop.f32.mrf.mxu0
  %v1120 = vadd.f32 0.0, %v1119
  %v1121 = vpop.f32.mrf.mxu0
  %1122 = vmatprep.mubr.f32.mxu0 0.0
  %1123 = vmatmul.mubr.f32.gmra.mxu0 %v1041
  %v1124 = vpop.f32.mrf.mxu0
  %v1125 = vadd.f32 0.0, %v1124
  %v1126 = vpop.f32.mrf.mxu0
  %1127 = vdwg.mxu0
  %v1128 = vld [vmem:[%s8] sm:$0xff]
  %v1129 = vld [vmem:[%s8 + $0x8] sm:$0xff]
  %v1130 = vld [vmem:[%s8 + $0x10] sm:$0xff]
  %v1131 = vld [vmem:[%s8 + $0x18] sm:$0xff]
  %v1132 = vld [vmem:[%s8 + $0x20] sm:$0xff]
  %v1133 = vld [vmem:[%s8 + $0x28] sm:$0xff]
  %v1134 = vld [vmem:[%s8 + $0x30] sm:$0xff]
  %v1135 = vld [vmem:[%s8 + $0x38] sm:$0xff]
  %v1136 = vld [vmem:[%s8 + $0x40] sm:$0xff]
  %v1137 = vld [vmem:[%s8 + $0x48] sm:$0xff]
  %v1138 = vld [vmem:[%s8 + $0x50] sm:$0xff]
  %v1139 = vld [vmem:[%s8 + $0x58] sm:$0xff]
  %v1140 = vld [vmem:[%s8 + $0x60] sm:$0xff]
  %v1141 = vld [vmem:[%s8 + $0x68] sm:$0xff]
  %v1142 = vld [vmem:[%s8 + $0x70] sm:$0xff]
  %v1143 = vld [vmem:[%s8 + $0x78] sm:$0xff]
  %v1144 = vld [vmem:[%s8 + $0x80] sm:$0xff]
  %v1145 = vld [vmem:[%s8 + $0x88] sm:$0xff]
  %v1146 = vld [vmem:[%s8 + $0x90] sm:$0xff]
  %v1147 = vld [vmem:[%s8 + $0x98] sm:$0xff]
  %v1148 = vld [vmem:[%s8 + $0xa0] sm:$0xff]
  %v1149 = vld [vmem:[%s8 + $0xa8] sm:$0xff]
  %v1150 = vld [vmem:[%s8 + $0xb0] sm:$0xff]
  %v1151 = vld [vmem:[%s8 + $0xb8] sm:$0xff]
  %v1152 = vld [vmem:[%s8 + $0xc0] sm:$0xff]
  %v1153 = vld [vmem:[%s8 + $0xc8] sm:$0xff]
  %v1154 = vld [vmem:[%s8 + $0xd0] sm:$0xff]
  %v1155 = vld [vmem:[%s8 + $0xd8] sm:$0xff]
  %v1156 = vld [vmem:[%s8 + $0xe0] sm:$0xff]
  %v1157 = vld [vmem:[%s8 + $0xe8] sm:$0xff]
  %v1158 = vld [vmem:[%s8 + $0xf0] sm:$0xff]
  %v1159 = vld [vmem:[%s8 + $0xf8] sm:$0xff]
  %v1160 = vld [vmem:[%s8 + $0x100] sm:$0xff]
  %v1161 = vld [vmem:[%s8 + $0x108] sm:$0xff]
  %v1162 = vld [vmem:[%s8 + $0x110] sm:$0xff]
  %v1163 = vld [vmem:[%s8 + $0x118] sm:$0xff]
  %v1164 = vld [vmem:[%s8 + $0x120] sm:$0xff]
  %v1165 = vld [vmem:[%s8 + $0x128] sm:$0xff]
  %v1166 = vld [vmem:[%s8 + $0x130] sm:$0xff]
  %v1167 = vld [vmem:[%s8 + $0x138] sm:$0xff]
  %v1168 = vld [vmem:[%s8 + $0x140] sm:$0xff]
  %v1169 = vld [vmem:[%s8 + $0x148] sm:$0xff]
  %v1170 = vld [vmem:[%s8 + $0x150] sm:$0xff]
  %v1171 = vld [vmem:[%s8 + $0x158] sm:$0xff]
  %v1172 = vld [vmem:[%s8 + $0x160] sm:$0xff]
  %v1173 = vld [vmem:[%s8 + $0x168] sm:$0xff]
  %v1174 = vld [vmem:[%s8 + $0x170] sm:$0xff]
  %v1175 = vld [vmem:[%s8 + $0x178] sm:$0xff]
  %1176 = vmatprep.subr.mxu0 0.0
  %1177 = vmatpush1.msra.mxu0 %v1143
  %1178 = vmatprep.subr.mxu0 0.0
  %1179 = vmatpush1.msra.mxu0 %v1142
  %1180 = vmatprep.subr.mxu0 0.0
  %1181 = vmatpush1.msra.mxu0 %v1141
  %1182 = vmatprep.subr.mxu0 0.0
  %1183 = vmatpush1.msra.mxu0 %v1140
  %1184 = vmatprep.subr.mxu0 0.0
  %1185 = vmatpush1.msra.mxu0 %v1139
  %1186 = vmatprep.subr.mxu0 0.0
  %1187 = vmatpush1.msra.mxu0 %v1138
  %1188 = vmatprep.subr.mxu0 0.0
  %1189 = vmatpush1.msra.mxu0 %v1137
  %1190 = vmatprep.subr.mxu0 0.0
  %1191 = vmatpush1.msra.mxu0 %v1136
  %1192 = vmatprep.subr.mxu0 0.0
  %1193 = vmatpush1.msra.mxu0 %v1135
  %1194 = vmatprep.subr.mxu0 0.0
  %1195 = vmatpush1.msra.mxu0 %v1134
  %1196 = vmatprep.subr.mxu0 0.0
  %1197 = vmatpush1.msra.mxu0 %v1133
  %1198 = vmatprep.subr.mxu0 0.0
  %1199 = vmatpush1.msra.mxu0 %v1132
  %1200 = vmatprep.subr.mxu0 0.0
  %1201 = vmatpush1.msra.mxu0 %v1131
  %1202 = vmatprep.subr.mxu0 0.0
  %1203 = vmatpush1.msra.mxu0 %v1130
  %1204 = vmatprep.subr.mxu0 0.0
  %1205 = vmatpush1.msra.mxu0 %v1129
  %1206 = vmatprep.subr.mxu0 0.0
  %1207 = vmatpush1.msra.mxu0 %v1128
  %1208 = vmatprep.subr.mxu0 0.0
  %1209 = vmatpush2.msra.mxu0 %v1159
  %1210 = vmatprep.subr.mxu0 0.0
  %1211 = vmatpush2.msra.mxu0 %v1158
  %1212 = vmatprep.subr.mxu0 0.0
  %1213 = vmatpush2.msra.mxu0 %v1157
  %1214 = vmatprep.subr.mxu0 0.0
  %1215 = vmatpush2.msra.mxu0 %v1156
  %1216 = vmatprep.subr.mxu0 0.0
  %1217 = vmatpush2.msra.mxu0 %v1155
  %1218 = vmatprep.subr.mxu0 0.0
  %1219 = vmatpush2.msra.mxu0 %v1154
  %1220 = vmatprep.subr.mxu0 0.0
  %1221 = vmatpush2.msra.mxu0 %v1153
  %1222 = vmatprep.subr.mxu0 0.0
  %1223 = vmatpush2.msra.mxu0 %v1152
  %1224 = vmatprep.subr.mxu0 0.0
  %1225 = vmatpush2.msra.mxu0 %v1151
  %1226 = vmatprep.subr.mxu0 0.0
  %1227 = vmatpush2.msra.mxu0 %v1150
  %1228 = vmatprep.subr.mxu0 0.0
  %1229 = vmatpush2.msra.mxu0 %v1149
  %1230 = vmatprep.subr.mxu0 0.0
  %1231 = vmatpush2.msra.mxu0 %v1148
  %1232 = vmatprep.subr.mxu0 0.0
  %1233 = vmatpush2.msra.mxu0 %v1147
  %1234 = vmatprep.subr.mxu0 0.0
  %1235 = vmatpush2.msra.mxu0 %v1146
  %1236 = vmatprep.subr.mxu0 0.0
  %1237 = vmatpush2.msra.mxu0 %v1145
  %1238 = vmatprep.subr.mxu0 0.0
  %1239 = vmatpush2.msra.mxu0 %v1144
  %1240 = vmatprep.mubr.f32.mxu0 %v921
  %1241 = vmatmul.mubr.f32.gmra.mxu0 %v1009
  %v1242 = vpop.f32.mrf.mxu0
  %v1243 = vadd.f32 0.0, %v1242
  %v1244 = vpop.f32.mrf.mxu0
  %1245 = vmatprep.mubr.f32.mxu0 %v922
  %1246 = vmatmul.mubr.f32.gmra.mxu0 %v1014
  %v1247 = vpop.f32.mrf.mxu0
  %v1248 = vadd.f32 0.0, %v1247
  %v1249 = vpop.f32.mrf.mxu0
  %1250 = vmatprep.mubr.f32.mxu0 %v923
  %1251 = vmatmul.mubr.f32.gmra.mxu0 %v1019
  %v1252 = vpop.f32.mrf.mxu0
  %v1253 = vadd.f32 0.0, %v1252
  %v1254 = vpop.f32.mrf.mxu0
  %1255 = vmatprep.mubr.f32.mxu0 %v924
  %1256 = vmatmul.mubr.f32.gmra.mxu0 %v1024
  %v1257 = vpop.f32.mrf.mxu0
  %v1258 = vadd.f32 0.0, %v1257
  %v1259 = vpop.f32.mrf.mxu0
  %1260 = vdwg.mxu0
  %1261 = vmatprep.subr.mxu0 0.0
  %1262 = vmatpush1.msra.mxu0 %v1175
  %1263 = vmatprep.subr.mxu0 0.0
  %1264 = vmatpush1.msra.mxu0 %v1174
  %1265 = vmatprep.subr.mxu0 0.0
  %1266 = vmatpush1.msra.mxu0 %v1173
  %1267 = vmatprep.subr.mxu0 0.0
  %1268 = vmatpush1.msra.mxu0 %v1172
  %1269 = vmatprep.subr.mxu0 0.0
  %1270 = vmatpush1.msra.mxu0 %v1171
  %1271 = vmatprep.subr.mxu0 0.0
  %1272 = vmatpush1.msra.mxu0 %v1170
  %1273 = vmatprep.subr.mxu0 0.0
  %1274 = vmatpush1.msra.mxu0 %v1169
  %1275 = vmatprep.subr.mxu0 0.0
  %1276 = vmatpush1.msra.mxu0 %v1168
  %1277 = vmatprep.subr.mxu0 0.0
  %1278 = vmatpush1.msra.mxu0 %v1167
  %1279 = vmatprep.subr.mxu0 0.0
  %1280 = vmatpush1.msra.mxu0 %v1166
  %1281 = vmatprep.subr.mxu0 0.0
  %1282 = vmatpush1.msra.mxu0 %v1165
  %1283 = vmatprep.subr.mxu0 0.0
  %1284 = vmatpush1.msra.mxu0 %v1164
  %1285 = vmatprep.subr.mxu0 0.0
  %1286 = vmatpush1.msra.mxu0 %v1163
  %1287 = vmatprep.subr.mxu0 0.0
  %1288 = vmatpush1.msra.mxu0 %v1162
  %1289 = vmatprep.subr.mxu0 0.0
  %1290 = vmatpush1.msra.mxu0 %v1161
  %1291 = vmatprep.subr.mxu0 0.0
  %1292 = vmatpush1.msra.mxu0 %v1160
  %1293 = vmatprep.subr.mxu0 0.0
  %1294 = vmatpush2.msra.mxu0 0.0
  %1295 = vmatprep.subr.mxu0 0.0
  %1296 = vmatpush2.msra.mxu0 0.0
  %1297 = vmatprep.subr.mxu0 0.0
  %1298 = vmatpush2.msra.mxu0 0.0
  %1299 = vmatprep.subr.mxu0 0.0
  %1300 = vmatpush2.msra.mxu0 0.0
  %1301 = vmatprep.subr.mxu0 0.0
  %1302 = vmatpush2.msra.mxu0 0.0
  %1303 = vmatprep.subr.mxu0 0.0
  %1304 = vmatpush2.msra.mxu0 0.0
  %1305 = vmatprep.subr.mxu0 0.0
  %1306 = vmatpush2.msra.mxu0 0.0
  %1307 = vmatprep.subr.mxu0 0.0
  %1308 = vmatpush2.msra.mxu0 0.0
  %1309 = vmatprep.subr.mxu0 0.0
  %1310 = vmatpush2.msra.mxu0 0.0
  %1311 = vmatprep.subr.mxu0 0.0
  %1312 = vmatpush2.msra.mxu0 0.0
  %1313 = vmatprep.subr.mxu0 0.0
  %1314 = vmatpush2.msra.mxu0 0.0
  %1315 = vmatprep.subr.mxu0 0.0
  %1316 = vmatpush2.msra.mxu0 0.0
  %1317 = vmatprep.subr.mxu0 0.0
  %1318 = vmatpush2.msra.mxu0 0.0
  %1319 = vmatprep.subr.mxu0 0.0
  %1320 = vmatpush2.msra.mxu0 0.0
  %1321 = vmatprep.subr.mxu0 0.0
  %1322 = vmatpush2.msra.mxu0 0.0
  %1323 = vmatprep.subr.mxu0 0.0
  %1324 = vmatpush2.msra.mxu0 0.0
  %1325 = vmatprep.mubr.f32.mxu0 0.0
  %1326 = vmatmul.mubr.f32.gmra.mxu0 %v1110
  %v1327 = vpop.f32.mrf.mxu0
  %v1328 = vadd.f32 %v1243, %v1327
  %v1329 = vpop.f32.mrf.mxu0
  %1330 = vmatprep.mubr.f32.mxu0 0.0
  %1331 = vmatmul.mubr.f32.gmra.mxu0 %v1115
  %v1332 = vpop.f32.mrf.mxu0
  %v1333 = vadd.f32 %v1248, %v1332
  %v1334 = vpop.f32.mrf.mxu0
  %1335 = vmatprep.mubr.f32.mxu0 0.0
  %1336 = vmatmul.mubr.f32.gmra.mxu0 %v1120
  %v1337 = vpop.f32.mrf.mxu0
  %v1338 = vadd.f32 %v1253, %v1337
  %v1339 = vpop.f32.mrf.mxu0
  %1340 = vmatprep.mubr.f32.mxu0 0.0
  %1341 = vmatmul.mubr.f32.gmra.mxu0 %v1125
  %v1342 = vpop.f32.mrf.mxu0
  %v1343 = vadd.f32 %v1258, %v1342
  %v1344 = vpop.f32.mrf.mxu0
  %1345 = vdwg.mxu0
  %v1346 = vld [vmem:[%s11] sm:$0x1]
  %v1348 = vlaneseq
  %v1349 = vshrl.u32 %v1348, 7
  %v1350 = vsub.s32 0, %v1349
  %v1351 = vrot.slane %v1346, %v1350
  %v1353 = vmul.f32 %v1328, %v1351
  %v1354 = vmul.f32 %v1333, %v1351
  %v1355 = vmul.f32 %v1338, %v1351
  %v1356 = vmul.f32 %v1343, %v1351
  %v1357 = vld [vmem:[%s12] sm:$0x1]
  %v1359 = vlaneseq
  %v1360 = vshrl.u32 %v1359, 7
  %v1361 = vsub.s32 0, %v1360
  %v1362 = vrot.slane %v1357, %v1361
  %v1364 = vadd.f32 %v1353, %v1362
  %v1365 = vadd.f32 %v1354, %v1362
  %v1366 = vadd.f32 %v1355, %v1362
  %v1367 = vadd.f32 %v1356, %v1362
  %v1368 = vmax.f32 %v1364, 0.0
  %v1369 = vmax.f32 %v1365, 0.0
  %v1370 = vmax.f32 %v1366, 0.0
  %v1371 = vmax.f32 %v1367, 0.0
  %v1372 = vld [vmem:[%s14] sm:$0xff]
  %v1373 = vld [vmem:[%s14 + $0x8] sm:$0xff]
  %v1374 = vld [vmem:[%s14 + $0x10] sm:$0xff]
  %v1375 = vld [vmem:[%s14 + $0x18] sm:$0xff]
  %v1377 = vsel %vm929, %v1372, 0
  %v1380 = vsel %vm929, %v1373, 0
  %v1383 = vsel %vm929, %v1374, 0
  %v1386 = vsel %vm929, %v1375, 0
  %1388 = vmatprep.subr.mxu0 0.0
  %1389 = vmatpush1.msra.mxu0 0.0
  %1390 = vmatprep.subr.mxu0 0.0
  %1391 = vmatpush1.msra.mxu0 0.0
  %1392 = vmatprep.subr.mxu0 0.0
  %1393 = vmatpush1.msra.mxu0 0.0
  %1394 = vmatprep.subr.mxu0 0.0
  %1395 = vmatpush1.msra.mxu0 0.0
  %1396 = vmatprep.subr.mxu0 0.0
  %1397 = vmatpush1.msra.mxu0 0.0
  %1398 = vmatprep.subr.mxu0 0.0
  %1399 = vmatpush1.msra.mxu0 0.0
  %1400 = vmatprep.subr.mxu0 0.0
  %1401 = vmatpush1.msra.mxu0 0.0
  %1402 = vmatprep.subr.mxu0 0.0
  %1403 = vmatpush1.msra.mxu0 0.0
  %1404 = vmatprep.subr.mxu0 0.0
  %1405 = vmatpush1.msra.mxu0 0.0
  %1406 = vmatprep.subr.mxu0 0.0
  %1407 = vmatpush1.msra.mxu0 0.0
  %1408 = vmatprep.subr.mxu0 0.0
  %1409 = vmatpush1.msra.mxu0 0.0
  %1410 = vmatprep.subr.mxu0 0.0
  %1411 = vmatpush1.msra.mxu0 0.0
  %1412 = vmatprep.subr.mxu0 0.0
  %1413 = vmatpush1.msra.mxu0 %v1371
  %1414 = vmatprep.subr.mxu0 0.0
  %1415 = vmatpush1.msra.mxu0 %v1370
  %1416 = vmatprep.subr.mxu0 0.0
  %1417 = vmatpush1.msra.mxu0 %v1369
  %1418 = vmatprep.subr.mxu0 0.0
  %1419 = vmatpush1.msra.mxu0 %v1368
  %1420 = vmatprep.subr.mxu0 0.0
  %1421 = vmatpush2.msra.mxu0 0.0
  %1422 = vmatprep.subr.mxu0 0.0
  %1423 = vmatpush2.msra.mxu0 0.0
  %1424 = vmatprep.subr.mxu0 0.0
  %1425 = vmatpush2.msra.mxu0 0.0
  %1426 = vmatprep.subr.mxu0 0.0
  %1427 = vmatpush2.msra.mxu0 0.0
  %1428 = vmatprep.subr.mxu0 0.0
  %1429 = vmatpush2.msra.mxu0 0.0
  %1430 = vmatprep.subr.mxu0 0.0
  %1431 = vmatpush2.msra.mxu0 0.0
  %1432 = vmatprep.subr.mxu0 0.0
  %1433 = vmatpush2.msra.mxu0 0.0
  %1434 = vmatprep.subr.mxu0 0.0
  %1435 = vmatpush2.msra.mxu0 0.0
  %1436 = vmatprep.subr.mxu0 0.0
  %1437 = vmatpush2.msra.mxu0 0.0
  %1438 = vmatprep.subr.mxu0 0.0
  %1439 = vmatpush2.msra.mxu0 0.0
  %1440 = vmatprep.subr.mxu0 0.0
  %1441 = vmatpush2.msra.mxu0 0.0
  %1442 = vmatprep.subr.mxu0 0.0
  %1443 = vmatpush2.msra.mxu0 0.0
  %1444 = vmatprep.subr.mxu0 0.0
  %1445 = vmatpush2.msra.mxu0 0.0
  %1446 = vmatprep.subr.mxu0 0.0
  %1447 = vmatpush2.msra.mxu0 0.0
  %1448 = vmatprep.subr.mxu0 0.0
  %1449 = vmatpush2.msra.mxu0 0.0
  %1450 = vmatprep.subr.mxu0 0.0
  %1451 = vmatpush2.msra.mxu0 0.0
  %1452 = vmatprep.mubr.f32.mxu0 0.0
  %1453 = vmatmul.mubr.f32.gmra.mxu0 %v1377
  %v1454 = vpop.f32.mrf.mxu0
  %v1455 = vadd.f32 0.0, %v1454
  %v1456 = vpop.f32.mrf.mxu0
  %1457 = vmatprep.mubr.f32.mxu0 0.0
  %1458 = vmatmul.mubr.f32.gmra.mxu0 %v1380
  %v1459 = vpop.f32.mrf.mxu0
  %v1460 = vadd.f32 0.0, %v1459
  %v1461 = vpop.f32.mrf.mxu0
  %1462 = vmatprep.mubr.f32.mxu0 0.0
  %1463 = vmatmul.mubr.f32.gmra.mxu0 %v1383
  %v1464 = vpop.f32.mrf.mxu0
  %v1465 = vadd.f32 0.0, %v1464
  %v1466 = vpop.f32.mrf.mxu0
  %1467 = vmatprep.mubr.f32.mxu0 0.0
  %1468 = vmatmul.mubr.f32.gmra.mxu0 %v1386
  %v1469 = vpop.f32.mrf.mxu0
  %v1470 = vadd.f32 0.0, %v1469
  %v1471 = vpop.f32.mrf.mxu0
  %1472 = vdwg.mxu0
  %v1473 = vld [vmem:[%s15] sm:$0xff]
  %v1474 = vld [vmem:[%s15 + $0x8] sm:$0xff]
  %v1475 = vld [vmem:[%s15 + $0x10] sm:$0xff]
  %v1476 = vld [vmem:[%s15 + $0x18] sm:$0xff]
  %v1478 = vsel %vm929, %v1473, 0
  %v1481 = vsel %vm929, %v1474, 0
  %v1484 = vsel %vm929, %v1475, 0
  %v1487 = vsel %vm929, %v1476, 0
  %1489 = vmatprep.subr.mxu0 0.0
  %1490 = vmatpush1.msra.mxu0 0.0
  %1491 = vmatprep.subr.mxu0 0.0
  %1492 = vmatpush1.msra.mxu0 0.0
  %1493 = vmatprep.subr.mxu0 0.0
  %1494 = vmatpush1.msra.mxu0 0.0
  %1495 = vmatprep.subr.mxu0 0.0
  %1496 = vmatpush1.msra.mxu0 0.0
  %1497 = vmatprep.subr.mxu0 0.0
  %1498 = vmatpush1.msra.mxu0 0.0
  %1499 = vmatprep.subr.mxu0 0.0
  %1500 = vmatpush1.msra.mxu0 0.0
  %1501 = vmatprep.subr.mxu0 0.0
  %1502 = vmatpush1.msra.mxu0 0.0
  %1503 = vmatprep.subr.mxu0 0.0
  %1504 = vmatpush1.msra.mxu0 0.0
  %1505 = vmatprep.subr.mxu0 0.0
  %1506 = vmatpush1.msra.mxu0 0.0
  %1507 = vmatprep.subr.mxu0 0.0
  %1508 = vmatpush1.msra.mxu0 0.0
  %1509 = vmatprep.subr.mxu0 0.0
  %1510 = vmatpush1.msra.mxu0 0.0
  %1511 = vmatprep.subr.mxu0 0.0
  %1512 = vmatpush1.msra.mxu0 0.0
  %1513 = vmatprep.subr.mxu0 0.0
  %1514 = vmatpush1.msra.mxu0 %v1371
  %1515 = vmatprep.subr.mxu0 0.0
  %1516 = vmatpush1.msra.mxu0 %v1370
  %1517 = vmatprep.subr.mxu0 0.0
  %1518 = vmatpush1.msra.mxu0 %v1369
  %1519 = vmatprep.subr.mxu0 0.0
  %1520 = vmatpush1.msra.mxu0 %v1368
  %1521 = vmatprep.subr.mxu0 0.0
  %1522 = vmatpush2.msra.mxu0 0.0
  %1523 = vmatprep.subr.mxu0 0.0
  %1524 = vmatpush2.msra.mxu0 0.0
  %1525 = vmatprep.subr.mxu0 0.0
  %1526 = vmatpush2.msra.mxu0 0.0
  %1527 = vmatprep.subr.mxu0 0.0
  %1528 = vmatpush2.msra.mxu0 0.0
  %1529 = vmatprep.subr.mxu0 0.0
  %1530 = vmatpush2.msra.mxu0 0.0
  %1531 = vmatprep.subr.mxu0 0.0
  %1532 = vmatpush2.msra.mxu0 0.0
  %1533 = vmatprep.subr.mxu0 0.0
  %1534 = vmatpush2.msra.mxu0 0.0
  %1535 = vmatprep.subr.mxu0 0.0
  %1536 = vmatpush2.msra.mxu0 0.0
  %1537 = vmatprep.subr.mxu0 0.0
  %1538 = vmatpush2.msra.mxu0 0.0
  %1539 = vmatprep.subr.mxu0 0.0
  %1540 = vmatpush2.msra.mxu0 0.0
  %1541 = vmatprep.subr.mxu0 0.0
  %1542 = vmatpush2.msra.mxu0 0.0
  %1543 = vmatprep.subr.mxu0 0.0
  %1544 = vmatpush2.msra.mxu0 0.0
  %1545 = vmatprep.subr.mxu0 0.0
  %1546 = vmatpush2.msra.mxu0 0.0
  %1547 = vmatprep.subr.mxu0 0.0
  %1548 = vmatpush2.msra.mxu0 0.0
  %1549 = vmatprep.subr.mxu0 0.0
  %1550 = vmatpush2.msra.mxu0 0.0
  %1551 = vmatprep.subr.mxu0 0.0
  %1552 = vmatpush2.msra.mxu0 0.0
  %1553 = vmatprep.mubr.f32.mxu0 0.0
  %1554 = vmatmul.mubr.f32.gmra.mxu0 %v1478
  %v1555 = vpop.f32.mrf.mxu0
  %v1556 = vadd.f32 0.0, %v1555
  %v1557 = vpop.f32.mrf.mxu0
  %1558 = vmatprep.mubr.f32.mxu0 0.0
  %1559 = vmatmul.mubr.f32.gmra.mxu0 %v1481
  %v1560 = vpop.f32.mrf.mxu0
  %v1561 = vadd.f32 0.0, %v1560
  %v1562 = vpop.f32.mrf.mxu0
  %1563 = vmatprep.mubr.f32.mxu0 0.0
  %1564 = vmatmul.mubr.f32.gmra.mxu0 %v1484
  %v1565 = vpop.f32.mrf.mxu0
  %v1566 = vadd.f32 0.0, %v1565
  %v1567 = vpop.f32.mrf.mxu0
  %1568 = vmatprep.mubr.f32.mxu0 0.0
  %1569 = vmatmul.mubr.f32.gmra.mxu0 %v1487
  %v1570 = vpop.f32.mrf.mxu0
  %v1571 = vadd.f32 0.0, %v1570
  %v1572 = vpop.f32.mrf.mxu0
  %1573 = vdwg.mxu0
  %v1574 = vld [vmem:[%s13] sm:$0xff]
  %v1575 = vld [vmem:[%s13 + $0x8] sm:$0xff]
  %v1576 = vld [vmem:[%s13 + $0x10] sm:$0xff]
  %v1577 = vld [vmem:[%s13 + $0x18] sm:$0xff]
  %v1578 = vld [vmem:[%s13 + $0x20] sm:$0xff]
  %v1579 = vld [vmem:[%s13 + $0x28] sm:$0xff]
  %v1580 = vld [vmem:[%s13 + $0x30] sm:$0xff]
  %v1581 = vld [vmem:[%s13 + $0x38] sm:$0xff]
  %v1582 = vld [vmem:[%s13 + $0x40] sm:$0xff]
  %v1583 = vld [vmem:[%s13 + $0x48] sm:$0xff]
  %v1584 = vld [vmem:[%s13 + $0x50] sm:$0xff]
  %v1585 = vld [vmem:[%s13 + $0x58] sm:$0xff]
  %v1586 = vld [vmem:[%s13 + $0x60] sm:$0xff]
  %v1587 = vld [vmem:[%s13 + $0x68] sm:$0xff]
  %v1588 = vld [vmem:[%s13 + $0x70] sm:$0xff]
  %v1589 = vld [vmem:[%s13 + $0x78] sm:$0xff]
  %v1590 = vld [vmem:[%s13 + $0x80] sm:$0xff]
  %v1591 = vld [vmem:[%s13 + $0x88] sm:$0xff]
  %v1592 = vld [vmem:[%s13 + $0x90] sm:$0xff]
  %v1593 = vld [vmem:[%s13 + $0x98] sm:$0xff]
  %v1594 = vld [vmem:[%s13 + $0xa0] sm:$0xff]
  %v1595 = vld [vmem:[%s13 + $0xa8] sm:$0xff]
  %v1596 = vld [vmem:[%s13 + $0xb0] sm:$0xff]
  %v1597 = vld [vmem:[%s13 + $0xb8] sm:$0xff]
  %v1598 = vld [vmem:[%s13 + $0xc0] sm:$0xff]
  %v1599 = vld [vmem:[%s13 + $0xc8] sm:$0xff]
  %v1600 = vld [vmem:[%s13 + $0xd0] sm:$0xff]
  %v1601 = vld [vmem:[%s13 + $0xd8] sm:$0xff]
  %v1602 = vld [vmem:[%s13 + $0xe0] sm:$0xff]
  %v1603 = vld [vmem:[%s13 + $0xe8] sm:$0xff]
  %v1604 = vld [vmem:[%s13 + $0xf0] sm:$0xff]
  %v1605 = vld [vmem:[%s13 + $0xf8] sm:$0xff]
  %v1606 = vld [vmem:[%s13 + $0x100] sm:$0xff]
  %v1607 = vld [vmem:[%s13 + $0x108] sm:$0xff]
  %v1608 = vld [vmem:[%s13 + $0x110] sm:$0xff]
  %v1609 = vld [vmem:[%s13 + $0x118] sm:$0xff]
  %v1610 = vld [vmem:[%s13 + $0x120] sm:$0xff]
  %v1611 = vld [vmem:[%s13 + $0x128] sm:$0xff]
  %v1612 = vld [vmem:[%s13 + $0x130] sm:$0xff]
  %v1613 = vld [vmem:[%s13 + $0x138] sm:$0xff]
  %v1614 = vld [vmem:[%s13 + $0x140] sm:$0xff]
  %v1615 = vld [vmem:[%s13 + $0x148] sm:$0xff]
  %v1616 = vld [vmem:[%s13 + $0x150] sm:$0xff]
  %v1617 = vld [vmem:[%s13 + $0x158] sm:$0xff]
  %v1618 = vld [vmem:[%s13 + $0x160] sm:$0xff]
  %v1619 = vld [vmem:[%s13 + $0x168] sm:$0xff]
  %v1620 = vld [vmem:[%s13 + $0x170] sm:$0xff]
  %v1621 = vld [vmem:[%s13 + $0x178] sm:$0xff]
  %v1622 = vld [vmem:[%s13 + $0x180] sm:$0xff]
  %v1623 = vld [vmem:[%s13 + $0x188] sm:$0xff]
  %v1624 = vld [vmem:[%s13 + $0x190] sm:$0xff]
  %v1625 = vld [vmem:[%s13 + $0x198] sm:$0xff]
  %v1626 = vld [vmem:[%s13 + $0x1a0] sm:$0xff]
  %v1627 = vld [vmem:[%s13 + $0x1a8] sm:$0xff]
  %v1628 = vld [vmem:[%s13 + $0x1b0] sm:$0xff]
  %v1629 = vld [vmem:[%s13 + $0x1b8] sm:$0xff]
  %v1630 = vld [vmem:[%s13 + $0x1c0] sm:$0xff]
  %v1631 = vld [vmem:[%s13 + $0x1c8] sm:$0xff]
  %v1632 = vld [vmem:[%s13 + $0x1d0] sm:$0xff]
  %v1633 = vld [vmem:[%s13 + $0x1d8] sm:$0xff]
  %v1634 = vld [vmem:[%s13 + $0x1e0] sm:$0xff]
  %v1635 = vld [vmem:[%s13 + $0x1e8] sm:$0xff]
  %v1636 = vld [vmem:[%s13 + $0x1f0] sm:$0xff]
  %v1637 = vld [vmem:[%s13 + $0x1f8] sm:$0xff]
  %v1638 = vld [vmem:[%s13 + $0x200] sm:$0xff]
  %v1639 = vld [vmem:[%s13 + $0x208] sm:$0xff]
  %v1640 = vld [vmem:[%s13 + $0x210] sm:$0xff]
  %v1641 = vld [vmem:[%s13 + $0x218] sm:$0xff]
  %v1642 = vld [vmem:[%s13 + $0x220] sm:$0xff]
  %v1643 = vld [vmem:[%s13 + $0x228] sm:$0xff]
  %v1644 = vld [vmem:[%s13 + $0x230] sm:$0xff]
  %v1645 = vld [vmem:[%s13 + $0x238] sm:$0xff]
  %v1646 = vld [vmem:[%s13 + $0x240] sm:$0xff]
  %v1647 = vld [vmem:[%s13 + $0x248] sm:$0xff]
  %v1648 = vld [vmem:[%s13 + $0x250] sm:$0xff]
  %v1649 = vld [vmem:[%s13 + $0x258] sm:$0xff]
  %v1650 = vld [vmem:[%s13 + $0x260] sm:$0xff]
  %v1651 = vld [vmem:[%s13 + $0x268] sm:$0xff]
  %v1652 = vld [vmem:[%s13 + $0x270] sm:$0xff]
  %v1653 = vld [vmem:[%s13 + $0x278] sm:$0xff]
  %v1654 = vld [vmem:[%s13 + $0x280] sm:$0xff]
  %v1655 = vld [vmem:[%s13 + $0x288] sm:$0xff]
  %v1656 = vld [vmem:[%s13 + $0x290] sm:$0xff]
  %v1657 = vld [vmem:[%s13 + $0x298] sm:$0xff]
  %v1658 = vld [vmem:[%s13 + $0x2a0] sm:$0xff]
  %v1659 = vld [vmem:[%s13 + $0x2a8] sm:$0xff]
  %v1660 = vld [vmem:[%s13 + $0x2b0] sm:$0xff]
  %v1661 = vld [vmem:[%s13 + $0x2b8] sm:$0xff]
  %v1662 = vld [vmem:[%s13 + $0x2c0] sm:$0xff]
  %v1663 = vld [vmem:[%s13 + $0x2c8] sm:$0xff]
  %v1664 = vld [vmem:[%s13 + $0x2d0] sm:$0xff]
  %v1665 = vld [vmem:[%s13 + $0x2d8] sm:$0xff]
  %v1666 = vld [vmem:[%s13 + $0x2e0] sm:$0xff]
  %v1667 = vld [vmem:[%s13 + $0x2e8] sm:$0xff]
  %v1668 = vld [vmem:[%s13 + $0x2f0] sm:$0xff]
  %v1669 = vld [vmem:[%s13 + $0x2f8] sm:$0xff]
  %1670 = vmatprep.subr.mxu0 %v1605
  %1671 = vmatpush1.msra.mxu0 %v1604
  %1672 = vmatprep.subr.mxu0 %v1603
  %1673 = vmatpush1.msra.mxu0 %v1602
  %1674 = vmatprep.subr.mxu0 %v1601
  %1675 = vmatpush1.msra.mxu0 %v1600
  %1676 = vmatprep.subr.mxu0 %v1599
  %1677 = vmatpush1.msra.mxu0 %v1598
  %1678 = vmatprep.subr.mxu0 %v1597
  %1679 = vmatpush1.msra.mxu0 %v1596
  %1680 = vmatprep.subr.mxu0 %v1595
  %1681 = vmatpush1.msra.mxu0 %v1594
  %1682 = vmatprep.subr.mxu0 %v1593
  %1683 = vmatpush1.msra.mxu0 %v1592
  %1684 = vmatprep.subr.mxu0 %v1591
  %1685 = vmatpush1.msra.mxu0 %v1590
  %1686 = vmatprep.subr.mxu0 %v1589
  %1687 = vmatpush1.msra.mxu0 %v1588
  %1688 = vmatprep.subr.mxu0 %v1587
  %1689 = vmatpush1.msra.mxu0 %v1586
  %1690 = vmatprep.subr.mxu0 %v1585
  %1691 = vmatpush1.msra.mxu0 %v1584
  %1692 = vmatprep.subr.mxu0 %v1583
  %1693 = vmatpush1.msra.mxu0 %v1582
  %1694 = vmatprep.subr.mxu0 %v1581
  %1695 = vmatpush1.msra.mxu0 %v1580
  %1696 = vmatprep.subr.mxu0 %v1579
  %1697 = vmatpush1.msra.mxu0 %v1578
  %1698 = vmatprep.subr.mxu0 %v1577
  %1699 = vmatpush1.msra.mxu0 %v1576
  %1700 = vmatprep.subr.mxu0 %v1575
  %1701 = vmatpush1.msra.mxu0 %v1574
  %1702 = vmatprep.subr.mxu0 %v1637
  %1703 = vmatpush2.msra.mxu0 %v1636
  %1704 = vmatprep.subr.mxu0 %v1635
  %1705 = vmatpush2.msra.mxu0 %v1634
  %1706 = vmatprep.subr.mxu0 %v1633
  %1707 = vmatpush2.msra.mxu0 %v1632
  %1708 = vmatprep.subr.mxu0 %v1631
  %1709 = vmatpush2.msra.mxu0 %v1630
  %1710 = vmatprep.subr.mxu0 %v1629
  %1711 = vmatpush2.msra.mxu0 %v1628
  %1712 = vmatprep.subr.mxu0 %v1627
  %1713 = vmatpush2.msra.mxu0 %v1626
  %1714 = vmatprep.subr.mxu0 %v1625
  %1715 = vmatpush2.msra.mxu0 %v1624
  %1716 = vmatprep.subr.mxu0 %v1623
  %1717 = vmatpush2.msra.mxu0 %v1622
  %1718 = vmatprep.subr.mxu0 %v1621
  %1719 = vmatpush2.msra.mxu0 %v1620
  %1720 = vmatprep.subr.mxu0 %v1619
  %1721 = vmatpush2.msra.mxu0 %v1618
  %1722 = vmatprep.subr.mxu0 %v1617
  %1723 = vmatpush2.msra.mxu0 %v1616
  %1724 = vmatprep.subr.mxu0 %v1615
  %1725 = vmatpush2.msra.mxu0 %v1614
  %1726 = vmatprep.subr.mxu0 %v1613
  %1727 = vmatpush2.msra.mxu0 %v1612
  %1728 = vmatprep.subr.mxu0 %v1611
  %1729 = vmatpush2.msra.mxu0 %v1610
  %1730 = vmatprep.subr.mxu0 %v1609
  %1731 = vmatpush2.msra.mxu0 %v1608
  %1732 = vmatprep.subr.mxu0 %v1607
  %1733 = vmatpush2.msra.mxu0 %v1606
  %1734 = vmatprep.mubr.f32.mxu0 %v1368
  %1735 = vmatmul.mubr.f32.gmra.mxu0 %v1455
  %v1736 = vpop.f32.mrf.mxu0
  %v1737 = vadd.f32 0.0, %v1736
  %v1738 = vpop.f32.mrf.mxu0
  %v1739 = vadd.f32 0.0, %v1738
  %1740 = vmatprep.mubr.f32.mxu0 %v1369
  %1741 = vmatmul.mubr.f32.gmra.mxu0 %v1460
  %v1742 = vpop.f32.mrf.mxu0
  %v1743 = vadd.f32 0.0, %v1742
  %v1744 = vpop.f32.mrf.mxu0
  %v1745 = vadd.f32 0.0, %v1744
  %1746 = vmatprep.mubr.f32.mxu0 %v1370
  %1747 = vmatmul.mubr.f32.gmra.mxu0 %v1465
  %v1748 = vpop.f32.mrf.mxu0
  %v1749 = vadd.f32 0.0, %v1748
  %v1750 = vpop.f32.mrf.mxu0
  %v1751 = vadd.f32 0.0, %v1750
  %1752 = vmatprep.mubr.f32.mxu0 %v1371
  %1753 = vmatmul.mubr.f32.gmra.mxu0 %v1470
  %v1754 = vpop.f32.mrf.mxu0
  %v1755 = vadd.f32 0.0, %v1754
  %v1756 = vpop.f32.mrf.mxu0
  %v1757 = vadd.f32 0.0, %v1756
  %1758 = vdwg.mxu0
  %1759 = vmatprep.subr.mxu0 %v1669
  %1760 = vmatpush1.msra.mxu0 %v1668
  %1761 = vmatprep.subr.mxu0 %v1667
  %1762 = vmatpush1.msra.mxu0 %v1666
  %1763 = vmatprep.subr.mxu0 %v1665
  %1764 = vmatpush1.msra.mxu0 %v1664
  %1765 = vmatprep.subr.mxu0 %v1663
  %1766 = vmatpush1.msra.mxu0 %v1662
  %1767 = vmatprep.subr.mxu0 %v1661
  %1768 = vmatpush1.msra.mxu0 %v1660
  %1769 = vmatprep.subr.mxu0 %v1659
  %1770 = vmatpush1.msra.mxu0 %v1658
  %1771 = vmatprep.subr.mxu0 %v1657
  %1772 = vmatpush1.msra.mxu0 %v1656
  %1773 = vmatprep.subr.mxu0 %v1655
  %1774 = vmatpush1.msra.mxu0 %v1654
  %1775 = vmatprep.subr.mxu0 %v1653
  %1776 = vmatpush1.msra.mxu0 %v1652
  %1777 = vmatprep.subr.mxu0 %v1651
  %1778 = vmatpush1.msra.mxu0 %v1650
  %1779 = vmatprep.subr.mxu0 %v1649
  %1780 = vmatpush1.msra.mxu0 %v1648
  %1781 = vmatprep.subr.mxu0 %v1647
  %1782 = vmatpush1.msra.mxu0 %v1646
  %1783 = vmatprep.subr.mxu0 %v1645
  %1784 = vmatpush1.msra.mxu0 %v1644
  %1785 = vmatprep.subr.mxu0 %v1643
  %1786 = vmatpush1.msra.mxu0 %v1642
  %1787 = vmatprep.subr.mxu0 %v1641
  %1788 = vmatpush1.msra.mxu0 %v1640
  %1789 = vmatprep.subr.mxu0 %v1639
  %1790 = vmatpush1.msra.mxu0 %v1638
  %1791 = vmatprep.subr.mxu0 0.0
  %1792 = vmatpush2.msra.mxu0 0.0
  %1793 = vmatprep.subr.mxu0 0.0
  %1794 = vmatpush2.msra.mxu0 0.0
  %1795 = vmatprep.subr.mxu0 0.0
  %1796 = vmatpush2.msra.mxu0 0.0
  %1797 = vmatprep.subr.mxu0 0.0
  %1798 = vmatpush2.msra.mxu0 0.0
  %1799 = vmatprep.subr.mxu0 0.0
  %1800 = vmatpush2.msra.mxu0 0.0
  %1801 = vmatprep.subr.mxu0 0.0
  %1802 = vmatpush2.msra.mxu0 0.0
  %1803 = vmatprep.subr.mxu0 0.0
  %1804 = vmatpush2.msra.mxu0 0.0
  %1805 = vmatprep.subr.mxu0 0.0
  %1806 = vmatpush2.msra.mxu0 0.0
  %1807 = vmatprep.subr.mxu0 0.0
  %1808 = vmatpush2.msra.mxu0 0.0
  %1809 = vmatprep.subr.mxu0 0.0
  %1810 = vmatpush2.msra.mxu0 0.0
  %1811 = vmatprep.subr.mxu0 0.0
  %1812 = vmatpush2.msra.mxu0 0.0
  %1813 = vmatprep.subr.mxu0 0.0
  %1814 = vmatpush2.msra.mxu0 0.0
  %1815 = vmatprep.subr.mxu0 0.0
  %1816 = vmatpush2.msra.mxu0 0.0
  %1817 = vmatprep.subr.mxu0 0.0
  %1818 = vmatpush2.msra.mxu0 0.0
  %1819 = vmatprep.subr.mxu0 0.0
  %1820 = vmatpush2.msra.mxu0 0.0
  %1821 = vmatprep.subr.mxu0 0.0
  %1822 = vmatpush2.msra.mxu0 0.0
  %1823 = vmatprep.mubr.f32.mxu0 0.0
  %1824 = vmatmul.mubr.f32.gmra.mxu0 %v1556
  %v1825 = vpop.f32.mrf.mxu0
  %v1826 = vadd.f32 %v1737, %v1825
  %v1827 = vpop.f32.mrf.mxu0
  %v1828 = vadd.f32 %v1739, %v1827
  %1829 = vmatprep.mubr.f32.mxu0 0.0
  %1830 = vmatmul.mubr.f32.gmra.mxu0 %v1561
  %v1831 = vpop.f32.mrf.mxu0
  %v1832 = vadd.f32 %v1743, %v1831
  %v1833 = vpop.f32.mrf.mxu0
  %v1834 = vadd.f32 %v1745, %v1833
  %1835 = vmatprep.mubr.f32.mxu0 0.0
  %1836 = vmatmul.mubr.f32.gmra.mxu0 %v1566
  %v1837 = vpop.f32.mrf.mxu0
  %v1838 = vadd.f32 %v1749, %v1837
  %v1839 = vpop.f32.mrf.mxu0
  %v1840 = vadd.f32 %v1751, %v1839
  %1841 = vmatprep.mubr.f32.mxu0 0.0
  %1842 = vmatmul.mubr.f32.gmra.mxu0 %v1571
  %v1843 = vpop.f32.mrf.mxu0
  %v1844 = vadd.f32 %v1755, %v1843
  %v1845 = vpop.f32.mrf.mxu0
  %v1846 = vadd.f32 %v1757, %v1845
  %1847 = vdwg.mxu0
  %v1848 = vmax.f32 %v1826, %v1828
  %v1849 = vmax.f32 %v1832, %v1834
  %v1850 = vmax.f32 %v1838, %v1840
  %v1851 = vmax.f32 %v1844, %v1846
  %v1852 = vld [vmem:[%s16] sm:$0xff]
  %v1853 = vld [vmem:[%s16 + $0x8] sm:$0xff]
  %v1855 = vsel %vm929, %v1852, 0
  %v1858 = vsel %vm929, %v1853, 0
  %1860 = vmatprep.subr.mxu0 0.0
  %1861 = vmatpush1.msra.mxu0 0.0
  %1862 = vmatprep.subr.mxu0 0.0
  %1863 = vmatpush1.msra.mxu0 0.0
  %1864 = vmatprep.subr.mxu0 0.0
  %1865 = vmatpush1.msra.mxu0 0.0
  %1866 = vmatprep.subr.mxu0 0.0
  %1867 = vmatpush1.msra.mxu0 0.0
  %1868 = vmatprep.subr.mxu0 0.0
  %1869 = vmatpush1.msra.mxu0 0.0
  %1870 = vmatprep.subr.mxu0 0.0
  %1871 = vmatpush1.msra.mxu0 0.0
  %1872 = vmatprep.subr.mxu0 0.0
  %1873 = vmatpush1.msra.mxu0 0.0
  %1874 = vmatprep.subr.mxu0 0.0
  %1875 = vmatpush1.msra.mxu0 0.0
  %1876 = vmatprep.subr.mxu0 0.0
  %1877 = vmatpush1.msra.mxu0 0.0
  %1878 = vmatprep.subr.mxu0 0.0
  %1879 = vmatpush1.msra.mxu0 0.0
  %1880 = vmatprep.subr.mxu0 0.0
  %1881 = vmatpush1.msra.mxu0 0.0
  %1882 = vmatprep.subr.mxu0 0.0
  %1883 = vmatpush1.msra.mxu0 0.0
  %1884 = vmatprep.subr.mxu0 0.0
  %1885 = vmatpush1.msra.mxu0 %v1851
  %1886 = vmatprep.subr.mxu0 0.0
  %1887 = vmatpush1.msra.mxu0 %v1850
  %1888 = vmatprep.subr.mxu0 0.0
  %1889 = vmatpush1.msra.mxu0 %v1849
  %1890 = vmatprep.subr.mxu0 0.0
  %1891 = vmatpush1.msra.mxu0 %v1848
  %1892 = vmatprep.subr.mxu0 0.0
  %1893 = vmatpush2.msra.mxu0 0.0
  %1894 = vmatprep.subr.mxu0 0.0
  %1895 = vmatpush2.msra.mxu0 0.0
  %1896 = vmatprep.subr.mxu0 0.0
  %1897 = vmatpush2.msra.mxu0 0.0
  %1898 = vmatprep.subr.mxu0 0.0
  %1899 = vmatpush2.msra.mxu0 0.0
  %1900 = vmatprep.subr.mxu0 0.0
  %1901 = vmatpush2.msra.mxu0 0.0
  %1902 = vmatprep.subr.mxu0 0.0
  %1903 = vmatpush2.msra.mxu0 0.0
  %1904 = vmatprep.subr.mxu0 0.0
  %1905 = vmatpush2.msra.mxu0 0.0
  %1906 = vmatprep.subr.mxu0 0.0
  %1907 = vmatpush2.msra.mxu0 0.0
  %1908 = vmatprep.subr.mxu0 0.0
  %1909 = vmatpush2.msra.mxu0 0.0
  %1910 = vmatprep.subr.mxu0 0.0
  %1911 = vmatpush2.msra.mxu0 0.0
  %1912 = vmatprep.subr.mxu0 0.0
  %1913 = vmatpush2.msra.mxu0 0.0
  %1914 = vmatprep.subr.mxu0 0.0
  %1915 = vmatpush2.msra.mxu0 0.0
  %1916 = vmatprep.subr.mxu0 0.0
  %1917 = vmatpush2.msra.mxu0 0.0
  %1918 = vmatprep.subr.mxu0 0.0
  %1919 = vmatpush2.msra.mxu0 0.0
  %1920 = vmatprep.subr.mxu0 0.0
  %1921 = vmatpush2.msra.mxu0 0.0
  %1922 = vmatprep.subr.mxu0 0.0
  %1923 = vmatpush2.msra.mxu0 0.0
  %1924 = vmatprep.mubr.f32.mxu0 0.0
  %1925 = vmatmul.mubr.f32.gmra.mxu0 %v1855
  %v1926 = vpop.f32.mrf.mxu0
  %v1927 = vadd.f32 0.0, %v1926
  %v1928 = vpop.f32.mrf.mxu0
  %1929 = vmatprep.mubr.f32.mxu0 0.0
  %1930 = vmatmul.mubr.f32.gmra.mxu0 %v1858
  %v1931 = vpop.f32.mrf.mxu0
  %v1932 = vadd.f32 0.0, %v1931
  %v1933 = vpop.f32.mrf.mxu0
  %1934 = vdwg.mxu0
  %v1935 = vld [vmem:[%s17] sm:$0xff]
  %v1936 = vld [vmem:[%s17 + $0x8] sm:$0xff]
  %v1938 = vsel %vm929, %v1935, 0
  %v1941 = vsel %vm929, %v1936, 0
  %1943 = vmatprep.subr.mxu0 0.0
  %1944 = vmatpush1.msra.mxu0 0.0
  %1945 = vmatprep.subr.mxu0 0.0
  %1946 = vmatpush1.msra.mxu0 0.0
  %1947 = vmatprep.subr.mxu0 0.0
  %1948 = vmatpush1.msra.mxu0 0.0
  %1949 = vmatprep.subr.mxu0 0.0
  %1950 = vmatpush1.msra.mxu0 0.0
  %1951 = vmatprep.subr.mxu0 0.0
  %1952 = vmatpush1.msra.mxu0 0.0
  %1953 = vmatprep.subr.mxu0 0.0
  %1954 = vmatpush1.msra.mxu0 0.0
  %1955 = vmatprep.subr.mxu0 0.0
  %1956 = vmatpush1.msra.mxu0 0.0
  %1957 = vmatprep.subr.mxu0 0.0
  %1958 = vmatpush1.msra.mxu0 0.0
  %1959 = vmatprep.subr.mxu0 0.0
  %1960 = vmatpush1.msra.mxu0 0.0
  %1961 = vmatprep.subr.mxu0 0.0
  %1962 = vmatpush1.msra.mxu0 0.0
  %1963 = vmatprep.subr.mxu0 0.0
  %1964 = vmatpush1.msra.mxu0 0.0
  %1965 = vmatprep.subr.mxu0 0.0
  %1966 = vmatpush1.msra.mxu0 0.0
  %1967 = vmatprep.subr.mxu0 0.0
  %1968 = vmatpush1.msra.mxu0 %v1851
  %1969 = vmatprep.subr.mxu0 0.0
  %1970 = vmatpush1.msra.mxu0 %v1850
  %1971 = vmatprep.subr.mxu0 0.0
  %1972 = vmatpush1.msra.mxu0 %v1849
  %1973 = vmatprep.subr.mxu0 0.0
  %1974 = vmatpush1.msra.mxu0 %v1848
  %1975 = vmatprep.subr.mxu0 0.0
  %1976 = vmatpush2.msra.mxu0 0.0
  %1977 = vmatprep.subr.mxu0 0.0
  %1978 = vmatpush2.msra.mxu0 0.0
  %1979 = vmatprep.subr.mxu0 0.0
  %1980 = vmatpush2.msra.mxu0 0.0
  %1981 = vmatprep.subr.mxu0 0.0
  %1982 = vmatpush2.msra.mxu0 0.0
  %1983 = vmatprep.subr.mxu0 0.0
  %1984 = vmatpush2.msra.mxu0 0.0
  %1985 = vmatprep.subr.mxu0 0.0
  %1986 = vmatpush2.msra.mxu0 0.0
  %1987 = vmatprep.subr.mxu0 0.0
  %1988 = vmatpush2.msra.mxu0 0.0
  %1989 = vmatprep.subr.mxu0 0.0
  %1990 = vmatpush2.msra.mxu0 0.0
  %1991 = vmatprep.subr.mxu0 0.0
  %1992 = vmatpush2.msra.mxu0 0.0
  %1993 = vmatprep.subr.mxu0 0.0
  %1994 = vmatpush2.msra.mxu0 0.0
  %1995 = vmatprep.subr.mxu0 0.0
  %1996 = vmatpush2.msra.mxu0 0.0
  %1997 = vmatprep.subr.mxu0 0.0
  %1998 = vmatpush2.msra.mxu0 0.0
  %1999 = vmatprep.subr.mxu0 0.0
  %2000 = vmatpush2.msra.mxu0 0.0
  %2001 = vmatprep.subr.mxu0 0.0
  %2002 = vmatpush2.msra.mxu0 0.0
  %2003 = vmatprep.subr.mxu0 0.0
  %2004 = vmatpush2.msra.mxu0 0.0
  %2005 = vmatprep.subr.mxu0 0.0
  %2006 = vmatpush2.msra.mxu0 0.0
  %2007 = vmatprep.mubr.f32.mxu0 0.0
  %2008 = vmatmul.mubr.f32.gmra.mxu0 %v1938
  %v2009 = vpop.f32.mrf.mxu0
  %v2010 = vadd.f32 0.0, %v2009
  %v2011 = vpop.f32.mrf.mxu0
  %2012 = vmatprep.mubr.f32.mxu0 0.0
  %2013 = vmatmul.mubr.f32.gmra.mxu0 %v1941
  %v2014 = vpop.f32.mrf.mxu0
  %v2015 = vadd.f32 0.0, %v2014
  %v2016 = vpop.f32.mrf.mxu0
  %2017 = vdwg.mxu0
  %v2018 = vmax.f32 %v1927, %v2010
  %v2019 = vmax.f32 %v1932, %v2015
  %v2020 = vld [vmem:[%s18] sm:$0x1]
  %v2022 = vlaneseq
  %v2023 = vshrl.u32 %v2022, 7
  %v2024 = vsub.s32 0, %v2023
  %v2025 = vrot.slane %v2020, %v2024
  %v2027 = vmul.f32 %v2018, %v2025
  %v2028 = vmul.f32 %v2019, %v2025
  %v2029 = vld [vmem:[%s19] sm:$0x1]
  %v2031 = vlaneseq
  %v2032 = vshrl.u32 %v2031, 7
  %v2033 = vsub.s32 0, %v2032
  %v2034 = vrot.slane %v2029, %v2033
  %v2036 = vadd.f32 %v2027, %v2034
  %v2037 = vadd.f32 %v2028, %v2034
  %v2038 = vmax.f32 %v2036, 0.0
  %v2039 = vmax.f32 %v2037, 0.0
  %v2040 = vld [vmem:[%s21] sm:$0xff]
  %v2041 = vld [vmem:[%s21 + $0x8] sm:$0xff]
  %vm2042 = vcmask 130048
  %v2044 = vsel %vm2042, %v2040, 0
  %v2047 = vsel %vm2042, %v2041, 0
  %2049 = vmatprep.subr.mxu0 0.0
  %2050 = vmatpush1.msra.mxu0 0.0
  %2051 = vmatprep.subr.mxu0 0.0
  %2052 = vmatpush1.msra.mxu0 0.0
  %2053 = vmatprep.subr.mxu0 0.0
  %2054 = vmatpush1.msra.mxu0 0.0
  %2055 = vmatprep.subr.mxu0 0.0
  %2056 = vmatpush1.msra.mxu0 0.0
  %2057 = vmatprep.subr.mxu0 0.0
  %2058 = vmatpush1.msra.mxu0 0.0
  %2059 = vmatprep.subr.mxu0 0.0
  %2060 = vmatpush1.msra.mxu0 0.0
  %2061 = vmatprep.subr.mxu0 0.0
  %2062 = vmatpush1.msra.mxu0 0.0
  %2063 = vmatprep.subr.mxu0 0.0
  %2064 = vmatpush1.msra.mxu0 0.0
  %2065 = vmatprep.subr.mxu0 0.0
  %2066 = vmatpush1.msra.mxu0 0.0
  %2067 = vmatprep.subr.mxu0 0.0
  %2068 = vmatpush1.msra.mxu0 0.0
  %2069 = vmatprep.subr.mxu0 0.0
  %2070 = vmatpush1.msra.mxu0 0.0
  %2071 = vmatprep.subr.mxu0 0.0
  %2072 = vmatpush1.msra.mxu0 0.0
  %2073 = vmatprep.subr.mxu0 0.0
  %2074 = vmatpush1.msra.mxu0 0.0
  %2075 = vmatprep.subr.mxu0 0.0
  %2076 = vmatpush1.msra.mxu0 0.0
  %2077 = vmatprep.subr.mxu0 0.0
  %2078 = vmatpush1.msra.mxu0 %v2039
  %2079 = vmatprep.subr.mxu0 0.0
  %2080 = vmatpush1.msra.mxu0 %v2038
  %2081 = vmatprep.subr.mxu0 0.0
  %2082 = vmatpush2.msra.mxu0 0.0
  %2083 = vmatprep.subr.mxu0 0.0
  %2084 = vmatpush2.msra.mxu0 0.0
  %2085 = vmatprep.subr.mxu0 0.0
  %2086 = vmatpush2.msra.mxu0 0.0
  %2087 = vmatprep.subr.mxu0 0.0
  %2088 = vmatpush2.msra.mxu0 0.0
  %2089 = vmatprep.subr.mxu0 0.0
  %2090 = vmatpush2.msra.mxu0 0.0
  %2091 = vmatprep.subr.mxu0 0.0
  %2092 = vmatpush2.msra.mxu0 0.0
  %2093 = vmatprep.subr.mxu0 0.0
  %2094 = vmatpush2.msra.mxu0 0.0
  %2095 = vmatprep.subr.mxu0 0.0
  %2096 = vmatpush2.msra.mxu0 0.0
  %2097 = vmatprep.subr.mxu0 0.0
  %2098 = vmatpush2.msra.mxu0 0.0
  %2099 = vmatprep.subr.mxu0 0.0
  %2100 = vmatpush2.msra.mxu0 0.0
  %2101 = vmatprep.subr.mxu0 0.0
  %2102 = vmatpush2.msra.mxu0 0.0
  %2103 = vmatprep.subr.mxu0 0.0
  %2104 = vmatpush2.msra.mxu0 0.0
  %2105 = vmatprep.subr.mxu0 0.0
  %2106 = vmatpush2.msra.mxu0 0.0
  %2107 = vmatprep.subr.mxu0 0.0
  %2108 = vmatpush2.msra.mxu0 0.0
  %2109 = vmatprep.subr.mxu0 0.0
  %2110 = vmatpush2.msra.mxu0 0.0
  %2111 = vmatprep.subr.mxu0 0.0
  %2112 = vmatpush2.msra.mxu0 0.0
  %2113 = vmatprep.mubr.f32.mxu0 0.0
  %2114 = vmatmul.mubr.f32.gmra.mxu0 %v2044
  %v2115 = vpop.f32.mrf.mxu0
  %v2116 = vadd.f32 0.0, %v2115
  %v2117 = vpop.f32.mrf.mxu0
  %2118 = vmatprep.mubr.f32.mxu0 0.0
  %2119 = vmatmul.mubr.f32.gmra.mxu0 %v2047
  %v2120 = vpop.f32.mrf.mxu0
  %v2121 = vadd.f32 0.0, %v2120
  %v2122 = vpop.f32.mrf.mxu0
  %2123 = vdwg.mxu0
  %v2124 = vld [vmem:[%s22] sm:$0xff]
  %v2125 = vld [vmem:[%s22 + $0x8] sm:$0xff]
  %v2127 = vsel %vm2042, %v2124, 0
  %v2130 = vsel %vm2042, %v2125, 0
  %2132 = vmatprep.subr.mxu0 0.0
  %2133 = vmatpush1.msra.mxu0 0.0
  %2134 = vmatprep.subr.mxu0 0.0
  %2135 = vmatpush1.msra.mxu0 0.0
  %2136 = vmatprep.subr.mxu0 0.0
  %2137 = vmatpush1.msra.mxu0 0.0
  %2138 = vmatprep.subr.mxu0 0.0
  %2139 = vmatpush1.msra.mxu0 0.0
  %2140 = vmatprep.subr.mxu0 0.0
  %2141 = vmatpush1.msra.mxu0 0.0
  %2142 = vmatprep.subr.mxu0 0.0
  %2143 = vmatpush1.msra.mxu0 0.0
  %2144 = vmatprep.subr.mxu0 0.0
  %2145 = vmatpush1.msra.mxu0 0.0
  %2146 = vmatprep.subr.mxu0 0.0
  %2147 = vmatpush1.msra.mxu0 0.0
  %2148 = vmatprep.subr.mxu0 0.0
  %2149 = vmatpush1.msra.mxu0 0.0
  %2150 = vmatprep.subr.mxu0 0.0
  %2151 = vmatpush1.msra.mxu0 0.0
  %2152 = vmatprep.subr.mxu0 0.0
  %2153 = vmatpush1.msra.mxu0 0.0
  %2154 = vmatprep.subr.mxu0 0.0
  %2155 = vmatpush1.msra.mxu0 0.0
  %2156 = vmatprep.subr.mxu0 0.0
  %2157 = vmatpush1.msra.mxu0 0.0
  %2158 = vmatprep.subr.mxu0 0.0
  %2159 = vmatpush1.msra.mxu0 0.0
  %2160 = vmatprep.subr.mxu0 0.0
  %2161 = vmatpush1.msra.mxu0 %v2039
  %2162 = vmatprep.subr.mxu0 0.0
  %2163 = vmatpush1.msra.mxu0 %v2038
  %2164 = vmatprep.subr.mxu0 0.0
  %2165 = vmatpush2.msra.mxu0 0.0
  %2166 = vmatprep.subr.mxu0 0.0
  %2167 = vmatpush2.msra.mxu0 0.0
  %2168 = vmatprep.subr.mxu0 0.0
  %2169 = vmatpush2.msra.mxu0 0.0
  %2170 = vmatprep.subr.mxu0 0.0
  %2171 = vmatpush2.msra.mxu0 0.0
  %2172 = vmatprep.subr.mxu0 0.0
  %2173 = vmatpush2.msra.mxu0 0.0
  %2174 = vmatprep.subr.mxu0 0.0
  %2175 = vmatpush2.msra.mxu0 0.0
  %2176 = vmatprep.subr.mxu0 0.0
  %2177 = vmatpush2.msra.mxu0 0.0
  %2178 = vmatprep.subr.mxu0 0.0
  %2179 = vmatpush2.msra.mxu0 0.0
  %2180 = vmatprep.subr.mxu0 0.0
  %2181 = vmatpush2.msra.mxu0 0.0
  %2182 = vmatprep.subr.mxu0 0.0
  %2183 = vmatpush2.msra.mxu0 0.0
  %2184 = vmatprep.subr.mxu0 0.0
  %2185 = vmatpush2.msra.mxu0 0.0
  %2186 = vmatprep.subr.mxu0 0.0
  %2187 = vmatpush2.msra.mxu0 0.0
  %2188 = vmatprep.subr.mxu0 0.0
  %2189 = vmatpush2.msra.mxu0 0.0
  %2190 = vmatprep.subr.mxu0 0.0
  %2191 = vmatpush2.msra.mxu0 0.0
  %2192 = vmatprep.subr.mxu0 0.0
  %2193 = vmatpush2.msra.mxu0 0.0
  %2194 = vmatprep.subr.mxu0 0.0
  %2195 = vmatpush2.msra.mxu0 0.0
  %2196 = vmatprep.mubr.f32.mxu0 0.0
  %2197 = vmatmul.mubr.f32.gmra.mxu0 %v2127
  %v2198 = vpop.f32.mrf.mxu0
  %v2199 = vadd.f32 0.0, %v2198
  %v2200 = vpop.f32.mrf.mxu0
  %2201 = vmatprep.mubr.f32.mxu0 0.0
  %2202 = vmatmul.mubr.f32.gmra.mxu0 %v2130
  %v2203 = vpop.f32.mrf.mxu0
  %v2204 = vadd.f32 0.0, %v2203
  %v2205 = vpop.f32.mrf.mxu0
  %2206 = vdwg.mxu0
  %v2207 = vld [vmem:[%s20] sm:$0xff]
  %v2208 = vld [vmem:[%s20 + $0x8] sm:$0xff]
  %v2209 = vld [vmem:[%s20 + $0x10] sm:$0xff]
  %v2210 = vld [vmem:[%s20 + $0x18] sm:$0xff]
  %v2211 = vld [vmem:[%s20 + $0x20] sm:$0xff]
  %v2212 = vld [vmem:[%s20 + $0x28] sm:$0xff]
  %v2213 = vld [vmem:[%s20 + $0x30] sm:$0xff]
  %v2214 = vld [vmem:[%s20 + $0x38] sm:$0xff]
  %v2215 = vld [vmem:[%s20 + $0x40] sm:$0xff]
  %v2216 = vld [vmem:[%s20 + $0x48] sm:$0xff]
  %v2217 = vld [vmem:[%s20 + $0x50] sm:$0xff]
  %v2218 = vld [vmem:[%s20 + $0x58] sm:$0xff]
  %v2219 = vld [vmem:[%s20 + $0x60] sm:$0xff]
  %v2220 = vld [vmem:[%s20 + $0x68] sm:$0xff]
  %v2221 = vld [vmem:[%s20 + $0x70] sm:$0xff]
  %v2222 = vld [vmem:[%s20 + $0x78] sm:$0xff]
  %v2223 = vld [vmem:[%s20 + $0x80] sm:$0xff]
  %v2224 = vld [vmem:[%s20 + $0x88] sm:$0xff]
  %v2225 = vld [vmem:[%s20 + $0x90] sm:$0xff]
  %v2226 = vld [vmem:[%s20 + $0x98] sm:$0xff]
  %v2227 = vld [vmem:[%s20 + $0xa0] sm:$0xff]
  %v2228 = vld [vmem:[%s20 + $0xa8] sm:$0xff]
  %v2229 = vld [vmem:[%s20 + $0xb0] sm:$0xff]
  %v2230 = vld [vmem:[%s20 + $0xb8] sm:$0xff]
  %v2231 = vld [vmem:[%s20 + $0xc0] sm:$0xff]
  %v2232 = vld [vmem:[%s20 + $0xc8] sm:$0xff]
  %v2233 = vld [vmem:[%s20 + $0xd0] sm:$0xff]
  %v2234 = vld [vmem:[%s20 + $0xd8] sm:$0xff]
  %v2235 = vld [vmem:[%s20 + $0xe0] sm:$0xff]
  %v2236 = vld [vmem:[%s20 + $0xe8] sm:$0xff]
  %v2237 = vld [vmem:[%s20 + $0xf0] sm:$0xff]
  %v2238 = vld [vmem:[%s20 + $0xf8] sm:$0xff]
  %v2239 = vld [vmem:[%s20 + $0x100] sm:$0xff]
  %v2240 = vld [vmem:[%s20 + $0x108] sm:$0xff]
  %v2241 = vld [vmem:[%s20 + $0x110] sm:$0xff]
  %v2242 = vld [vmem:[%s20 + $0x118] sm:$0xff]
  %v2243 = vld [vmem:[%s20 + $0x120] sm:$0xff]
  %v2244 = vld [vmem:[%s20 + $0x128] sm:$0xff]
  %v2245 = vld [vmem:[%s20 + $0x130] sm:$0xff]
  %v2246 = vld [vmem:[%s20 + $0x138] sm:$0xff]
  %v2247 = vld [vmem:[%s20 + $0x140] sm:$0xff]
  %v2248 = vld [vmem:[%s20 + $0x148] sm:$0xff]
  %v2249 = vld [vmem:[%s20 + $0x150] sm:$0xff]
  %v2250 = vld [vmem:[%s20 + $0x158] sm:$0xff]
  %v2251 = vld [vmem:[%s20 + $0x160] sm:$0xff]
  %v2252 = vld [vmem:[%s20 + $0x168] sm:$0xff]
  %v2253 = vld [vmem:[%s20 + $0x170] sm:$0xff]
  %v2254 = vld [vmem:[%s20 + $0x178] sm:$0xff]
  %2255 = vmatprep.subr.mxu0 0.0
  %2256 = vmatpush1.msra.mxu0 %v2222
  %2257 = vmatprep.subr.mxu0 0.0
  %2258 = vmatpush1.msra.mxu0 %v2221
  %2259 = vmatprep.subr.mxu0 0.0
  %2260 = vmatpush1.msra.mxu0 %v2220
  %2261 = vmatprep.subr.mxu0 0.0
  %2262 = vmatpush1.msra.mxu0 %v2219
  %2263 = vmatprep.subr.mxu0 0.0
  %2264 = vmatpush1.msra.mxu0 %v2218
  %2265 = vmatprep.subr.mxu0 0.0
  %2266 = vmatpush1.msra.mxu0 %v2217
  %2267 = vmatprep.subr.mxu0 0.0
  %2268 = vmatpush1.msra.mxu0 %v2216
  %2269 = vmatprep.subr.mxu0 0.0
  %2270 = vmatpush1.msra.mxu0 %v2215
  %2271 = vmatprep.subr.mxu0 0.0
  %2272 = vmatpush1.msra.mxu0 %v2214
  %2273 = vmatprep.subr.mxu0 0.0
  %2274 = vmatpush1.msra.mxu0 %v2213
  %2275 = vmatprep.subr.mxu0 0.0
  %2276 = vmatpush1.msra.mxu0 %v2212
  %2277 = vmatprep.subr.mxu0 0.0
  %2278 = vmatpush1.msra.mxu0 %v2211
  %2279 = vmatprep.subr.mxu0 0.0
  %2280 = vmatpush1.msra.mxu0 %v2210
  %2281 = vmatprep.subr.mxu0 0.0
  %2282 = vmatpush1.msra.mxu0 %v2209
  %2283 = vmatprep.subr.mxu0 0.0
  %2284 = vmatpush1.msra.mxu0 %v2208
  %2285 = vmatprep.subr.mxu0 0.0
  %2286 = vmatpush1.msra.mxu0 %v2207
  %2287 = vmatprep.subr.mxu0 0.0
  %2288 = vmatpush2.msra.mxu0 %v2238
  %2289 = vmatprep.subr.mxu0 0.0
  %2290 = vmatpush2.msra.mxu0 %v2237
  %2291 = vmatprep.subr.mxu0 0.0
  %2292 = vmatpush2.msra.mxu0 %v2236
  %2293 = vmatprep.subr.mxu0 0.0
  %2294 = vmatpush2.msra.mxu0 %v2235
  %2295 = vmatprep.subr.mxu0 0.0
  %2296 = vmatpush2.msra.mxu0 %v2234
  %2297 = vmatprep.subr.mxu0 0.0
  %2298 = vmatpush2.msra.mxu0 %v2233
  %2299 = vmatprep.subr.mxu0 0.0
  %2300 = vmatpush2.msra.mxu0 %v2232
  %2301 = vmatprep.subr.mxu0 0.0
  %2302 = vmatpush2.msra.mxu0 %v2231
  %2303 = vmatprep.subr.mxu0 0.0
  %2304 = vmatpush2.msra.mxu0 %v2230
  %2305 = vmatprep.subr.mxu0 0.0
  %2306 = vmatpush2.msra.mxu0 %v2229
  %2307 = vmatprep.subr.mxu0 0.0
  %2308 = vmatpush2.msra.mxu0 %v2228
  %2309 = vmatprep.subr.mxu0 0.0
  %2310 = vmatpush2.msra.mxu0 %v2227
  %2311 = vmatprep.subr.mxu0 0.0
  %2312 = vmatpush2.msra.mxu0 %v2226
  %2313 = vmatprep.subr.mxu0 0.0
  %2314 = vmatpush2.msra.mxu0 %v2225
  %2315 = vmatprep.subr.mxu0 0.0
  %2316 = vmatpush2.msra.mxu0 %v2224
  %2317 = vmatprep.subr.mxu0 0.0
  %2318 = vmatpush2.msra.mxu0 %v2223
  %2319 = vmatprep.mubr.f32.mxu0 %v2038
  %2320 = vmatmul.mubr.f32.gmra.mxu0 %v2116
  %v2321 = vpop.f32.mrf.mxu0
  %v2322 = vadd.f32 0.0, %v2321
  %v2323 = vpop.f32.mrf.mxu0
  %2324 = vmatprep.mubr.f32.mxu0 %v2039
  %2325 = vmatmul.mubr.f32.gmra.mxu0 %v2121
  %v2326 = vpop.f32.mrf.mxu0
  %v2327 = vadd.f32 0.0, %v2326
  %v2328 = vpop.f32.mrf.mxu0
  %2329 = vdwg.mxu0
  %2330 = vmatprep.subr.mxu0 0.0
  %2331 = vmatpush1.msra.mxu0 %v2254
  %2332 = vmatprep.subr.mxu0 0.0
  %2333 = vmatpush1.msra.mxu0 %v2253
  %2334 = vmatprep.subr.mxu0 0.0
  %2335 = vmatpush1.msra.mxu0 %v2252
  %2336 = vmatprep.subr.mxu0 0.0
  %2337 = vmatpush1.msra.mxu0 %v2251
  %2338 = vmatprep.subr.mxu0 0.0
  %2339 = vmatpush1.msra.mxu0 %v2250
  %2340 = vmatprep.subr.mxu0 0.0
  %2341 = vmatpush1.msra.mxu0 %v2249
  %2342 = vmatprep.subr.mxu0 0.0
  %2343 = vmatpush1.msra.mxu0 %v2248
  %2344 = vmatprep.subr.mxu0 0.0
  %2345 = vmatpush1.msra.mxu0 %v2247
  %2346 = vmatprep.subr.mxu0 0.0
  %2347 = vmatpush1.msra.mxu0 %v2246
  %2348 = vmatprep.subr.mxu0 0.0
  %2349 = vmatpush1.msra.mxu0 %v2245
  %2350 = vmatprep.subr.mxu0 0.0
  %2351 = vmatpush1.msra.mxu0 %v2244
  %2352 = vmatprep.subr.mxu0 0.0
  %2353 = vmatpush1.msra.mxu0 %v2243
  %2354 = vmatprep.subr.mxu0 0.0
  %2355 = vmatpush1.msra.mxu0 %v2242
  %2356 = vmatprep.subr.mxu0 0.0
  %2357 = vmatpush1.msra.mxu0 %v2241
  %2358 = vmatprep.subr.mxu0 0.0
  %2359 = vmatpush1.msra.mxu0 %v2240
  %2360 = vmatprep.subr.mxu0 0.0
  %2361 = vmatpush1.msra.mxu0 %v2239
  %2362 = vmatprep.subr.mxu0 0.0
  %2363 = vmatpush2.msra.mxu0 0.0
  %2364 = vmatprep.subr.mxu0 0.0
  %2365 = vmatpush2.msra.mxu0 0.0
  %2366 = vmatprep.subr.mxu0 0.0
  %2367 = vmatpush2.msra.mxu0 0.0
  %2368 = vmatprep.subr.mxu0 0.0
  %2369 = vmatpush2.msra.mxu0 0.0
  %2370 = vmatprep.subr.mxu0 0.0
  %2371 = vmatpush2.msra.mxu0 0.0
  %2372 = vmatprep.subr.mxu0 0.0
  %2373 = vmatpush2.msra.mxu0 0.0
  %2374 = vmatprep.subr.mxu0 0.0
  %2375 = vmatpush2.msra.mxu0 0.0
  %2376 = vmatprep.subr.mxu0 0.0
  %2377 = vmatpush2.msra.mxu0 0.0
  %2378 = vmatprep.subr.mxu0 0.0
  %2379 = vmatpush2.msra.mxu0 0.0
  %2380 = vmatprep.subr.mxu0 0.0
  %2381 = vmatpush2.msra.mxu0 0.0
  %2382 = vmatprep.subr.mxu0 0.0
  %2383 = vmatpush2.msra.mxu0 0.0
  %2384 = vmatprep.subr.mxu0 0.0
  %2385 = vmatpush2.msra.mxu0 0.0
  %2386 = vmatprep.subr.mxu0 0.0
  %2387 = vmatpush2.msra.mxu0 0.0
  %2388 = vmatprep.subr.mxu0 0.0
  %2389 = vmatpush2.msra.mxu0 0.0
  %2390 = vmatprep.subr.mxu0 0.0
  %2391 = vmatpush2.msra.mxu0 0.0
  %2392 = vmatprep.subr.mxu0 0.0
  %2393 = vmatpush2.msra.mxu0 0.0
  %2394 = vmatprep.mubr.f32.mxu0 0.0
  %2395 = vmatmul.mubr.f32.gmra.mxu0 %v2199
  %v2396 = vpop.f32.mrf.mxu0
  %v2397 = vadd.f32 %v2322, %v2396
  %v2398 = vpop.f32.mrf.mxu0
  %2399 = vmatprep.mubr.f32.mxu0 0.0
  %2400 = vmatmul.mubr.f32.gmra.mxu0 %v2204
  %v2401 = vpop.f32.mrf.mxu0
  %v2402 = vadd.f32 %v2327, %v2401
  %v2403 = vpop.f32.mrf.mxu0
  %2404 = vdwg.mxu0
  %v2405 = vld [vmem:[%s23] sm:$0x1]
  %v2407 = vlaneseq
  %v2408 = vshrl.u32 %v2407, 7
  %v2409 = vsub.s32 0, %v2408
  %v2410 = vrot.slane %v2405, %v2409
  %v2412 = vmul.f32 %v2397, %v2410
  %v2413 = vmul.f32 %v2402, %v2410
  %v2414 = vld [vmem:[%s24] sm:$0x1]
  %v2416 = vlaneseq
  %v2417 = vshrl.u32 %v2416, 7
  %v2418 = vsub.s32 0, %v2417
  %v2419 = vrot.slane %v2414, %v2418
  %v2421 = vadd.f32 %v2412, %v2419
  %v2422 = vadd.f32 %v2413, %v2419
  %v2423 = vmax.f32 %v2421, 0.0
  %v2424 = vmax.f32 %v2422, 0.0
  %2425 = vst [vmem:[%s25] sm:$0xff] %v2423
  %2426 = vst [vmem:[%s25 + $0x8] sm:$0xff] %v2424
  // Predicated region
  $region102: #{encoder_forward.1} parent=0 // pred_check
    _
  $region103: #{encoder_forward.1} parent=0 // pred_check_branch
    %2428 = sbr.rel (0) target = $region105
  $region104: #{encoder_forward.1} parent=0 // pred_region
    _
  $region105: #{encoder_forward.1} parent=0 // pred_fallthru
    _
  // Predicated region
  $region106: #{encoder_forward.1} parent=0 // pred_check
    _
  $region107: #{encoder_forward.1} parent=0 // pred_check_branch
    %2430 = sbr.rel (0) target = $region109
  $region108: #{encoder_forward.1} parent=0 // pred_region
    _
  $region109: #{encoder_forward.1} parent=0 // pred_fallthru
    _

</llo_original>
